<compile_context>
chip_gen: v7x
topology: tpu7x:2x2x1
jax: 0.10.0
libtpu: 0.0.40
codegen_flags: <defaults>
</compile_context>

<pallas_src>
import jax
import jax.numpy as jnp
from jax.experimental import pallas as pl
from jax.experimental.pallas import tpu as pltpu


_LANE = 128
_ALIGN = 8 * _LANE                      # 1024-element (one f32 vreg) alignment
# Wide, lane-dense column widths tried first (largest contiguous DMAs,
# unmasked vst stores).
_COL_CANDIDATES = (32768, 16384, 8192, 4096, 2048, 1024, 512, 256, 128)
# ~4 MiB per tile -> 2 (in) + 2 (out) double-buffered = 16 MiB VMEM plus
# native-dtype temporaries, safe on v5e/v6e (128 MiB) and v7x (64 MiB).
_TARGET_TILE_BYTES = 4 * 1024 * 1024
# Below this element count the pallas launch/grid overhead dominates; plain
# XLA fusion is faster (and avoids 1-row degenerate slabs).
_SMALL_INPUT_ELEMS = 128 * 1024


# ----------------------------------------------------------------------------
# Pallas kernel: elementwise affine  y = x * scale + shift
#   params_ref : (2,) f32 in SMEM  -> [scale, shift]
#   x_ref/o_ref: (block_rows, cols) tiles in native dtype.
# Compute happens in the native floating dtype (bf16 stays bf16): the kernel
# is DMA-bound, so precision/throughput of the VALU is irrelevant, and skipping
# the whole-block f32 promotion halves temporary VMEM/vreg pressure.  Results
# may differ from an f32-compute reference by <= ~1 ulp of the storage dtype.
# ----------------------------------------------------------------------------
def _affine_kernel(params_ref, x_ref, o_ref):
    x = x_ref[...]
    compute_dtype = x.dtype if jnp.issubdtype(x.dtype, jnp.floating) else jnp.float32
    scale = params_ref[0].astype(compute_dtype)
    shift = params_ref[1].astype(compute_dtype)
    o_ref[...] = (x.astype(compute_dtype) * scale + shift).astype(o_ref.dtype)


def _sublane_granule(dtype):
    # Sublane packing granule: 8 rows for 32-bit, 16 for 16-bit, 32 for 8-bit.
    bits = jnp.dtype(dtype).itemsize * 8
    return max(8, 256 // bits)


def _choose_cols(total, granule):
    """Largest lane-dense column width dividing `total`, preferring a width
    that leaves at least `granule` rows (full sublane occupancy)."""
    best = None
    for c in _COL_CANDIDATES:
        if total % c == 0:
            if best is None:
                best = c
            if total // c >= granule:
                return c
    return best


def _choose_block_rows(rows, cols, dtype):
    granule = _sublane_granule(dtype)
    itemsize = jnp.dtype(dtype).itemsize
    fit = max(1, _TARGET_TILE_BYTES // (cols * itemsize))
    if fit >= rows:
        return rows                              # single full-extent row block
    fit = max(granule, (fit // granule) * granule)
    # Prefer a block_rows that evenly divides rows so every block (including
    # the last) is full: unmasked, lane/sublane-dense stores.
    br = fit
    while br >= granule:
        if rows % br == 0:
            return br
        br -= granule
    return fit                                   # partial edge block (masked)


def _pallas_affine_2d(x2d, params):
    rows, cols = x2d.shape
    itemsize = jnp.dtype(x2d.dtype).itemsize
    total = rows * cols
    block_rows = _choose_block_rows(rows, cols, x2d.dtype)
    grid = (pl.cdiv(rows, block_rows),)
    # NOTE: input_output_aliases={1: 0} could be added when callers can donate
    # x (halves peak HBM footprint; no bandwidth change), so it is left off.
    return pl.pallas_call(
        _affine_kernel,
        out_shape=jax.ShapeDtypeStruct((rows, cols), x2d.dtype),
        grid=grid,
        in_specs=[
            pl.BlockSpec(memory_space=pltpu.MemorySpace.SMEM),   # scale/shift
            pl.BlockSpec((block_rows, cols), lambda i: (i, 0)),  # x tile
        ],
        out_specs=pl.BlockSpec((block_rows, cols), lambda i: (i, 0)),
        compiler_params=pltpu.CompilerParams(
            dimension_semantics=("parallel",),
            vmem_limit_bytes=32 * 1024 * 1024,
        ),
        cost_estimate=pl.CostEstimate(
            flops=2 * total,
            transcendentals=0,
            bytes_accessed=2 * total * itemsize,
        ),
    )(params, x2d)


def _xla_affine(x, scale, shift):
    compute_dtype = x.dtype if jnp.issubdtype(x.dtype, jnp.floating) else jnp.float32
    s = jnp.asarray(scale, dtype=compute_dtype)
    t = jnp.asarray(shift, dtype=compute_dtype)
    return (x.astype(compute_dtype) * s + t).astype(x.dtype)


# ----------------------------------------------------------------------------
# Representative "torch_fun": elementwise affine backed by the Pallas kernel.
# Flattens any-rank input to a lane-dense 2D slab, runs one fused pass, and
# restores the original shape/dtype.  No extra HBM passes on the common path.
# ----------------------------------------------------------------------------
def affine_fun(x, scale, shift):
    orig_shape = x.shape
    total = int(x.size)

    # Tiny tensors: launch overhead dominates a streaming kernel; let XLA fuse.
    if total < _SMALL_INPUT_ELEMS:
        return _xla_affine(x, scale, shift)

    params = jnp.asarray([scale, shift], dtype=jnp.float32)
    granule = _sublane_granule(x.dtype)
    flat = x.reshape(-1)

    cols = _choose_cols(total, granule)
    if cols is not None:
        # Common path: whole tensor reshapes to a lane-dense slab, one pass.
        y2d = _pallas_affine_2d(flat.reshape(-1, cols), params)
        return y2d.reshape(orig_shape)

    # Ragged path (element count not a multiple of 128): kernel on the largest
    # 1024-aligned prefix, <1024-element tail in plain XLA, one concatenate.
    main = (total // _ALIGN) * _ALIGN
    head = flat[:main]
    tail = flat[main:]
    cols = _choose_cols(main, granule)           # 1024 always divides `main`
    y_head = _pallas_affine_2d(head.reshape(-1, cols), params).reshape(-1)
    y_tail = _xla_affine(tail, scale, shift)
    return jnp.concatenate([y_head, y_tail]).reshape(orig_shape)


# ----------------------------------------------------------------------------
# ModuleOfFunction equivalent: apply fn(*args, *config_args) with gradients
# stopped (JAX analogue of torch.no_grad() in forward).
# ----------------------------------------------------------------------------
class ModuleOfFunction:
    def __init__(self, jax_fun, *config_args):
        self.jax_fun = jax_fun
        self.config_args = config_args

    def __call__(self, *args):
        out = self.jax_fun(*args, *self.config_args)
        return jax.tree_util.tree_map(jax.lax.stop_gradient, out)


if __name__ == "__main__":
    key = jax.random.PRNGKey(0)
    scale, shift = 2.0, 0.5
    module = ModuleOfFunction(affine_fun, scale, shift)

    # 1) Small NCHW input (matches typical module usage) -> XLA fallback path.
    x_small = jax.random.normal(key, (2, 4, 16, 16), dtype=jnp.float32)
    y_small = jax.block_until_ready(module(x_small))
    assert y_small.shape == x_small.shape and y_small.dtype == x_small.dtype
    assert jnp.allclose(y_small, x_small * scale + shift, atol=1e-6, rtol=1e-6)

    # 2) Larger f32 input -> Pallas streaming path (lane-dense slab).
    x_f32 = jax.random.normal(jax.random.PRNGKey(1), (8, 32, 64, 64),
                              dtype=jnp.float32)
    y_f32 = jax.block_until_ready(module(x_f32))
    assert y_f32.shape == x_f32.shape and y_f32.dtype == jnp.float32
    assert jnp.allclose(y_f32, x_f32 * scale + shift, atol=1e-5, rtol=1e-5)

    # 3) bf16 input -> native-bf16 in-kernel compute (no f32 block promotion).
    x_bf16 = jax.random.normal(jax.random.PRNGKey(2), (8, 32, 64, 64),
                               dtype=jnp.bfloat16)
    y_bf16 = jax.block_until_ready(module(x_bf16))
    ref_bf16 = (x_bf16.astype(jnp.float32) * scale + shift).astype(jnp.bfloat16)
    assert y_bf16.shape == x_bf16.shape and y_bf16.dtype == jnp.bfloat16
    assert jnp.allclose(y_bf16.astype(jnp.float32), ref_bf16.astype(jnp.float32),
                        atol=2e-2, rtol=2e-2)

    # 4) Ragged element count (not a multiple of 128) -> prefix kernel + XLA tail.
    x_rag = jax.random.normal(jax.random.PRNGKey(3), (257, 515),
                              dtype=jnp.float32)
    y_rag = jax.block_until_ready(module(x_rag))
    assert y_rag.shape == x_rag.shape
    assert jnp.allclose(y_rag, x_rag * scale + shift, atol=1e-5, rtol=1e-5)

    print("KERNEL_OK")
</pallas_src>

<mosaic_0001>
module attributes {stable_mosaic.version = 11 : i64} {
  func.func @_affine_kernel(%arg0: i32, %arg1: memref<2xf32, #tpu.memory_space<smem>>, %arg2: memref<32x32768xf32, #tpu.memory_space<vmem>>, %arg3: memref<32x32768xf32, #tpu.memory_space<vmem>>) attributes {dimension_semantics = [#tpu.dimension_semantics<parallel>], iteration_bounds = array<i64: 1>, scalar_prefetch = 0 : i64, scratch_operands = 0 : i64, tpu.core_type = #tpu.core_type<tc>, window_params = [{transform_indices = @transform_0, window_bounds = array<i64: 2>}, {transform_indices = @transform_1, window_bounds = array<i64: 32, 32768>}, {transform_indices = @transform_2, window_bounds = array<i64: 32, 32768>}]} {
    %c0 = arith.constant 0 : index
    %c0_0 = arith.constant 0 : index
    %0 = vector.load %arg2[%c0, %c0_0] : memref<32x32768xf32, #tpu.memory_space<vmem>>, vector<32x32768xf32>
    %c0_1 = arith.constant 0 : index
    %1 = memref.load %arg1[%c0_1] : memref<2xf32, #tpu.memory_space<smem>>
    %c1 = arith.constant 1 : index
    %2 = memref.load %arg1[%c1] : memref<2xf32, #tpu.memory_space<smem>>
    %3 = vector.broadcast %1 : f32 to vector<32x32768xf32>
    %4 = arith.mulf %0, %3 : vector<32x32768xf32>
    %5 = vector.broadcast %2 : f32 to vector<32x32768xf32>
    %6 = arith.addf %4, %5 : vector<32x32768xf32>
    %c0_2 = arith.constant 0 : index
    %c0_3 = arith.constant 0 : index
    %7 = vector.load %arg3[%c0_2, %c0_3] : memref<32x32768xf32, #tpu.memory_space<vmem>>, vector<32x32768xf32>
    tpu.vector_store %arg3[%c0_2, %c0_3], %6 {strides = array<i32>} : memref<32x32768xf32, #tpu.memory_space<vmem>>, vector<32x32768xf32>,
    return
  }
  func.func @transform_0(%arg0: i32) -> i32 {
    %c0_i32 = arith.constant 0 : i32
    %c0_i32_0 = arith.constant 0 : i32
    return %c0_i32 : i32
  }
  func.func @transform_1(%arg0: i32) -> (i32, i32) {
    %c0_i32 = arith.constant 0 : i32
    %c0_i32_0 = arith.constant 0 : i32
    return %arg0, %c0_i32 : i32, i32
  }
  func.func @transform_2(%arg0: i32) -> (i32, i32) {
    %c0_i32 = arith.constant 0 : i32
    %c0_i32_0 = arith.constant 0 : i32
    return %arg0, %c0_i32 : i32, i32
  }
}

</mosaic_0001>

<llo_original>
// kernel: tpu_custom_call.1
$region0: #{tpu_custom_call.1}
  #allocation0 [shape = 'u32[]', space=smem, size = 0x4, offset = 0x4, fixed_abs, tag = 'smem constant byte address 0x4 - core index']
  #allocation1 [shape = 'u32[144,128]{1,0:T(1,128)}', space=vmem, size = 0x12000, scoped, tag = 'internal scratch']
  %s0 = inlined_call_operand.hbm [shape: f32[2], index: 0, kind: input, shape index: {}]
  %s1 = inlined_call_operand.hbm [shape: f32[32,32768], index: 1, kind: input, shape index: {}]
  %s2 = inlined_call_operand.hbm [shape: f32[32,32768], index: 2, kind: output, shape index: {}]
  %s3 = sld [smem:[#allocation0]]
  $region26: #{tpu_custom_call.1} parent=0
    _
  %s5 = ssub.s32 1, %s3
  %s6 = scalar_select 0, %s5, %s3
  $region1: #{tpu_custom_call.1} parent=0
    #allocation2 [shape = 'u8[512]{0}', space=smem, size = 0x200, scoped, tag = 'input window, operand 0, single buffered']
    #allocation3 [shape = 's32[1]{0}', space=sflag, size = 0x4, scoped, tag = 'scoped memory for tpu_custom_call.1']
    #allocation4 [shape = 's32[1]{0}', space=sflag, size = 0x4, scoped, tag = 'scoped memory for tpu_custom_call.1']
    #allocation5 [shape = 's32[1]{0}', space=sflag, size = 0x4, scoped, tag = 'scoped memory for tpu_custom_call.1']
    #allocation6 [shape = 'u8[4194304]{0}', space=vmem, size = 0x400000, scoped, tag = 'input window, operand 1, single buffered']
    #allocation7 [shape = 'u8[4194304]{0}', space=vmem, size = 0x400000, scoped, tag = 'output window, operand 0, single buffered']
    %7 = vsyncpa [#allocation5], 0
    %8 = vsyncpa [#allocation3], 0
    %9 = vsyncpa [#allocation4], 0
    // Predicated region
    $region2: #{tpu_custom_call.1} parent=1 // pred_check
      _
    $region3: #{tpu_custom_call.1} parent=1 // pred_check_branch
      %11 = sbr.rel (0) target = $region5
    $region4: #{tpu_custom_call.1} parent=1 // pred_region
      %s13 = ssub.s32 16, 16
      %14 = vsyncadd [#allocation5], %s13
      %17 = dma.hbm_to_smem %s0, 16, [#allocation2], [#allocation5]
    $region5: #{tpu_custom_call.1} parent=1 // pred_fallthru
      _
    // Predicated region
    $region6: #{tpu_custom_call.1} parent=1 // pred_check
      _
    $region7: #{tpu_custom_call.1} parent=1 // pred_check_branch
      %19 = sbr.rel (0) target = $region9
    $region8: #{tpu_custom_call.1} parent=1 // pred_region
      %s21 = ssub.s32 131072, 131072
      %22 = vsyncadd [#allocation3], %s21
      %s23 = sshll.u32 [#allocation6], 4
      %s24 = int_to_ptr.vmem [resolvable:$true] %s23
      %29 = dma.hbm_to_vmem [thread:$0]  %s1, 131072, %s24, [#allocation3], 32768, 32768, 2048
    $region9: #{tpu_custom_call.1} parent=1 // pred_fallthru
      _
    // Predicated region
    $region10: #{tpu_custom_call.1} parent=1 // pred_check
      _
    $region11: #{tpu_custom_call.1} parent=1 // pred_check_branch
      %31 = sbr.rel (0) target = $region13
    $region12: #{tpu_custom_call.1} parent=1 // pred_region
      %32 = dma.done [#allocation5], 16
    $region13: #{tpu_custom_call.1} parent=1 // pred_fallthru
      _
    // Predicated region
    $region14: #{tpu_custom_call.1} parent=1 // pred_check
      _
    $region15: #{tpu_custom_call.1} parent=1 // pred_check_branch
      %34 = sbr.rel (0) target = $region17
    $region16: #{tpu_custom_call.1} parent=1 // pred_region
      %35 = dma.done [#allocation3], 131072
    $region17: #{tpu_custom_call.1} parent=1 // pred_fallthru
      _
    %36 = sfence
    %v37 = vld [vmem:[#allocation6] sm:$0xff]
    %v38 = vld [vmem:[#allocation6 + $0x8] sm:$0xff]
    %v39 = vld [vmem:[#allocation6 + $0x10] sm:$0xff]
    %v40 = vld [vmem:[#allocation6 + $0x18] sm:$0xff]
    %v41 = vld [vmem:[#allocation6 + $0x20] sm:$0xff]
    %v42 = vld [vmem:[#allocation6 + $0x28] sm:$0xff]
    %v43 = vld [vmem:[#allocation6 + $0x30] sm:$0xff]
    %v44 = vld [vmem:[#allocation6 + $0x38] sm:$0xff]
    %v45 = vld [vmem:[#allocation6 + $0x40] sm:$0xff]
    %v46 = vld [vmem:[#allocation6 + $0x48] sm:$0xff]
    %v47 = vld [vmem:[#allocation6 + $0x50] sm:$0xff]
    %v48 = vld [vmem:[#allocation6 + $0x58] sm:$0xff]
    %v49 = vld [vmem:[#allocation6 + $0x60] sm:$0xff]
    %v50 = vld [vmem:[#allocation6 + $0x68] sm:$0xff]
    %v51 = vld [vmem:[#allocation6 + $0x70] sm:$0xff]
    %v52 = vld [vmem:[#allocation6 + $0x78] sm:$0xff]
    %v53 = vld [vmem:[#allocation6 + $0x80] sm:$0xff]
    %v54 = vld [vmem:[#allocation6 + $0x88] sm:$0xff]
    %v55 = vld [vmem:[#allocation6 + $0x90] sm:$0xff]
    %v56 = vld [vmem:[#allocation6 + $0x98] sm:$0xff]
    %v57 = vld [vmem:[#allocation6 + $0xa0] sm:$0xff]
    %v58 = vld [vmem:[#allocation6 + $0xa8] sm:$0xff]
    %v59 = vld [vmem:[#allocation6 + $0xb0] sm:$0xff]
    %v60 = vld [vmem:[#allocation6 + $0xb8] sm:$0xff]
    %v61 = vld [vmem:[#allocation6 + $0xc0] sm:$0xff]
    %v62 = vld [vmem:[#allocation6 + $0xc8] sm:$0xff]
    %v63 = vld [vmem:[#allocation6 + $0xd0] sm:$0xff]
    %v64 = vld [vmem:[#allocation6 + $0xd8] sm:$0xff]
    %v65 = vld [vmem:[#allocation6 + $0xe0] sm:$0xff]
    %v66 = vld [vmem:[#allocation6 + $0xe8] sm:$0xff]
    %v67 = vld [vmem:[#allocation6 + $0xf0] sm:$0xff]
    %v68 = vld [vmem:[#allocation6 + $0xf8] sm:$0xff]
    %v69 = vld [vmem:[#allocation6 + $0x100] sm:$0xff]
    %v70 = vld [vmem:[#allocation6 + $0x108] sm:$0xff]
    %v71 = vld [vmem:[#allocation6 + $0x110] sm:$0xff]
    %v72 = vld [vmem:[#allocation6 + $0x118] sm:$0xff]
    %v73 = vld [vmem:[#allocation6 + $0x120] sm:$0xff]
    %v74 = vld [vmem:[#allocation6 + $0x128] sm:$0xff]
    %v75 = vld [vmem:[#allocation6 + $0x130] sm:$0xff]
    %v76 = vld [vmem:[#allocation6 + $0x138] sm:$0xff]
    %v77 = vld [vmem:[#allocation6 + $0x140] sm:$0xff]
    %v78 = vld [vmem:[#allocation6 + $0x148] sm:$0xff]
    %v79 = vld [vmem:[#allocation6 + $0x150] sm:$0xff]
    %v80 = vld [vmem:[#allocation6 + $0x158] sm:$0xff]
    %v81 = vld [vmem:[#allocation6 + $0x160] sm:$0xff]
    %v82 = vld [vmem:[#allocation6 + $0x168] sm:$0xff]
    %v83 = vld [vmem:[#allocation6 + $0x170] sm:$0xff]
    %v84 = vld [vmem:[#allocation6 + $0x178] sm:$0xff]
    %v85 = vld [vmem:[#allocation6 + $0x180] sm:$0xff]
    %v86 = vld [vmem:[#allocation6 + $0x188] sm:$0xff]
    %v87 = vld [vmem:[#allocation6 + $0x190] sm:$0xff]
    %v88 = vld [vmem:[#allocation6 + $0x198] sm:$0xff]
    %v89 = vld [vmem:[#allocation6 + $0x1a0] sm:$0xff]
    %v90 = vld [vmem:[#allocation6 + $0x1a8] sm:$0xff]
    %v91 = vld [vmem:[#allocation6 + $0x1b0] sm:$0xff]
    %v92 = vld [vmem:[#allocation6 + $0x1b8] sm:$0xff]
    %v93 = vld [vmem:[#allocation6 + $0x1c0] sm:$0xff]
    %v94 = vld [vmem:[#allocation6 + $0x1c8] sm:$0xff]
    %v95 = vld [vmem:[#allocation6 + $0x1d0] sm:$0xff]
    %v96 = vld [vmem:[#allocation6 + $0x1d8] sm:$0xff]
    %v97 = vld [vmem:[#allocation6 + $0x1e0] sm:$0xff]
    %v98 = vld [vmem:[#allocation6 + $0x1e8] sm:$0xff]
    %v99 = vld [vmem:[#allocation6 + $0x1f0] sm:$0xff]
    %v100 = vld [vmem:[#allocation6 + $0x1f8] sm:$0xff]
    %v101 = vld [vmem:[#allocation6 + $0x200] sm:$0xff]
    %v102 = vld [vmem:[#allocation6 + $0x208] sm:$0xff]
    %v103 = vld [vmem:[#allocation6 + $0x210] sm:$0xff]
    %v104 = vld [vmem:[#allocation6 + $0x218] sm:$0xff]
    %v105 = vld [vmem:[#allocation6 + $0x220] sm:$0xff]
    %v106 = vld [vmem:[#allocation6 + $0x228] sm:$0xff]
    %v107 = vld [vmem:[#allocation6 + $0x230] sm:$0xff]
    %v108 = vld [vmem:[#allocation6 + $0x238] sm:$0xff]
    %v109 = vld [vmem:[#allocation6 + $0x240] sm:$0xff]
    %v110 = vld [vmem:[#allocation6 + $0x248] sm:$0xff]
    %v111 = vld [vmem:[#allocation6 + $0x250] sm:$0xff]
    %v112 = vld [vmem:[#allocation6 + $0x258] sm:$0xff]
    %v113 = vld [vmem:[#allocation6 + $0x260] sm:$0xff]
    %v114 = vld [vmem:[#allocation6 + $0x268] sm:$0xff]
    %v115 = vld [vmem:[#allocation6 + $0x270] sm:$0xff]
    %v116 = vld [vmem:[#allocation6 + $0x278] sm:$0xff]
    %v117 = vld [vmem:[#allocation6 + $0x280] sm:$0xff]
    %v118 = vld [vmem:[#allocation6 + $0x288] sm:$0xff]
    %v119 = vld [vmem:[#allocation6 + $0x290] sm:$0xff]
    %v120 = vld [vmem:[#allocation6 + $0x298] sm:$0xff]
    %v121 = vld [vmem:[#allocation6 + $0x2a0] sm:$0xff]
    %v122 = vld [vmem:[#allocation6 + $0x2a8] sm:$0xff]
    %v123 = vld [vmem:[#allocation6 + $0x2b0] sm:$0xff]
    %v124 = vld [vmem:[#allocation6 + $0x2b8] sm:$0xff]
    %v125 = vld [vmem:[#allocation6 + $0x2c0] sm:$0xff]
    %v126 = vld [vmem:[#allocation6 + $0x2c8] sm:$0xff]
    %v127 = vld [vmem:[#allocation6 + $0x2d0] sm:$0xff]
    %v128 = vld [vmem:[#allocation6 + $0x2d8] sm:$0xff]
    %v129 = vld [vmem:[#allocation6 + $0x2e0] sm:$0xff]
    %v130 = vld [vmem:[#allocation6 + $0x2e8] sm:$0xff]
    %v131 = vld [vmem:[#allocation6 + $0x2f0] sm:$0xff]
    %v132 = vld [vmem:[#allocation6 + $0x2f8] sm:$0xff]
    %v133 = vld [vmem:[#allocation6 + $0x300] sm:$0xff]
    %v134 = vld [vmem:[#allocation6 + $0x308] sm:$0xff]
    %v135 = vld [vmem:[#allocation6 + $0x310] sm:$0xff]
    %v136 = vld [vmem:[#allocation6 + $0x318] sm:$0xff]
    %v137 = vld [vmem:[#allocation6 + $0x320] sm:$0xff]
    %v138 = vld [vmem:[#allocation6 + $0x328] sm:$0xff]
    %v139 = vld [vmem:[#allocation6 + $0x330] sm:$0xff]
    %v140 = vld [vmem:[#allocation6 + $0x338] sm:$0xff]
    %v141 = vld [vmem:[#allocation6 + $0x340] sm:$0xff]
    %v142 = vld [vmem:[#allocation6 + $0x348] sm:$0xff]
    %v143 = vld [vmem:[#allocation6 + $0x350] sm:$0xff]
    %v144 = vld [vmem:[#allocation6 + $0x358] sm:$0xff]
    %v145 = vld [vmem:[#allocation6 + $0x360] sm:$0xff]
    %v146 = vld [vmem:[#allocation6 + $0x368] sm:$0xff]
    %v147 = vld [vmem:[#allocation6 + $0x370] sm:$0xff]
    %v148 = vld [vmem:[#allocation6 + $0x378] sm:$0xff]
    %v149 = vld [vmem:[#allocation6 + $0x380] sm:$0xff]
    %v150 = vld [vmem:[#allocation6 + $0x388] sm:$0xff]
    %v151 = vld [vmem:[#allocation6 + $0x390] sm:$0xff]
    %v152 = vld [vmem:[#allocation6 + $0x398] sm:$0xff]
    %v153 = vld [vmem:[#allocation6 + $0x3a0] sm:$0xff]
    %v154 = vld [vmem:[#allocation6 + $0x3a8] sm:$0xff]
    %v155 = vld [vmem:[#allocation6 + $0x3b0] sm:$0xff]
    %v156 = vld [vmem:[#allocation6 + $0x3b8] sm:$0xff]
    %v157 = vld [vmem:[#allocation6 + $0x3c0] sm:$0xff]
    %v158 = vld [vmem:[#allocation6 + $0x3c8] sm:$0xff]
    %v159 = vld [vmem:[#allocation6 + $0x3d0] sm:$0xff]
    %v160 = vld [vmem:[#allocation6 + $0x3d8] sm:$0xff]
    %v161 = vld [vmem:[#allocation6 + $0x3e0] sm:$0xff]
    %v162 = vld [vmem:[#allocation6 + $0x3e8] sm:$0xff]
    %v163 = vld [vmem:[#allocation6 + $0x3f0] sm:$0xff]
    %v164 = vld [vmem:[#allocation6 + $0x3f8] sm:$0xff]
    %v165 = vld [vmem:[#allocation6 + $0x400] sm:$0xff]
    %v166 = vld [vmem:[#allocation6 + $0x408] sm:$0xff]
    %v167 = vld [vmem:[#allocation6 + $0x410] sm:$0xff]
    %v168 = vld [vmem:[#allocation6 + $0x418] sm:$0xff]
    %v169 = vld [vmem:[#allocation6 + $0x420] sm:$0xff]
    %v170 = vld [vmem:[#allocation6 + $0x428] sm:$0xff]
    %v171 = vld [vmem:[#allocation6 + $0x430] sm:$0xff]
    %v172 = vld [vmem:[#allocation6 + $0x438] sm:$0xff]
    %v173 = vld [vmem:[#allocation6 + $0x440] sm:$0xff]
    %v174 = vld [vmem:[#allocation6 + $0x448] sm:$0xff]
    %v175 = vld [vmem:[#allocation6 + $0x450] sm:$0xff]
    %v176 = vld [vmem:[#allocation6 + $0x458] sm:$0xff]
    %v177 = vld [vmem:[#allocation6 + $0x460] sm:$0xff]
    %v178 = vld [vmem:[#allocation6 + $0x468] sm:$0xff]
    %v179 = vld [vmem:[#allocation6 + $0x470] sm:$0xff]
    %v180 = vld [vmem:[#allocation6 + $0x478] sm:$0xff]
    %v181 = vld [vmem:[#allocation6 + $0x480] sm:$0xff]
    %v182 = vld [vmem:[#allocation6 + $0x488] sm:$0xff]
    %v183 = vld [vmem:[#allocation6 + $0x490] sm:$0xff]
    %v184 = vld [vmem:[#allocation6 + $0x498] sm:$0xff]
    %v185 = vld [vmem:[#allocation6 + $0x4a0] sm:$0xff]
    %v186 = vld [vmem:[#allocation6 + $0x4a8] sm:$0xff]
    %v187 = vld [vmem:[#allocation6 + $0x4b0] sm:$0xff]
    %v188 = vld [vmem:[#allocation6 + $0x4b8] sm:$0xff]
    %v189 = vld [vmem:[#allocation6 + $0x4c0] sm:$0xff]
    %v190 = vld [vmem:[#allocation6 + $0x4c8] sm:$0xff]
    %v191 = vld [vmem:[#allocation6 + $0x4d0] sm:$0xff]
    %v192 = vld [vmem:[#allocation6 + $0x4d8] sm:$0xff]
    %v193 = vld [vmem:[#allocation6 + $0x4e0] sm:$0xff]
    %v194 = vld [vmem:[#allocation6 + $0x4e8] sm:$0xff]
    %v195 = vld [vmem:[#allocation6 + $0x4f0] sm:$0xff]
    %v196 = vld [vmem:[#allocation6 + $0x4f8] sm:$0xff]
    %v197 = vld [vmem:[#allocation6 + $0x500] sm:$0xff]
    %v198 = vld [vmem:[#allocation6 + $0x508] sm:$0xff]
    %v199 = vld [vmem:[#allocation6 + $0x510] sm:$0xff]
    %v200 = vld [vmem:[#allocation6 + $0x518] sm:$0xff]
    %v201 = vld [vmem:[#allocation6 + $0x520] sm:$0xff]
    %v202 = vld [vmem:[#allocation6 + $0x528] sm:$0xff]
    %v203 = vld [vmem:[#allocation6 + $0x530] sm:$0xff]
    %v204 = vld [vmem:[#allocation6 + $0x538] sm:$0xff]
    %v205 = vld [vmem:[#allocation6 + $0x540] sm:$0xff]
    %v206 = vld [vmem:[#allocation6 + $0x548] sm:$0xff]
    %v207 = vld [vmem:[#allocation6 + $0x550] sm:$0xff]
    %v208 = vld [vmem:[#allocation6 + $0x558] sm:$0xff]
    %v209 = vld [vmem:[#allocation6 + $0x560] sm:$0xff]
    %v210 = vld [vmem:[#allocation6 + $0x568] sm:$0xff]
    %v211 = vld [vmem:[#allocation6 + $0x570] sm:$0xff]
    %v212 = vld [vmem:[#allocation6 + $0x578] sm:$0xff]
    %v213 = vld [vmem:[#allocation6 + $0x580] sm:$0xff]
    %v214 = vld [vmem:[#allocation6 + $0x588] sm:$0xff]
    %v215 = vld [vmem:[#allocation6 + $0x590] sm:$0xff]
    %v216 = vld [vmem:[#allocation6 + $0x598] sm:$0xff]
    %v217 = vld [vmem:[#allocation6 + $0x5a0] sm:$0xff]
    %v218 = vld [vmem:[#allocation6 + $0x5a8] sm:$0xff]
    %v219 = vld [vmem:[#allocation6 + $0x5b0] sm:$0xff]
    %v220 = vld [vmem:[#allocation6 + $0x5b8] sm:$0xff]
    %v221 = vld [vmem:[#allocation6 + $0x5c0] sm:$0xff]
    %v222 = vld [vmem:[#allocation6 + $0x5c8] sm:$0xff]
    %v223 = vld [vmem:[#allocation6 + $0x5d0] sm:$0xff]
    %v224 = vld [vmem:[#allocation6 + $0x5d8] sm:$0xff]
    %v225 = vld [vmem:[#allocation6 + $0x5e0] sm:$0xff]
    %v226 = vld [vmem:[#allocation6 + $0x5e8] sm:$0xff]
    %v227 = vld [vmem:[#allocation6 + $0x5f0] sm:$0xff]
    %v228 = vld [vmem:[#allocation6 + $0x5f8] sm:$0xff]
    %v229 = vld [vmem:[#allocation6 + $0x600] sm:$0xff]
    %v230 = vld [vmem:[#allocation6 + $0x608] sm:$0xff]
    %v231 = vld [vmem:[#allocation6 + $0x610] sm:$0xff]
    %v232 = vld [vmem:[#allocation6 + $0x618] sm:$0xff]
    %v233 = vld [vmem:[#allocation6 + $0x620] sm:$0xff]
    %v234 = vld [vmem:[#allocation6 + $0x628] sm:$0xff]
    %v235 = vld [vmem:[#allocation6 + $0x630] sm:$0xff]
    %v236 = vld [vmem:[#allocation6 + $0x638] sm:$0xff]
    %v237 = vld [vmem:[#allocation6 + $0x640] sm:$0xff]
    %v238 = vld [vmem:[#allocation6 + $0x648] sm:$0xff]
    %v239 = vld [vmem:[#allocation6 + $0x650] sm:$0xff]
    %v240 = vld [vmem:[#allocation6 + $0x658] sm:$0xff]
    %v241 = vld [vmem:[#allocation6 + $0x660] sm:$0xff]
    %v242 = vld [vmem:[#allocation6 + $0x668] sm:$0xff]
    %v243 = vld [vmem:[#allocation6 + $0x670] sm:$0xff]
    %v244 = vld [vmem:[#allocation6 + $0x678] sm:$0xff]
    %v245 = vld [vmem:[#allocation6 + $0x680] sm:$0xff]
    %v246 = vld [vmem:[#allocation6 + $0x688] sm:$0xff]
    %v247 = vld [vmem:[#allocation6 + $0x690] sm:$0xff]
    %v248 = vld [vmem:[#allocation6 + $0x698] sm:$0xff]
    %v249 = vld [vmem:[#allocation6 + $0x6a0] sm:$0xff]
    %v250 = vld [vmem:[#allocation6 + $0x6a8] sm:$0xff]
    %v251 = vld [vmem:[#allocation6 + $0x6b0] sm:$0xff]
    %v252 = vld [vmem:[#allocation6 + $0x6b8] sm:$0xff]
    %v253 = vld [vmem:[#allocation6 + $0x6c0] sm:$0xff]
    %v254 = vld [vmem:[#allocation6 + $0x6c8] sm:$0xff]
    %v255 = vld [vmem:[#allocation6 + $0x6d0] sm:$0xff]
    %v256 = vld [vmem:[#allocation6 + $0x6d8] sm:$0xff]
    %v257 = vld [vmem:[#allocation6 + $0x6e0] sm:$0xff]
    %v258 = vld [vmem:[#allocation6 + $0x6e8] sm:$0xff]
    %v259 = vld [vmem:[#allocation6 + $0x6f0] sm:$0xff]
    %v260 = vld [vmem:[#allocation6 + $0x6f8] sm:$0xff]
    %v261 = vld [vmem:[#allocation6 + $0x700] sm:$0xff]
    %v262 = vld [vmem:[#allocation6 + $0x708] sm:$0xff]
    %v263 = vld [vmem:[#allocation6 + $0x710] sm:$0xff]
    %v264 = vld [vmem:[#allocation6 + $0x718] sm:$0xff]
    %v265 = vld [vmem:[#allocation6 + $0x720] sm:$0xff]
    %v266 = vld [vmem:[#allocation6 + $0x728] sm:$0xff]
    %v267 = vld [vmem:[#allocation6 + $0x730] sm:$0xff]
    %v268 = vld [vmem:[#allocation6 + $0x738] sm:$0xff]
    %v269 = vld [vmem:[#allocation6 + $0x740] sm:$0xff]
    %v270 = vld [vmem:[#allocation6 + $0x748] sm:$0xff]
    %v271 = vld [vmem:[#allocation6 + $0x750] sm:$0xff]
    %v272 = vld [vmem:[#allocation6 + $0x758] sm:$0xff]
    %v273 = vld [vmem:[#allocation6 + $0x760] sm:$0xff]
    %v274 = vld [vmem:[#allocation6 + $0x768] sm:$0xff]
    %v275 = vld [vmem:[#allocation6 + $0x770] sm:$0xff]
    %v276 = vld [vmem:[#allocation6 + $0x778] sm:$0xff]
    %v277 = vld [vmem:[#allocation6 + $0x780] sm:$0xff]
    %v278 = vld [vmem:[#allocation6 + $0x788] sm:$0xff]
    %v279 = vld [vmem:[#allocation6 + $0x790] sm:$0xff]
    %v280 = vld [vmem:[#allocation6 + $0x798] sm:$0xff]
    %v281 = vld [vmem:[#allocation6 + $0x7a0] sm:$0xff]
    %v282 = vld [vmem:[#allocation6 + $0x7a8] sm:$0xff]
    %v283 = vld [vmem:[#allocation6 + $0x7b0] sm:$0xff]
    %v284 = vld [vmem:[#allocation6 + $0x7b8] sm:$0xff]
    %v285 = vld [vmem:[#allocation6 + $0x7c0] sm:$0xff]
    %v286 = vld [vmem:[#allocation6 + $0x7c8] sm:$0xff]
    %v287 = vld [vmem:[#allocation6 + $0x7d0] sm:$0xff]
    %v288 = vld [vmem:[#allocation6 + $0x7d8] sm:$0xff]
    %v289 = vld [vmem:[#allocation6 + $0x7e0] sm:$0xff]
    %v290 = vld [vmem:[#allocation6 + $0x7e8] sm:$0xff]
    %v291 = vld [vmem:[#allocation6 + $0x7f0] sm:$0xff]
    %v292 = vld [vmem:[#allocation6 + $0x7f8] sm:$0xff]
    %v293 = vld [vmem:[#allocation6 + $0x800] sm:$0xff]
    %v294 = vld [vmem:[#allocation6 + $0x808] sm:$0xff]
    %v295 = vld [vmem:[#allocation6 + $0x810] sm:$0xff]
    %v296 = vld [vmem:[#allocation6 + $0x818] sm:$0xff]
    %v297 = vld [vmem:[#allocation6 + $0x820] sm:$0xff]
    %v298 = vld [vmem:[#allocation6 + $0x828] sm:$0xff]
    %v299 = vld [vmem:[#allocation6 + $0x830] sm:$0xff]
    %v300 = vld [vmem:[#allocation6 + $0x838] sm:$0xff]
    %v301 = vld [vmem:[#allocation6 + $0x840] sm:$0xff]
    %v302 = vld [vmem:[#allocation6 + $0x848] sm:$0xff]
    %v303 = vld [vmem:[#allocation6 + $0x850] sm:$0xff]
    %v304 = vld [vmem:[#allocation6 + $0x858] sm:$0xff]
    %v305 = vld [vmem:[#allocation6 + $0x860] sm:$0xff]
    %v306 = vld [vmem:[#allocation6 + $0x868] sm:$0xff]
    %v307 = vld [vmem:[#allocation6 + $0x870] sm:$0xff]
    %v308 = vld [vmem:[#allocation6 + $0x878] sm:$0xff]
    %v309 = vld [vmem:[#allocation6 + $0x880] sm:$0xff]
    %v310 = vld [vmem:[#allocation6 + $0x888] sm:$0xff]
    %v311 = vld [vmem:[#allocation6 + $0x890] sm:$0xff]
    %v312 = vld [vmem:[#allocation6 + $0x898] sm:$0xff]
    %v313 = vld [vmem:[#allocation6 + $0x8a0] sm:$0xff]
    %v314 = vld [vmem:[#allocation6 + $0x8a8] sm:$0xff]
    %v315 = vld [vmem:[#allocation6 + $0x8b0] sm:$0xff]
    %v316 = vld [vmem:[#allocation6 + $0x8b8] sm:$0xff]
    %v317 = vld [vmem:[#allocation6 + $0x8c0] sm:$0xff]
    %v318 = vld [vmem:[#allocation6 + $0x8c8] sm:$0xff]
    %v319 = vld [vmem:[#allocation6 + $0x8d0] sm:$0xff]
    %v320 = vld [vmem:[#allocation6 + $0x8d8] sm:$0xff]
    %v321 = vld [vmem:[#allocation6 + $0x8e0] sm:$0xff]
    %v322 = vld [vmem:[#allocation6 + $0x8e8] sm:$0xff]
    %v323 = vld [vmem:[#allocation6 + $0x8f0] sm:$0xff]
    %v324 = vld [vmem:[#allocation6 + $0x8f8] sm:$0xff]
    %v325 = vld [vmem:[#allocation6 + $0x900] sm:$0xff]
    %v326 = vld [vmem:[#allocation6 + $0x908] sm:$0xff]
    %v327 = vld [vmem:[#allocation6 + $0x910] sm:$0xff]
    %v328 = vld [vmem:[#allocation6 + $0x918] sm:$0xff]
    %v329 = vld [vmem:[#allocation6 + $0x920] sm:$0xff]
    %v330 = vld [vmem:[#allocation6 + $0x928] sm:$0xff]
    %v331 = vld [vmem:[#allocation6 + $0x930] sm:$0xff]
    %v332 = vld [vmem:[#allocation6 + $0x938] sm:$0xff]
    %v333 = vld [vmem:[#allocation6 + $0x940] sm:$0xff]
    %v334 = vld [vmem:[#allocation6 + $0x948] sm:$0xff]
    %v335 = vld [vmem:[#allocation6 + $0x950] sm:$0xff]
    %v336 = vld [vmem:[#allocation6 + $0x958] sm:$0xff]
    %v337 = vld [vmem:[#allocation6 + $0x960] sm:$0xff]
    %v338 = vld [vmem:[#allocation6 + $0x968] sm:$0xff]
    %v339 = vld [vmem:[#allocation6 + $0x970] sm:$0xff]
    %v340 = vld [vmem:[#allocation6 + $0x978] sm:$0xff]
    %v341 = vld [vmem:[#allocation6 + $0x980] sm:$0xff]
    %v342 = vld [vmem:[#allocation6 + $0x988] sm:$0xff]
    %v343 = vld [vmem:[#allocation6 + $0x990] sm:$0xff]
    %v344 = vld [vmem:[#allocation6 + $0x998] sm:$0xff]
    %v345 = vld [vmem:[#allocation6 + $0x9a0] sm:$0xff]
    %v346 = vld [vmem:[#allocation6 + $0x9a8] sm:$0xff]
    %v347 = vld [vmem:[#allocation6 + $0x9b0] sm:$0xff]
    %v348 = vld [vmem:[#allocation6 + $0x9b8] sm:$0xff]
    %v349 = vld [vmem:[#allocation6 + $0x9c0] sm:$0xff]
    %v350 = vld [vmem:[#allocation6 + $0x9c8] sm:$0xff]
    %v351 = vld [vmem:[#allocation6 + $0x9d0] sm:$0xff]
    %v352 = vld [vmem:[#allocation6 + $0x9d8] sm:$0xff]
    %v353 = vld [vmem:[#allocation6 + $0x9e0] sm:$0xff]
    %v354 = vld [vmem:[#allocation6 + $0x9e8] sm:$0xff]
    %v355 = vld [vmem:[#allocation6 + $0x9f0] sm:$0xff]
    %v356 = vld [vmem:[#allocation6 + $0x9f8] sm:$0xff]
    %v357 = vld [vmem:[#allocation6 + $0xa00] sm:$0xff]
    %v358 = vld [vmem:[#allocation6 + $0xa08] sm:$0xff]
    %v359 = vld [vmem:[#allocation6 + $0xa10] sm:$0xff]
    %v360 = vld [vmem:[#allocation6 + $0xa18] sm:$0xff]
    %v361 = vld [vmem:[#allocation6 + $0xa20] sm:$0xff]
    %v362 = vld [vmem:[#allocation6 + $0xa28] sm:$0xff]
    %v363 = vld [vmem:[#allocation6 + $0xa30] sm:$0xff]
    %v364 = vld [vmem:[#allocation6 + $0xa38] sm:$0xff]
    %v365 = vld [vmem:[#allocation6 + $0xa40] sm:$0xff]
    %v366 = vld [vmem:[#allocation6 + $0xa48] sm:$0xff]
    %v367 = vld [vmem:[#allocation6 + $0xa50] sm:$0xff]
    %v368 = vld [vmem:[#allocation6 + $0xa58] sm:$0xff]
    %v369 = vld [vmem:[#allocation6 + $0xa60] sm:$0xff]
    %v370 = vld [vmem:[#allocation6 + $0xa68] sm:$0xff]
    %v371 = vld [vmem:[#allocation6 + $0xa70] sm:$0xff]
    %v372 = vld [vmem:[#allocation6 + $0xa78] sm:$0xff]
    %v373 = vld [vmem:[#allocation6 + $0xa80] sm:$0xff]
    %v374 = vld [vmem:[#allocation6 + $0xa88] sm:$0xff]
    %v375 = vld [vmem:[#allocation6 + $0xa90] sm:$0xff]
    %v376 = vld [vmem:[#allocation6 + $0xa98] sm:$0xff]
    %v377 = vld [vmem:[#allocation6 + $0xaa0] sm:$0xff]
    %v378 = vld [vmem:[#allocation6 + $0xaa8] sm:$0xff]
    %v379 = vld [vmem:[#allocation6 + $0xab0] sm:$0xff]
    %v380 = vld [vmem:[#allocation6 + $0xab8] sm:$0xff]
    %v381 = vld [vmem:[#allocation6 + $0xac0] sm:$0xff]
    %v382 = vld [vmem:[#allocation6 + $0xac8] sm:$0xff]
    %v383 = vld [vmem:[#allocation6 + $0xad0] sm:$0xff]
    %v384 = vld [vmem:[#allocation6 + $0xad8] sm:$0xff]
    %v385 = vld [vmem:[#allocation6 + $0xae0] sm:$0xff]
    %v386 = vld [vmem:[#allocation6 + $0xae8] sm:$0xff]
    %v387 = vld [vmem:[#allocation6 + $0xaf0] sm:$0xff]
    %v388 = vld [vmem:[#allocation6 + $0xaf8] sm:$0xff]
    %v389 = vld [vmem:[#allocation6 + $0xb00] sm:$0xff]
    %v390 = vld [vmem:[#allocation6 + $0xb08] sm:$0xff]
    %v391 = vld [vmem:[#allocation6 + $0xb10] sm:$0xff]
    %v392 = vld [vmem:[#allocation6 + $0xb18] sm:$0xff]
    %v393 = vld [vmem:[#allocation6 + $0xb20] sm:$0xff]
    %v394 = vld [vmem:[#allocation6 + $0xb28] sm:$0xff]
    %v395 = vld [vmem:[#allocation6 + $0xb30] sm:$0xff]
    %v396 = vld [vmem:[#allocation6 + $0xb38] sm:$0xff]
    %v397 = vld [vmem:[#allocation6 + $0xb40] sm:$0xff]
    %v398 = vld [vmem:[#allocation6 + $0xb48] sm:$0xff]
    %v399 = vld [vmem:[#allocation6 + $0xb50] sm:$0xff]
    %v400 = vld [vmem:[#allocation6 + $0xb58] sm:$0xff]
    %v401 = vld [vmem:[#allocation6 + $0xb60] sm:$0xff]
    %v402 = vld [vmem:[#allocation6 + $0xb68] sm:$0xff]
    %v403 = vld [vmem:[#allocation6 + $0xb70] sm:$0xff]
    %v404 = vld [vmem:[#allocation6 + $0xb78] sm:$0xff]
    %v405 = vld [vmem:[#allocation6 + $0xb80] sm:$0xff]
    %v406 = vld [vmem:[#allocation6 + $0xb88] sm:$0xff]
    %v407 = vld [vmem:[#allocation6 + $0xb90] sm:$0xff]
    %v408 = vld [vmem:[#allocation6 + $0xb98] sm:$0xff]
    %v409 = vld [vmem:[#allocation6 + $0xba0] sm:$0xff]
    %v410 = vld [vmem:[#allocation6 + $0xba8] sm:$0xff]
    %v411 = vld [vmem:[#allocation6 + $0xbb0] sm:$0xff]
    %v412 = vld [vmem:[#allocation6 + $0xbb8] sm:$0xff]
    %v413 = vld [vmem:[#allocation6 + $0xbc0] sm:$0xff]
    %v414 = vld [vmem:[#allocation6 + $0xbc8] sm:$0xff]
    %v415 = vld [vmem:[#allocation6 + $0xbd0] sm:$0xff]
    %v416 = vld [vmem:[#allocation6 + $0xbd8] sm:$0xff]
    %v417 = vld [vmem:[#allocation6 + $0xbe0] sm:$0xff]
    %v418 = vld [vmem:[#allocation6 + $0xbe8] sm:$0xff]
    %v419 = vld [vmem:[#allocation6 + $0xbf0] sm:$0xff]
    %v420 = vld [vmem:[#allocation6 + $0xbf8] sm:$0xff]
    %v421 = vld [vmem:[#allocation6 + $0xc00] sm:$0xff]
    %v422 = vld [vmem:[#allocation6 + $0xc08] sm:$0xff]
    %v423 = vld [vmem:[#allocation6 + $0xc10] sm:$0xff]
    %v424 = vld [vmem:[#allocation6 + $0xc18] sm:$0xff]
    %v425 = vld [vmem:[#allocation6 + $0xc20] sm:$0xff]
    %v426 = vld [vmem:[#allocation6 + $0xc28] sm:$0xff]
    %v427 = vld [vmem:[#allocation6 + $0xc30] sm:$0xff]
    %v428 = vld [vmem:[#allocation6 + $0xc38] sm:$0xff]
    %v429 = vld [vmem:[#allocation6 + $0xc40] sm:$0xff]
    %v430 = vld [vmem:[#allocation6 + $0xc48] sm:$0xff]
    %v431 = vld [vmem:[#allocation6 + $0xc50] sm:$0xff]
    %v432 = vld [vmem:[#allocation6 + $0xc58] sm:$0xff]
    %v433 = vld [vmem:[#allocation6 + $0xc60] sm:$0xff]
    %v434 = vld [vmem:[#allocation6 + $0xc68] sm:$0xff]
    %v435 = vld [vmem:[#allocation6 + $0xc70] sm:$0xff]
    %v436 = vld [vmem:[#allocation6 + $0xc78] sm:$0xff]
    %v437 = vld [vmem:[#allocation6 + $0xc80] sm:$0xff]
    %v438 = vld [vmem:[#allocation6 + $0xc88] sm:$0xff]
    %v439 = vld [vmem:[#allocation6 + $0xc90] sm:$0xff]
    %v440 = vld [vmem:[#allocation6 + $0xc98] sm:$0xff]
    %v441 = vld [vmem:[#allocation6 + $0xca0] sm:$0xff]
    %v442 = vld [vmem:[#allocation6 + $0xca8] sm:$0xff]
    %v443 = vld [vmem:[#allocation6 + $0xcb0] sm:$0xff]
    %v444 = vld [vmem:[#allocation6 + $0xcb8] sm:$0xff]
    %v445 = vld [vmem:[#allocation6 + $0xcc0] sm:$0xff]
    %v446 = vld [vmem:[#allocation6 + $0xcc8] sm:$0xff]
    %v447 = vld [vmem:[#allocation6 + $0xcd0] sm:$0xff]
    %v448 = vld [vmem:[#allocation6 + $0xcd8] sm:$0xff]
    %v449 = vld [vmem:[#allocation6 + $0xce0] sm:$0xff]
    %v450 = vld [vmem:[#allocation6 + $0xce8] sm:$0xff]
    %v451 = vld [vmem:[#allocation6 + $0xcf0] sm:$0xff]
    %v452 = vld [vmem:[#allocation6 + $0xcf8] sm:$0xff]
    %v453 = vld [vmem:[#allocation6 + $0xd00] sm:$0xff]
    %v454 = vld [vmem:[#allocation6 + $0xd08] sm:$0xff]
    %v455 = vld [vmem:[#allocation6 + $0xd10] sm:$0xff]
    %v456 = vld [vmem:[#allocation6 + $0xd18] sm:$0xff]
    %v457 = vld [vmem:[#allocation6 + $0xd20] sm:$0xff]
    %v458 = vld [vmem:[#allocation6 + $0xd28] sm:$0xff]
    %v459 = vld [vmem:[#allocation6 + $0xd30] sm:$0xff]
    %v460 = vld [vmem:[#allocation6 + $0xd38] sm:$0xff]
    %v461 = vld [vmem:[#allocation6 + $0xd40] sm:$0xff]
    %v462 = vld [vmem:[#allocation6 + $0xd48] sm:$0xff]
    %v463 = vld [vmem:[#allocation6 + $0xd50] sm:$0xff]
    %v464 = vld [vmem:[#allocation6 + $0xd58] sm:$0xff]
    %v465 = vld [vmem:[#allocation6 + $0xd60] sm:$0xff]
    %v466 = vld [vmem:[#allocation6 + $0xd68] sm:$0xff]
    %v467 = vld [vmem:[#allocation6 + $0xd70] sm:$0xff]
    %v468 = vld [vmem:[#allocation6 + $0xd78] sm:$0xff]
    %v469 = vld [vmem:[#allocation6 + $0xd80] sm:$0xff]
    %v470 = vld [vmem:[#allocation6 + $0xd88] sm:$0xff]
    %v471 = vld [vmem:[#allocation6 + $0xd90] sm:$0xff]
    %v472 = vld [vmem:[#allocation6 + $0xd98] sm:$0xff]
    %v473 = vld [vmem:[#allocation6 + $0xda0] sm:$0xff]
    %v474 = vld [vmem:[#allocation6 + $0xda8] sm:$0xff]
    %v475 = vld [vmem:[#allocation6 + $0xdb0] sm:$0xff]
    %v476 = vld [vmem:[#allocation6 + $0xdb8] sm:$0xff]
    %v477 = vld [vmem:[#allocation6 + $0xdc0] sm:$0xff]
    %v478 = vld [vmem:[#allocation6 + $0xdc8] sm:$0xff]
    %v479 = vld [vmem:[#allocation6 + $0xdd0] sm:$0xff]
    %v480 = vld [vmem:[#allocation6 + $0xdd8] sm:$0xff]
    %v481 = vld [vmem:[#allocation6 + $0xde0] sm:$0xff]
    %v482 = vld [vmem:[#allocation6 + $0xde8] sm:$0xff]
    %v483 = vld [vmem:[#allocation6 + $0xdf0] sm:$0xff]
    %v484 = vld [vmem:[#allocation6 + $0xdf8] sm:$0xff]
    %v485 = vld [vmem:[#allocation6 + $0xe00] sm:$0xff]
    %v486 = vld [vmem:[#allocation6 + $0xe08] sm:$0xff]
    %v487 = vld [vmem:[#allocation6 + $0xe10] sm:$0xff]
    %v488 = vld [vmem:[#allocation6 + $0xe18] sm:$0xff]
    %v489 = vld [vmem:[#allocation6 + $0xe20] sm:$0xff]
    %v490 = vld [vmem:[#allocation6 + $0xe28] sm:$0xff]
    %v491 = vld [vmem:[#allocation6 + $0xe30] sm:$0xff]
    %v492 = vld [vmem:[#allocation6 + $0xe38] sm:$0xff]
    %v493 = vld [vmem:[#allocation6 + $0xe40] sm:$0xff]
    %v494 = vld [vmem:[#allocation6 + $0xe48] sm:$0xff]
    %v495 = vld [vmem:[#allocation6 + $0xe50] sm:$0xff]
    %v496 = vld [vmem:[#allocation6 + $0xe58] sm:$0xff]
    %v497 = vld [vmem:[#allocation6 + $0xe60] sm:$0xff]
    %v498 = vld [vmem:[#allocation6 + $0xe68] sm:$0xff]
    %v499 = vld [vmem:[#allocation6 + $0xe70] sm:$0xff]
    %v500 = vld [vmem:[#allocation6 + $0xe78] sm:$0xff]
    %v501 = vld [vmem:[#allocation6 + $0xe80] sm:$0xff]
    %v502 = vld [vmem:[#allocation6 + $0xe88] sm:$0xff]
    %v503 = vld [vmem:[#allocation6 + $0xe90] sm:$0xff]
    %v504 = vld [vmem:[#allocation6 + $0xe98] sm:$0xff]
    %v505 = vld [vmem:[#allocation6 + $0xea0] sm:$0xff]
    %v506 = vld [vmem:[#allocation6 + $0xea8] sm:$0xff]
    %v507 = vld [vmem:[#allocation6 + $0xeb0] sm:$0xff]
    %v508 = vld [vmem:[#allocation6 + $0xeb8] sm:$0xff]
    %v509 = vld [vmem:[#allocation6 + $0xec0] sm:$0xff]
    %v510 = vld [vmem:[#allocation6 + $0xec8] sm:$0xff]
    %v511 = vld [vmem:[#allocation6 + $0xed0] sm:$0xff]
    %v512 = vld [vmem:[#allocation6 + $0xed8] sm:$0xff]
    %v513 = vld [vmem:[#allocation6 + $0xee0] sm:$0xff]
    %v514 = vld [vmem:[#allocation6 + $0xee8] sm:$0xff]
    %v515 = vld [vmem:[#allocation6 + $0xef0] sm:$0xff]
    %v516 = vld [vmem:[#allocation6 + $0xef8] sm:$0xff]
    %v517 = vld [vmem:[#allocation6 + $0xf00] sm:$0xff]
    %v518 = vld [vmem:[#allocation6 + $0xf08] sm:$0xff]
    %v519 = vld [vmem:[#allocation6 + $0xf10] sm:$0xff]
    %v520 = vld [vmem:[#allocation6 + $0xf18] sm:$0xff]
    %v521 = vld [vmem:[#allocation6 + $0xf20] sm:$0xff]
    %v522 = vld [vmem:[#allocation6 + $0xf28] sm:$0xff]
    %v523 = vld [vmem:[#allocation6 + $0xf30] sm:$0xff]
    %v524 = vld [vmem:[#allocation6 + $0xf38] sm:$0xff]
    %v525 = vld [vmem:[#allocation6 + $0xf40] sm:$0xff]
    %v526 = vld [vmem:[#allocation6 + $0xf48] sm:$0xff]
    %v527 = vld [vmem:[#allocation6 + $0xf50] sm:$0xff]
    %v528 = vld [vmem:[#allocation6 + $0xf58] sm:$0xff]
    %v529 = vld [vmem:[#allocation6 + $0xf60] sm:$0xff]
    %v530 = vld [vmem:[#allocation6 + $0xf68] sm:$0xff]
    %v531 = vld [vmem:[#allocation6 + $0xf70] sm:$0xff]
    %v532 = vld [vmem:[#allocation6 + $0xf78] sm:$0xff]
    %v533 = vld [vmem:[#allocation6 + $0xf80] sm:$0xff]
    %v534 = vld [vmem:[#allocation6 + $0xf88] sm:$0xff]
    %v535 = vld [vmem:[#allocation6 + $0xf90] sm:$0xff]
    %v536 = vld [vmem:[#allocation6 + $0xf98] sm:$0xff]
    %v537 = vld [vmem:[#allocation6 + $0xfa0] sm:$0xff]
    %v538 = vld [vmem:[#allocation6 + $0xfa8] sm:$0xff]
    %v539 = vld [vmem:[#allocation6 + $0xfb0] sm:$0xff]
    %v540 = vld [vmem:[#allocation6 + $0xfb8] sm:$0xff]
    %v541 = vld [vmem:[#allocation6 + $0xfc0] sm:$0xff]
    %v542 = vld [vmem:[#allocation6 + $0xfc8] sm:$0xff]
    %v543 = vld [vmem:[#allocation6 + $0xfd0] sm:$0xff]
    %v544 = vld [vmem:[#allocation6 + $0xfd8] sm:$0xff]
    %v545 = vld [vmem:[#allocation6 + $0xfe0] sm:$0xff]
    %v546 = vld [vmem:[#allocation6 + $0xfe8] sm:$0xff]
    %v547 = vld [vmem:[#allocation6 + $0xff0] sm:$0xff]
    %v548 = vld [vmem:[#allocation6 + $0xff8] sm:$0xff]
    %v549 = vld [vmem:[#allocation6 + $0x1000] sm:$0xff]
    %v550 = vld [vmem:[#allocation6 + $0x1008] sm:$0xff]
    %v551 = vld [vmem:[#allocation6 + $0x1010] sm:$0xff]
    %v552 = vld [vmem:[#allocation6 + $0x1018] sm:$0xff]
    %v553 = vld [vmem:[#allocation6 + $0x1020] sm:$0xff]
    %v554 = vld [vmem:[#allocation6 + $0x1028] sm:$0xff]
    %v555 = vld [vmem:[#allocation6 + $0x1030] sm:$0xff]
    %v556 = vld [vmem:[#allocation6 + $0x1038] sm:$0xff]
    %v557 = vld [vmem:[#allocation6 + $0x1040] sm:$0xff]
    %v558 = vld [vmem:[#allocation6 + $0x1048] sm:$0xff]
    %v559 = vld [vmem:[#allocation6 + $0x1050] sm:$0xff]
    %v560 = vld [vmem:[#allocation6 + $0x1058] sm:$0xff]
    %v561 = vld [vmem:[#allocation6 + $0x1060] sm:$0xff]
    %v562 = vld [vmem:[#allocation6 + $0x1068] sm:$0xff]
    %v563 = vld [vmem:[#allocation6 + $0x1070] sm:$0xff]
    %v564 = vld [vmem:[#allocation6 + $0x1078] sm:$0xff]
    %v565 = vld [vmem:[#allocation6 + $0x1080] sm:$0xff]
    %v566 = vld [vmem:[#allocation6 + $0x1088] sm:$0xff]
    %v567 = vld [vmem:[#allocation6 + $0x1090] sm:$0xff]
    %v568 = vld [vmem:[#allocation6 + $0x1098] sm:$0xff]
    %v569 = vld [vmem:[#allocation6 + $0x10a0] sm:$0xff]
    %v570 = vld [vmem:[#allocation6 + $0x10a8] sm:$0xff]
    %v571 = vld [vmem:[#allocation6 + $0x10b0] sm:$0xff]
    %v572 = vld [vmem:[#allocation6 + $0x10b8] sm:$0xff]
    %v573 = vld [vmem:[#allocation6 + $0x10c0] sm:$0xff]
    %v574 = vld [vmem:[#allocation6 + $0x10c8] sm:$0xff]
    %v575 = vld [vmem:[#allocation6 + $0x10d0] sm:$0xff]
    %v576 = vld [vmem:[#allocation6 + $0x10d8] sm:$0xff]
    %v577 = vld [vmem:[#allocation6 + $0x10e0] sm:$0xff]
    %v578 = vld [vmem:[#allocation6 + $0x10e8] sm:$0xff]
    %v579 = vld [vmem:[#allocation6 + $0x10f0] sm:$0xff]
    %v580 = vld [vmem:[#allocation6 + $0x10f8] sm:$0xff]
    %v581 = vld [vmem:[#allocation6 + $0x1100] sm:$0xff]
    %v582 = vld [vmem:[#allocation6 + $0x1108] sm:$0xff]
    %v583 = vld [vmem:[#allocation6 + $0x1110] sm:$0xff]
    %v584 = vld [vmem:[#allocation6 + $0x1118] sm:$0xff]
    %v585 = vld [vmem:[#allocation6 + $0x1120] sm:$0xff]
    %v586 = vld [vmem:[#allocation6 + $0x1128] sm:$0xff]
    %v587 = vld [vmem:[#allocation6 + $0x1130] sm:$0xff]
    %v588 = vld [vmem:[#allocation6 + $0x1138] sm:$0xff]
    %v589 = vld [vmem:[#allocation6 + $0x1140] sm:$0xff]
    %v590 = vld [vmem:[#allocation6 + $0x1148] sm:$0xff]
    %v591 = vld [vmem:[#allocation6 + $0x1150] sm:$0xff]
    %v592 = vld [vmem:[#allocation6 + $0x1158] sm:$0xff]
    %v593 = vld [vmem:[#allocation6 + $0x1160] sm:$0xff]
    %v594 = vld [vmem:[#allocation6 + $0x1168] sm:$0xff]
    %v595 = vld [vmem:[#allocation6 + $0x1170] sm:$0xff]
    %v596 = vld [vmem:[#allocation6 + $0x1178] sm:$0xff]
    %v597 = vld [vmem:[#allocation6 + $0x1180] sm:$0xff]
    %v598 = vld [vmem:[#allocation6 + $0x1188] sm:$0xff]
    %v599 = vld [vmem:[#allocation6 + $0x1190] sm:$0xff]
    %v600 = vld [vmem:[#allocation6 + $0x1198] sm:$0xff]
    %v601 = vld [vmem:[#allocation6 + $0x11a0] sm:$0xff]
    %v602 = vld [vmem:[#allocation6 + $0x11a8] sm:$0xff]
    %v603 = vld [vmem:[#allocation6 + $0x11b0] sm:$0xff]
    %v604 = vld [vmem:[#allocation6 + $0x11b8] sm:$0xff]
    %v605 = vld [vmem:[#allocation6 + $0x11c0] sm:$0xff]
    %v606 = vld [vmem:[#allocation6 + $0x11c8] sm:$0xff]
    %v607 = vld [vmem:[#allocation6 + $0x11d0] sm:$0xff]
    %v608 = vld [vmem:[#allocation6 + $0x11d8] sm:$0xff]
    %v609 = vld [vmem:[#allocation6 + $0x11e0] sm:$0xff]
    %v610 = vld [vmem:[#allocation6 + $0x11e8] sm:$0xff]
    %v611 = vld [vmem:[#allocation6 + $0x11f0] sm:$0xff]
    %v612 = vld [vmem:[#allocation6 + $0x11f8] sm:$0xff]
    %v613 = vld [vmem:[#allocation6 + $0x1200] sm:$0xff]
    %v614 = vld [vmem:[#allocation6 + $0x1208] sm:$0xff]
    %v615 = vld [vmem:[#allocation6 + $0x1210] sm:$0xff]
    %v616 = vld [vmem:[#allocation6 + $0x1218] sm:$0xff]
    %v617 = vld [vmem:[#allocation6 + $0x1220] sm:$0xff]
    %v618 = vld [vmem:[#allocation6 + $0x1228] sm:$0xff]
    %v619 = vld [vmem:[#allocation6 + $0x1230] sm:$0xff]
    %v620 = vld [vmem:[#allocation6 + $0x1238] sm:$0xff]
    %v621 = vld [vmem:[#allocation6 + $0x1240] sm:$0xff]
    %v622 = vld [vmem:[#allocation6 + $0x1248] sm:$0xff]
    %v623 = vld [vmem:[#allocation6 + $0x1250] sm:$0xff]
    %v624 = vld [vmem:[#allocation6 + $0x1258] sm:$0xff]
    %v625 = vld [vmem:[#allocation6 + $0x1260] sm:$0xff]
    %v626 = vld [vmem:[#allocation6 + $0x1268] sm:$0xff]
    %v627 = vld [vmem:[#allocation6 + $0x1270] sm:$0xff]
    %v628 = vld [vmem:[#allocation6 + $0x1278] sm:$0xff]
    %v629 = vld [vmem:[#allocation6 + $0x1280] sm:$0xff]
    %v630 = vld [vmem:[#allocation6 + $0x1288] sm:$0xff]
    %v631 = vld [vmem:[#allocation6 + $0x1290] sm:$0xff]
    %v632 = vld [vmem:[#allocation6 + $0x1298] sm:$0xff]
    %v633 = vld [vmem:[#allocation6 + $0x12a0] sm:$0xff]
    %v634 = vld [vmem:[#allocation6 + $0x12a8] sm:$0xff]
    %v635 = vld [vmem:[#allocation6 + $0x12b0] sm:$0xff]
    %v636 = vld [vmem:[#allocation6 + $0x12b8] sm:$0xff]
    %v637 = vld [vmem:[#allocation6 + $0x12c0] sm:$0xff]
    %v638 = vld [vmem:[#allocation6 + $0x12c8] sm:$0xff]
    %v639 = vld [vmem:[#allocation6 + $0x12d0] sm:$0xff]
    %v640 = vld [vmem:[#allocation6 + $0x12d8] sm:$0xff]
    %v641 = vld [vmem:[#allocation6 + $0x12e0] sm:$0xff]
    %v642 = vld [vmem:[#allocation6 + $0x12e8] sm:$0xff]
    %v643 = vld [vmem:[#allocation6 + $0x12f0] sm:$0xff]
    %v644 = vld [vmem:[#allocation6 + $0x12f8] sm:$0xff]
    %v645 = vld [vmem:[#allocation6 + $0x1300] sm:$0xff]
    %v646 = vld [vmem:[#allocation6 + $0x1308] sm:$0xff]
    %v647 = vld [vmem:[#allocation6 + $0x1310] sm:$0xff]
    %v648 = vld [vmem:[#allocation6 + $0x1318] sm:$0xff]
    %v649 = vld [vmem:[#allocation6 + $0x1320] sm:$0xff]
    %v650 = vld [vmem:[#allocation6 + $0x1328] sm:$0xff]
    %v651 = vld [vmem:[#allocation6 + $0x1330] sm:$0xff]
    %v652 = vld [vmem:[#allocation6 + $0x1338] sm:$0xff]
    %v653 = vld [vmem:[#allocation6 + $0x1340] sm:$0xff]
    %v654 = vld [vmem:[#allocation6 + $0x1348] sm:$0xff]
    %v655 = vld [vmem:[#allocation6 + $0x1350] sm:$0xff]
    %v656 = vld [vmem:[#allocation6 + $0x1358] sm:$0xff]
    %v657 = vld [vmem:[#allocation6 + $0x1360] sm:$0xff]
    %v658 = vld [vmem:[#allocation6 + $0x1368] sm:$0xff]
    %v659 = vld [vmem:[#allocation6 + $0x1370] sm:$0xff]
    %v660 = vld [vmem:[#allocation6 + $0x1378] sm:$0xff]
    %v661 = vld [vmem:[#allocation6 + $0x1380] sm:$0xff]
    %v662 = vld [vmem:[#allocation6 + $0x1388] sm:$0xff]
    %v663 = vld [vmem:[#allocation6 + $0x1390] sm:$0xff]
    %v664 = vld [vmem:[#allocation6 + $0x1398] sm:$0xff]
    %v665 = vld [vmem:[#allocation6 + $0x13a0] sm:$0xff]
    %v666 = vld [vmem:[#allocation6 + $0x13a8] sm:$0xff]
    %v667 = vld [vmem:[#allocation6 + $0x13b0] sm:$0xff]
    %v668 = vld [vmem:[#allocation6 + $0x13b8] sm:$0xff]
    %v669 = vld [vmem:[#allocation6 + $0x13c0] sm:$0xff]
    %v670 = vld [vmem:[#allocation6 + $0x13c8] sm:$0xff]
    %v671 = vld [vmem:[#allocation6 + $0x13d0] sm:$0xff]
    %v672 = vld [vmem:[#allocation6 + $0x13d8] sm:$0xff]
    %v673 = vld [vmem:[#allocation6 + $0x13e0] sm:$0xff]
    %v674 = vld [vmem:[#allocation6 + $0x13e8] sm:$0xff]
    %v675 = vld [vmem:[#allocation6 + $0x13f0] sm:$0xff]
    %v676 = vld [vmem:[#allocation6 + $0x13f8] sm:$0xff]
    %v677 = vld [vmem:[#allocation6 + $0x1400] sm:$0xff]
    %v678 = vld [vmem:[#allocation6 + $0x1408] sm:$0xff]
    %v679 = vld [vmem:[#allocation6 + $0x1410] sm:$0xff]
    %v680 = vld [vmem:[#allocation6 + $0x1418] sm:$0xff]
    %v681 = vld [vmem:[#allocation6 + $0x1420] sm:$0xff]
    %v682 = vld [vmem:[#allocation6 + $0x1428] sm:$0xff]
    %v683 = vld [vmem:[#allocation6 + $0x1430] sm:$0xff]
    %v684 = vld [vmem:[#allocation6 + $0x1438] sm:$0xff]
    %v685 = vld [vmem:[#allocation6 + $0x1440] sm:$0xff]
    %v686 = vld [vmem:[#allocation6 + $0x1448] sm:$0xff]
    %v687 = vld [vmem:[#allocation6 + $0x1450] sm:$0xff]
    %v688 = vld [vmem:[#allocation6 + $0x1458] sm:$0xff]
    %v689 = vld [vmem:[#allocation6 + $0x1460] sm:$0xff]
    %v690 = vld [vmem:[#allocation6 + $0x1468] sm:$0xff]
    %v691 = vld [vmem:[#allocation6 + $0x1470] sm:$0xff]
    %v692 = vld [vmem:[#allocation6 + $0x1478] sm:$0xff]
    %v693 = vld [vmem:[#allocation6 + $0x1480] sm:$0xff]
    %v694 = vld [vmem:[#allocation6 + $0x1488] sm:$0xff]
    %v695 = vld [vmem:[#allocation6 + $0x1490] sm:$0xff]
    %v696 = vld [vmem:[#allocation6 + $0x1498] sm:$0xff]
    %v697 = vld [vmem:[#allocation6 + $0x14a0] sm:$0xff]
    %v698 = vld [vmem:[#allocation6 + $0x14a8] sm:$0xff]
    %v699 = vld [vmem:[#allocation6 + $0x14b0] sm:$0xff]
    %v700 = vld [vmem:[#allocation6 + $0x14b8] sm:$0xff]
    %v701 = vld [vmem:[#allocation6 + $0x14c0] sm:$0xff]
    %v702 = vld [vmem:[#allocation6 + $0x14c8] sm:$0xff]
    %v703 = vld [vmem:[#allocation6 + $0x14d0] sm:$0xff]
    %v704 = vld [vmem:[#allocation6 + $0x14d8] sm:$0xff]
    %v705 = vld [vmem:[#allocation6 + $0x14e0] sm:$0xff]
    %v706 = vld [vmem:[#allocation6 + $0x14e8] sm:$0xff]
    %v707 = vld [vmem:[#allocation6 + $0x14f0] sm:$0xff]
    %v708 = vld [vmem:[#allocation6 + $0x14f8] sm:$0xff]
    %v709 = vld [vmem:[#allocation6 + $0x1500] sm:$0xff]
    %v710 = vld [vmem:[#allocation6 + $0x1508] sm:$0xff]
    %v711 = vld [vmem:[#allocation6 + $0x1510] sm:$0xff]
    %v712 = vld [vmem:[#allocation6 + $0x1518] sm:$0xff]
    %v713 = vld [vmem:[#allocation6 + $0x1520] sm:$0xff]
    %v714 = vld [vmem:[#allocation6 + $0x1528] sm:$0xff]
    %v715 = vld [vmem:[#allocation6 + $0x1530] sm:$0xff]
    %v716 = vld [vmem:[#allocation6 + $0x1538] sm:$0xff]
    %v717 = vld [vmem:[#allocation6 + $0x1540] sm:$0xff]
    %v718 = vld [vmem:[#allocation6 + $0x1548] sm:$0xff]
    %v719 = vld [vmem:[#allocation6 + $0x1550] sm:$0xff]
    %v720 = vld [vmem:[#allocation6 + $0x1558] sm:$0xff]
    %v721 = vld [vmem:[#allocation6 + $0x1560] sm:$0xff]
    %v722 = vld [vmem:[#allocation6 + $0x1568] sm:$0xff]
    %v723 = vld [vmem:[#allocation6 + $0x1570] sm:$0xff]
    %v724 = vld [vmem:[#allocation6 + $0x1578] sm:$0xff]
    %v725 = vld [vmem:[#allocation6 + $0x1580] sm:$0xff]
    %v726 = vld [vmem:[#allocation6 + $0x1588] sm:$0xff]
    %v727 = vld [vmem:[#allocation6 + $0x1590] sm:$0xff]
    %v728 = vld [vmem:[#allocation6 + $0x1598] sm:$0xff]
    %v729 = vld [vmem:[#allocation6 + $0x15a0] sm:$0xff]
    %v730 = vld [vmem:[#allocation6 + $0x15a8] sm:$0xff]
    %v731 = vld [vmem:[#allocation6 + $0x15b0] sm:$0xff]
    %v732 = vld [vmem:[#allocation6 + $0x15b8] sm:$0xff]
    %v733 = vld [vmem:[#allocation6 + $0x15c0] sm:$0xff]
    %v734 = vld [vmem:[#allocation6 + $0x15c8] sm:$0xff]
    %v735 = vld [vmem:[#allocation6 + $0x15d0] sm:$0xff]
    %v736 = vld [vmem:[#allocation6 + $0x15d8] sm:$0xff]
    %v737 = vld [vmem:[#allocation6 + $0x15e0] sm:$0xff]
    %v738 = vld [vmem:[#allocation6 + $0x15e8] sm:$0xff]
    %v739 = vld [vmem:[#allocation6 + $0x15f0] sm:$0xff]
    %v740 = vld [vmem:[#allocation6 + $0x15f8] sm:$0xff]
    %v741 = vld [vmem:[#allocation6 + $0x1600] sm:$0xff]
    %v742 = vld [vmem:[#allocation6 + $0x1608] sm:$0xff]
    %v743 = vld [vmem:[#allocation6 + $0x1610] sm:$0xff]
    %v744 = vld [vmem:[#allocation6 + $0x1618] sm:$0xff]
    %v745 = vld [vmem:[#allocation6 + $0x1620] sm:$0xff]
    %v746 = vld [vmem:[#allocation6 + $0x1628] sm:$0xff]
    %v747 = vld [vmem:[#allocation6 + $0x1630] sm:$0xff]
    %v748 = vld [vmem:[#allocation6 + $0x1638] sm:$0xff]
    %v749 = vld [vmem:[#allocation6 + $0x1640] sm:$0xff]
    %v750 = vld [vmem:[#allocation6 + $0x1648] sm:$0xff]
    %v751 = vld [vmem:[#allocation6 + $0x1650] sm:$0xff]
    %v752 = vld [vmem:[#allocation6 + $0x1658] sm:$0xff]
    %v753 = vld [vmem:[#allocation6 + $0x1660] sm:$0xff]
    %v754 = vld [vmem:[#allocation6 + $0x1668] sm:$0xff]
    %v755 = vld [vmem:[#allocation6 + $0x1670] sm:$0xff]
    %v756 = vld [vmem:[#allocation6 + $0x1678] sm:$0xff]
    %v757 = vld [vmem:[#allocation6 + $0x1680] sm:$0xff]
    %v758 = vld [vmem:[#allocation6 + $0x1688] sm:$0xff]
    %v759 = vld [vmem:[#allocation6 + $0x1690] sm:$0xff]
    %v760 = vld [vmem:[#allocation6 + $0x1698] sm:$0xff]
    %v761 = vld [vmem:[#allocation6 + $0x16a0] sm:$0xff]
    %v762 = vld [vmem:[#allocation6 + $0x16a8] sm:$0xff]
    %v763 = vld [vmem:[#allocation6 + $0x16b0] sm:$0xff]
    %v764 = vld [vmem:[#allocation6 + $0x16b8] sm:$0xff]
    %v765 = vld [vmem:[#allocation6 + $0x16c0] sm:$0xff]
    %v766 = vld [vmem:[#allocation6 + $0x16c8] sm:$0xff]
    %v767 = vld [vmem:[#allocation6 + $0x16d0] sm:$0xff]
    %v768 = vld [vmem:[#allocation6 + $0x16d8] sm:$0xff]
    %v769 = vld [vmem:[#allocation6 + $0x16e0] sm:$0xff]
    %v770 = vld [vmem:[#allocation6 + $0x16e8] sm:$0xff]
    %v771 = vld [vmem:[#allocation6 + $0x16f0] sm:$0xff]
    %v772 = vld [vmem:[#allocation6 + $0x16f8] sm:$0xff]
    %v773 = vld [vmem:[#allocation6 + $0x1700] sm:$0xff]
    %v774 = vld [vmem:[#allocation6 + $0x1708] sm:$0xff]
    %v775 = vld [vmem:[#allocation6 + $0x1710] sm:$0xff]
    %v776 = vld [vmem:[#allocation6 + $0x1718] sm:$0xff]
    %v777 = vld [vmem:[#allocation6 + $0x1720] sm:$0xff]
    %v778 = vld [vmem:[#allocation6 + $0x1728] sm:$0xff]
    %v779 = vld [vmem:[#allocation6 + $0x1730] sm:$0xff]
    %v780 = vld [vmem:[#allocation6 + $0x1738] sm:$0xff]
    %v781 = vld [vmem:[#allocation6 + $0x1740] sm:$0xff]
    %v782 = vld [vmem:[#allocation6 + $0x1748] sm:$0xff]
    %v783 = vld [vmem:[#allocation6 + $0x1750] sm:$0xff]
    %v784 = vld [vmem:[#allocation6 + $0x1758] sm:$0xff]
    %v785 = vld [vmem:[#allocation6 + $0x1760] sm:$0xff]
    %v786 = vld [vmem:[#allocation6 + $0x1768] sm:$0xff]
    %v787 = vld [vmem:[#allocation6 + $0x1770] sm:$0xff]
    %v788 = vld [vmem:[#allocation6 + $0x1778] sm:$0xff]
    %v789 = vld [vmem:[#allocation6 + $0x1780] sm:$0xff]
    %v790 = vld [vmem:[#allocation6 + $0x1788] sm:$0xff]
    %v791 = vld [vmem:[#allocation6 + $0x1790] sm:$0xff]
    %v792 = vld [vmem:[#allocation6 + $0x1798] sm:$0xff]
    %v793 = vld [vmem:[#allocation6 + $0x17a0] sm:$0xff]
    %v794 = vld [vmem:[#allocation6 + $0x17a8] sm:$0xff]
    %v795 = vld [vmem:[#allocation6 + $0x17b0] sm:$0xff]
    %v796 = vld [vmem:[#allocation6 + $0x17b8] sm:$0xff]
    %v797 = vld [vmem:[#allocation6 + $0x17c0] sm:$0xff]
    %v798 = vld [vmem:[#allocation6 + $0x17c8] sm:$0xff]
    %v799 = vld [vmem:[#allocation6 + $0x17d0] sm:$0xff]
    %v800 = vld [vmem:[#allocation6 + $0x17d8] sm:$0xff]
    %v801 = vld [vmem:[#allocation6 + $0x17e0] sm:$0xff]
    %v802 = vld [vmem:[#allocation6 + $0x17e8] sm:$0xff]
    %v803 = vld [vmem:[#allocation6 + $0x17f0] sm:$0xff]
    %v804 = vld [vmem:[#allocation6 + $0x17f8] sm:$0xff]
    %v805 = vld [vmem:[#allocation6 + $0x1800] sm:$0xff]
    %v806 = vld [vmem:[#allocation6 + $0x1808] sm:$0xff]
    %v807 = vld [vmem:[#allocation6 + $0x1810] sm:$0xff]
    %v808 = vld [vmem:[#allocation6 + $0x1818] sm:$0xff]
    %v809 = vld [vmem:[#allocation6 + $0x1820] sm:$0xff]
    %v810 = vld [vmem:[#allocation6 + $0x1828] sm:$0xff]
    %v811 = vld [vmem:[#allocation6 + $0x1830] sm:$0xff]
    %v812 = vld [vmem:[#allocation6 + $0x1838] sm:$0xff]
    %v813 = vld [vmem:[#allocation6 + $0x1840] sm:$0xff]
    %v814 = vld [vmem:[#allocation6 + $0x1848] sm:$0xff]
    %v815 = vld [vmem:[#allocation6 + $0x1850] sm:$0xff]
    %v816 = vld [vmem:[#allocation6 + $0x1858] sm:$0xff]
    %v817 = vld [vmem:[#allocation6 + $0x1860] sm:$0xff]
    %v818 = vld [vmem:[#allocation6 + $0x1868] sm:$0xff]
    %v819 = vld [vmem:[#allocation6 + $0x1870] sm:$0xff]
    %v820 = vld [vmem:[#allocation6 + $0x1878] sm:$0xff]
    %v821 = vld [vmem:[#allocation6 + $0x1880] sm:$0xff]
    %v822 = vld [vmem:[#allocation6 + $0x1888] sm:$0xff]
    %v823 = vld [vmem:[#allocation6 + $0x1890] sm:$0xff]
    %v824 = vld [vmem:[#allocation6 + $0x1898] sm:$0xff]
    %v825 = vld [vmem:[#allocation6 + $0x18a0] sm:$0xff]
    %v826 = vld [vmem:[#allocation6 + $0x18a8] sm:$0xff]
    %v827 = vld [vmem:[#allocation6 + $0x18b0] sm:$0xff]
    %v828 = vld [vmem:[#allocation6 + $0x18b8] sm:$0xff]
    %v829 = vld [vmem:[#allocation6 + $0x18c0] sm:$0xff]
    %v830 = vld [vmem:[#allocation6 + $0x18c8] sm:$0xff]
    %v831 = vld [vmem:[#allocation6 + $0x18d0] sm:$0xff]
    %v832 = vld [vmem:[#allocation6 + $0x18d8] sm:$0xff]
    %v833 = vld [vmem:[#allocation6 + $0x18e0] sm:$0xff]
    %v834 = vld [vmem:[#allocation6 + $0x18e8] sm:$0xff]
    %v835 = vld [vmem:[#allocation6 + $0x18f0] sm:$0xff]
    %v836 = vld [vmem:[#allocation6 + $0x18f8] sm:$0xff]
    %v837 = vld [vmem:[#allocation6 + $0x1900] sm:$0xff]
    %v838 = vld [vmem:[#allocation6 + $0x1908] sm:$0xff]
    %v839 = vld [vmem:[#allocation6 + $0x1910] sm:$0xff]
    %v840 = vld [vmem:[#allocation6 + $0x1918] sm:$0xff]
    %v841 = vld [vmem:[#allocation6 + $0x1920] sm:$0xff]
    %v842 = vld [vmem:[#allocation6 + $0x1928] sm:$0xff]
    %v843 = vld [vmem:[#allocation6 + $0x1930] sm:$0xff]
    %v844 = vld [vmem:[#allocation6 + $0x1938] sm:$0xff]
    %v845 = vld [vmem:[#allocation6 + $0x1940] sm:$0xff]
    %v846 = vld [vmem:[#allocation6 + $0x1948] sm:$0xff]
    %v847 = vld [vmem:[#allocation6 + $0x1950] sm:$0xff]
    %v848 = vld [vmem:[#allocation6 + $0x1958] sm:$0xff]
    %v849 = vld [vmem:[#allocation6 + $0x1960] sm:$0xff]
    %v850 = vld [vmem:[#allocation6 + $0x1968] sm:$0xff]
    %v851 = vld [vmem:[#allocation6 + $0x1970] sm:$0xff]
    %v852 = vld [vmem:[#allocation6 + $0x1978] sm:$0xff]
    %v853 = vld [vmem:[#allocation6 + $0x1980] sm:$0xff]
    %v854 = vld [vmem:[#allocation6 + $0x1988] sm:$0xff]
    %v855 = vld [vmem:[#allocation6 + $0x1990] sm:$0xff]
    %v856 = vld [vmem:[#allocation6 + $0x1998] sm:$0xff]
    %v857 = vld [vmem:[#allocation6 + $0x19a0] sm:$0xff]
    %v858 = vld [vmem:[#allocation6 + $0x19a8] sm:$0xff]
    %v859 = vld [vmem:[#allocation6 + $0x19b0] sm:$0xff]
    %v860 = vld [vmem:[#allocation6 + $0x19b8] sm:$0xff]
    %v861 = vld [vmem:[#allocation6 + $0x19c0] sm:$0xff]
    %v862 = vld [vmem:[#allocation6 + $0x19c8] sm:$0xff]
    %v863 = vld [vmem:[#allocation6 + $0x19d0] sm:$0xff]
    %v864 = vld [vmem:[#allocation6 + $0x19d8] sm:$0xff]
    %v865 = vld [vmem:[#allocation6 + $0x19e0] sm:$0xff]
    %v866 = vld [vmem:[#allocation6 + $0x19e8] sm:$0xff]
    %v867 = vld [vmem:[#allocation6 + $0x19f0] sm:$0xff]
    %v868 = vld [vmem:[#allocation6 + $0x19f8] sm:$0xff]
    %v869 = vld [vmem:[#allocation6 + $0x1a00] sm:$0xff]
    %v870 = vld [vmem:[#allocation6 + $0x1a08] sm:$0xff]
    %v871 = vld [vmem:[#allocation6 + $0x1a10] sm:$0xff]
    %v872 = vld [vmem:[#allocation6 + $0x1a18] sm:$0xff]
    %v873 = vld [vmem:[#allocation6 + $0x1a20] sm:$0xff]
    %v874 = vld [vmem:[#allocation6 + $0x1a28] sm:$0xff]
    %v875 = vld [vmem:[#allocation6 + $0x1a30] sm:$0xff]
    %v876 = vld [vmem:[#allocation6 + $0x1a38] sm:$0xff]
    %v877 = vld [vmem:[#allocation6 + $0x1a40] sm:$0xff]
    %v878 = vld [vmem:[#allocation6 + $0x1a48] sm:$0xff]
    %v879 = vld [vmem:[#allocation6 + $0x1a50] sm:$0xff]
    %v880 = vld [vmem:[#allocation6 + $0x1a58] sm:$0xff]
    %v881 = vld [vmem:[#allocation6 + $0x1a60] sm:$0xff]
    %v882 = vld [vmem:[#allocation6 + $0x1a68] sm:$0xff]
    %v883 = vld [vmem:[#allocation6 + $0x1a70] sm:$0xff]
    %v884 = vld [vmem:[#allocation6 + $0x1a78] sm:$0xff]
    %v885 = vld [vmem:[#allocation6 + $0x1a80] sm:$0xff]
    %v886 = vld [vmem:[#allocation6 + $0x1a88] sm:$0xff]
    %v887 = vld [vmem:[#allocation6 + $0x1a90] sm:$0xff]
    %v888 = vld [vmem:[#allocation6 + $0x1a98] sm:$0xff]
    %v889 = vld [vmem:[#allocation6 + $0x1aa0] sm:$0xff]
    %v890 = vld [vmem:[#allocation6 + $0x1aa8] sm:$0xff]
    %v891 = vld [vmem:[#allocation6 + $0x1ab0] sm:$0xff]
    %v892 = vld [vmem:[#allocation6 + $0x1ab8] sm:$0xff]
    %v893 = vld [vmem:[#allocation6 + $0x1ac0] sm:$0xff]
    %v894 = vld [vmem:[#allocation6 + $0x1ac8] sm:$0xff]
    %v895 = vld [vmem:[#allocation6 + $0x1ad0] sm:$0xff]
    %v896 = vld [vmem:[#allocation6 + $0x1ad8] sm:$0xff]
    %v897 = vld [vmem:[#allocation6 + $0x1ae0] sm:$0xff]
    %v898 = vld [vmem:[#allocation6 + $0x1ae8] sm:$0xff]
    %v899 = vld [vmem:[#allocation6 + $0x1af0] sm:$0xff]
    %v900 = vld [vmem:[#allocation6 + $0x1af8] sm:$0xff]
    %v901 = vld [vmem:[#allocation6 + $0x1b00] sm:$0xff]
    %v902 = vld [vmem:[#allocation6 + $0x1b08] sm:$0xff]
    %v903 = vld [vmem:[#allocation6 + $0x1b10] sm:$0xff]
    %v904 = vld [vmem:[#allocation6 + $0x1b18] sm:$0xff]
    %v905 = vld [vmem:[#allocation6 + $0x1b20] sm:$0xff]
    %v906 = vld [vmem:[#allocation6 + $0x1b28] sm:$0xff]
    %v907 = vld [vmem:[#allocation6 + $0x1b30] sm:$0xff]
    %v908 = vld [vmem:[#allocation6 + $0x1b38] sm:$0xff]
    %v909 = vld [vmem:[#allocation6 + $0x1b40] sm:$0xff]
    %v910 = vld [vmem:[#allocation6 + $0x1b48] sm:$0xff]
    %v911 = vld [vmem:[#allocation6 + $0x1b50] sm:$0xff]
    %v912 = vld [vmem:[#allocation6 + $0x1b58] sm:$0xff]
    %v913 = vld [vmem:[#allocation6 + $0x1b60] sm:$0xff]
    %v914 = vld [vmem:[#allocation6 + $0x1b68] sm:$0xff]
    %v915 = vld [vmem:[#allocation6 + $0x1b70] sm:$0xff]
    %v916 = vld [vmem:[#allocation6 + $0x1b78] sm:$0xff]
    %v917 = vld [vmem:[#allocation6 + $0x1b80] sm:$0xff]
    %v918 = vld [vmem:[#allocation6 + $0x1b88] sm:$0xff]
    %v919 = vld [vmem:[#allocation6 + $0x1b90] sm:$0xff]
    %v920 = vld [vmem:[#allocation6 + $0x1b98] sm:$0xff]
    %v921 = vld [vmem:[#allocation6 + $0x1ba0] sm:$0xff]
    %v922 = vld [vmem:[#allocation6 + $0x1ba8] sm:$0xff]
    %v923 = vld [vmem:[#allocation6 + $0x1bb0] sm:$0xff]
    %v924 = vld [vmem:[#allocation6 + $0x1bb8] sm:$0xff]
    %v925 = vld [vmem:[#allocation6 + $0x1bc0] sm:$0xff]
    %v926 = vld [vmem:[#allocation6 + $0x1bc8] sm:$0xff]
    %v927 = vld [vmem:[#allocation6 + $0x1bd0] sm:$0xff]
    %v928 = vld [vmem:[#allocation6 + $0x1bd8] sm:$0xff]
    %v929 = vld [vmem:[#allocation6 + $0x1be0] sm:$0xff]
    %v930 = vld [vmem:[#allocation6 + $0x1be8] sm:$0xff]
    %v931 = vld [vmem:[#allocation6 + $0x1bf0] sm:$0xff]
    %v932 = vld [vmem:[#allocation6 + $0x1bf8] sm:$0xff]
    %v933 = vld [vmem:[#allocation6 + $0x1c00] sm:$0xff]
    %v934 = vld [vmem:[#allocation6 + $0x1c08] sm:$0xff]
    %v935 = vld [vmem:[#allocation6 + $0x1c10] sm:$0xff]
    %v936 = vld [vmem:[#allocation6 + $0x1c18] sm:$0xff]
    %v937 = vld [vmem:[#allocation6 + $0x1c20] sm:$0xff]
    %v938 = vld [vmem:[#allocation6 + $0x1c28] sm:$0xff]
    %v939 = vld [vmem:[#allocation6 + $0x1c30] sm:$0xff]
    %v940 = vld [vmem:[#allocation6 + $0x1c38] sm:$0xff]
    %v941 = vld [vmem:[#allocation6 + $0x1c40] sm:$0xff]
    %v942 = vld [vmem:[#allocation6 + $0x1c48] sm:$0xff]
    %v943 = vld [vmem:[#allocation6 + $0x1c50] sm:$0xff]
    %v944 = vld [vmem:[#allocation6 + $0x1c58] sm:$0xff]
    %v945 = vld [vmem:[#allocation6 + $0x1c60] sm:$0xff]
    %v946 = vld [vmem:[#allocation6 + $0x1c68] sm:$0xff]
    %v947 = vld [vmem:[#allocation6 + $0x1c70] sm:$0xff]
    %v948 = vld [vmem:[#allocation6 + $0x1c78] sm:$0xff]
    %v949 = vld [vmem:[#allocation6 + $0x1c80] sm:$0xff]
    %v950 = vld [vmem:[#allocation6 + $0x1c88] sm:$0xff]
    %v951 = vld [vmem:[#allocation6 + $0x1c90] sm:$0xff]
    %v952 = vld [vmem:[#allocation6 + $0x1c98] sm:$0xff]
    %v953 = vld [vmem:[#allocation6 + $0x1ca0] sm:$0xff]
    %v954 = vld [vmem:[#allocation6 + $0x1ca8] sm:$0xff]
    %v955 = vld [vmem:[#allocation6 + $0x1cb0] sm:$0xff]
    %v956 = vld [vmem:[#allocation6 + $0x1cb8] sm:$0xff]
    %v957 = vld [vmem:[#allocation6 + $0x1cc0] sm:$0xff]
    %v958 = vld [vmem:[#allocation6 + $0x1cc8] sm:$0xff]
    %v959 = vld [vmem:[#allocation6 + $0x1cd0] sm:$0xff]
    %v960 = vld [vmem:[#allocation6 + $0x1cd8] sm:$0xff]
    %v961 = vld [vmem:[#allocation6 + $0x1ce0] sm:$0xff]
    %v962 = vld [vmem:[#allocation6 + $0x1ce8] sm:$0xff]
    %v963 = vld [vmem:[#allocation6 + $0x1cf0] sm:$0xff]
    %v964 = vld [vmem:[#allocation6 + $0x1cf8] sm:$0xff]
    %v965 = vld [vmem:[#allocation6 + $0x1d00] sm:$0xff]
    %v966 = vld [vmem:[#allocation6 + $0x1d08] sm:$0xff]
    %v967 = vld [vmem:[#allocation6 + $0x1d10] sm:$0xff]
    %v968 = vld [vmem:[#allocation6 + $0x1d18] sm:$0xff]
    %v969 = vld [vmem:[#allocation6 + $0x1d20] sm:$0xff]
    %v970 = vld [vmem:[#allocation6 + $0x1d28] sm:$0xff]
    %v971 = vld [vmem:[#allocation6 + $0x1d30] sm:$0xff]
    %v972 = vld [vmem:[#allocation6 + $0x1d38] sm:$0xff]
    %v973 = vld [vmem:[#allocation6 + $0x1d40] sm:$0xff]
    %v974 = vld [vmem:[#allocation6 + $0x1d48] sm:$0xff]
    %v975 = vld [vmem:[#allocation6 + $0x1d50] sm:$0xff]
    %v976 = vld [vmem:[#allocation6 + $0x1d58] sm:$0xff]
    %v977 = vld [vmem:[#allocation6 + $0x1d60] sm:$0xff]
    %v978 = vld [vmem:[#allocation6 + $0x1d68] sm:$0xff]
    %v979 = vld [vmem:[#allocation6 + $0x1d70] sm:$0xff]
    %v980 = vld [vmem:[#allocation6 + $0x1d78] sm:$0xff]
    %v981 = vld [vmem:[#allocation6 + $0x1d80] sm:$0xff]
    %v982 = vld [vmem:[#allocation6 + $0x1d88] sm:$0xff]
    %v983 = vld [vmem:[#allocation6 + $0x1d90] sm:$0xff]
    %v984 = vld [vmem:[#allocation6 + $0x1d98] sm:$0xff]
    %v985 = vld [vmem:[#allocation6 + $0x1da0] sm:$0xff]
    %v986 = vld [vmem:[#allocation6 + $0x1da8] sm:$0xff]
    %v987 = vld [vmem:[#allocation6 + $0x1db0] sm:$0xff]
    %v988 = vld [vmem:[#allocation6 + $0x1db8] sm:$0xff]
    %v989 = vld [vmem:[#allocation6 + $0x1dc0] sm:$0xff]
    %v990 = vld [vmem:[#allocation6 + $0x1dc8] sm:$0xff]
    %v991 = vld [vmem:[#allocation6 + $0x1dd0] sm:$0xff]
    %v992 = vld [vmem:[#allocation6 + $0x1dd8] sm:$0xff]
    %v993 = vld [vmem:[#allocation6 + $0x1de0] sm:$0xff]
    %v994 = vld [vmem:[#allocation6 + $0x1de8] sm:$0xff]
    %v995 = vld [vmem:[#allocation6 + $0x1df0] sm:$0xff]
    %v996 = vld [vmem:[#allocation6 + $0x1df8] sm:$0xff]
    %v997 = vld [vmem:[#allocation6 + $0x1e00] sm:$0xff]
    %v998 = vld [vmem:[#allocation6 + $0x1e08] sm:$0xff]
    %v999 = vld [vmem:[#allocation6 + $0x1e10] sm:$0xff]
    %v1000 = vld [vmem:[#allocation6 + $0x1e18] sm:$0xff]
    %v1001 = vld [vmem:[#allocation6 + $0x1e20] sm:$0xff]
    %v1002 = vld [vmem:[#allocation6 + $0x1e28] sm:$0xff]
    %v1003 = vld [vmem:[#allocation6 + $0x1e30] sm:$0xff]
    %v1004 = vld [vmem:[#allocation6 + $0x1e38] sm:$0xff]
    %v1005 = vld [vmem:[#allocation6 + $0x1e40] sm:$0xff]
    %v1006 = vld [vmem:[#allocation6 + $0x1e48] sm:$0xff]
    %v1007 = vld [vmem:[#allocation6 + $0x1e50] sm:$0xff]
    %v1008 = vld [vmem:[#allocation6 + $0x1e58] sm:$0xff]
    %v1009 = vld [vmem:[#allocation6 + $0x1e60] sm:$0xff]
    %v1010 = vld [vmem:[#allocation6 + $0x1e68] sm:$0xff]
    %v1011 = vld [vmem:[#allocation6 + $0x1e70] sm:$0xff]
    %v1012 = vld [vmem:[#allocation6 + $0x1e78] sm:$0xff]
    %v1013 = vld [vmem:[#allocation6 + $0x1e80] sm:$0xff]
    %v1014 = vld [vmem:[#allocation6 + $0x1e88] sm:$0xff]
    %v1015 = vld [vmem:[#allocation6 + $0x1e90] sm:$0xff]
    %v1016 = vld [vmem:[#allocation6 + $0x1e98] sm:$0xff]
    %v1017 = vld [vmem:[#allocation6 + $0x1ea0] sm:$0xff]
    %v1018 = vld [vmem:[#allocation6 + $0x1ea8] sm:$0xff]
    %v1019 = vld [vmem:[#allocation6 + $0x1eb0] sm:$0xff]
    %v1020 = vld [vmem:[#allocation6 + $0x1eb8] sm:$0xff]
    %v1021 = vld [vmem:[#allocation6 + $0x1ec0] sm:$0xff]
    %v1022 = vld [vmem:[#allocation6 + $0x1ec8] sm:$0xff]
    %v1023 = vld [vmem:[#allocation6 + $0x1ed0] sm:$0xff]
    %v1024 = vld [vmem:[#allocation6 + $0x1ed8] sm:$0xff]
    %v1025 = vld [vmem:[#allocation6 + $0x1ee0] sm:$0xff]
    %v1026 = vld [vmem:[#allocation6 + $0x1ee8] sm:$0xff]
    %v1027 = vld [vmem:[#allocation6 + $0x1ef0] sm:$0xff]
    %v1028 = vld [vmem:[#allocation6 + $0x1ef8] sm:$0xff]
    %v1029 = vld [vmem:[#allocation6 + $0x1f00] sm:$0xff]
    %v1030 = vld [vmem:[#allocation6 + $0x1f08] sm:$0xff]
    %v1031 = vld [vmem:[#allocation6 + $0x1f10] sm:$0xff]
    %v1032 = vld [vmem:[#allocation6 + $0x1f18] sm:$0xff]
    %v1033 = vld [vmem:[#allocation6 + $0x1f20] sm:$0xff]
    %v1034 = vld [vmem:[#allocation6 + $0x1f28] sm:$0xff]
    %v1035 = vld [vmem:[#allocation6 + $0x1f30] sm:$0xff]
    %v1036 = vld [vmem:[#allocation6 + $0x1f38] sm:$0xff]
    %v1037 = vld [vmem:[#allocation6 + $0x1f40] sm:$0xff]
    %v1038 = vld [vmem:[#allocation6 + $0x1f48] sm:$0xff]
    %v1039 = vld [vmem:[#allocation6 + $0x1f50] sm:$0xff]
    %v1040 = vld [vmem:[#allocation6 + $0x1f58] sm:$0xff]
    %v1041 = vld [vmem:[#allocation6 + $0x1f60] sm:$0xff]
    %v1042 = vld [vmem:[#allocation6 + $0x1f68] sm:$0xff]
    %v1043 = vld [vmem:[#allocation6 + $0x1f70] sm:$0xff]
    %v1044 = vld [vmem:[#allocation6 + $0x1f78] sm:$0xff]
    %v1045 = vld [vmem:[#allocation6 + $0x1f80] sm:$0xff]
    %v1046 = vld [vmem:[#allocation6 + $0x1f88] sm:$0xff]
    %v1047 = vld [vmem:[#allocation6 + $0x1f90] sm:$0xff]
    %v1048 = vld [vmem:[#allocation6 + $0x1f98] sm:$0xff]
    %v1049 = vld [vmem:[#allocation6 + $0x1fa0] sm:$0xff]
    %v1050 = vld [vmem:[#allocation6 + $0x1fa8] sm:$0xff]
    %v1051 = vld [vmem:[#allocation6 + $0x1fb0] sm:$0xff]
    %v1052 = vld [vmem:[#allocation6 + $0x1fb8] sm:$0xff]
    %v1053 = vld [vmem:[#allocation6 + $0x1fc0] sm:$0xff]
    %v1054 = vld [vmem:[#allocation6 + $0x1fc8] sm:$0xff]
    %v1055 = vld [vmem:[#allocation6 + $0x1fd0] sm:$0xff]
    %v1056 = vld [vmem:[#allocation6 + $0x1fd8] sm:$0xff]
    %v1057 = vld [vmem:[#allocation6 + $0x1fe0] sm:$0xff]
    %v1058 = vld [vmem:[#allocation6 + $0x1fe8] sm:$0xff]
    %v1059 = vld [vmem:[#allocation6 + $0x1ff0] sm:$0xff]
    %v1060 = vld [vmem:[#allocation6 + $0x1ff8] sm:$0xff]
    %s1061 = sld [smem:[#allocation2]]
    %s1062 = sld [smem:[#allocation2 + $0x1]]
    %v1063 = vstv %s1061
    %v1064 = vmul.f32 %v37, %v1063
    %v1065 = vmul.f32 %v38, %v1063
    %v1066 = vmul.f32 %v39, %v1063
    %v1067 = vmul.f32 %v40, %v1063
    %v1068 = vmul.f32 %v41, %v1063
    %v1069 = vmul.f32 %v42, %v1063
    %v1070 = vmul.f32 %v43, %v1063
    %v1071 = vmul.f32 %v44, %v1063
    %v1072 = vmul.f32 %v45, %v1063
    %v1073 = vmul.f32 %v46, %v1063
    %v1074 = vmul.f32 %v47, %v1063
    %v1075 = vmul.f32 %v48, %v1063
    %v1076 = vmul.f32 %v49, %v1063
    %v1077 = vmul.f32 %v50, %v1063
    %v1078 = vmul.f32 %v51, %v1063
    %v1079 = vmul.f32 %v52, %v1063
    %v1080 = vmul.f32 %v53, %v1063
    %v1081 = vmul.f32 %v54, %v1063
    %v1082 = vmul.f32 %v55, %v1063
    %v1083 = vmul.f32 %v56, %v1063
    %v1084 = vmul.f32 %v57, %v1063
    %v1085 = vmul.f32 %v58, %v1063
    %v1086 = vmul.f32 %v59, %v1063
    %v1087 = vmul.f32 %v60, %v1063
    %v1088 = vmul.f32 %v61, %v1063
    %v1089 = vmul.f32 %v62, %v1063
    %v1090 = vmul.f32 %v63, %v1063
    %v1091 = vmul.f32 %v64, %v1063
    %v1092 = vmul.f32 %v65, %v1063
    %v1093 = vmul.f32 %v66, %v1063
    %v1094 = vmul.f32 %v67, %v1063
    %v1095 = vmul.f32 %v68, %v1063
    %v1096 = vmul.f32 %v69, %v1063
    %v1097 = vmul.f32 %v70, %v1063
    %v1098 = vmul.f32 %v71, %v1063
    %v1099 = vmul.f32 %v72, %v1063
    %v1100 = vmul.f32 %v73, %v1063
    %v1101 = vmul.f32 %v74, %v1063
    %v1102 = vmul.f32 %v75, %v1063
    %v1103 = vmul.f32 %v76, %v1063
    %v1104 = vmul.f32 %v77, %v1063
    %v1105 = vmul.f32 %v78, %v1063
    %v1106 = vmul.f32 %v79, %v1063
    %v1107 = vmul.f32 %v80, %v1063
    %v1108 = vmul.f32 %v81, %v1063
    %v1109 = vmul.f32 %v82, %v1063
    %v1110 = vmul.f32 %v83, %v1063
    %v1111 = vmul.f32 %v84, %v1063
    %v1112 = vmul.f32 %v85, %v1063
    %v1113 = vmul.f32 %v86, %v1063
    %v1114 = vmul.f32 %v87, %v1063
    %v1115 = vmul.f32 %v88, %v1063
    %v1116 = vmul.f32 %v89, %v1063
    %v1117 = vmul.f32 %v90, %v1063
    %v1118 = vmul.f32 %v91, %v1063
    %v1119 = vmul.f32 %v92, %v1063
    %v1120 = vmul.f32 %v93, %v1063
    %v1121 = vmul.f32 %v94, %v1063
    %v1122 = vmul.f32 %v95, %v1063
    %v1123 = vmul.f32 %v96, %v1063
    %v1124 = vmul.f32 %v97, %v1063
    %v1125 = vmul.f32 %v98, %v1063
    %v1126 = vmul.f32 %v99, %v1063
    %v1127 = vmul.f32 %v100, %v1063
    %v1128 = vmul.f32 %v101, %v1063
    %v1129 = vmul.f32 %v102, %v1063
    %v1130 = vmul.f32 %v103, %v1063
    %v1131 = vmul.f32 %v104, %v1063
    %v1132 = vmul.f32 %v105, %v1063
    %v1133 = vmul.f32 %v106, %v1063
    %v1134 = vmul.f32 %v107, %v1063
    %v1135 = vmul.f32 %v108, %v1063
    %v1136 = vmul.f32 %v109, %v1063
    %v1137 = vmul.f32 %v110, %v1063
    %v1138 = vmul.f32 %v111, %v1063
    %v1139 = vmul.f32 %v112, %v1063
    %v1140 = vmul.f32 %v113, %v1063
    %v1141 = vmul.f32 %v114, %v1063
    %v1142 = vmul.f32 %v115, %v1063
    %v1143 = vmul.f32 %v116, %v1063
    %v1144 = vmul.f32 %v117, %v1063
    %v1145 = vmul.f32 %v118, %v1063
    %v1146 = vmul.f32 %v119, %v1063
    %v1147 = vmul.f32 %v120, %v1063
    %v1148 = vmul.f32 %v121, %v1063
    %v1149 = vmul.f32 %v122, %v1063
    %v1150 = vmul.f32 %v123, %v1063
    %v1151 = vmul.f32 %v124, %v1063
    %v1152 = vmul.f32 %v125, %v1063
    %v1153 = vmul.f32 %v126, %v1063
    %v1154 = vmul.f32 %v127, %v1063
    %v1155 = vmul.f32 %v128, %v1063
    %v1156 = vmul.f32 %v129, %v1063
    %v1157 = vmul.f32 %v130, %v1063
    %v1158 = vmul.f32 %v131, %v1063
    %v1159 = vmul.f32 %v132, %v1063
    %v1160 = vmul.f32 %v133, %v1063
    %v1161 = vmul.f32 %v134, %v1063
    %v1162 = vmul.f32 %v135, %v1063
    %v1163 = vmul.f32 %v136, %v1063
    %v1164 = vmul.f32 %v137, %v1063
    %v1165 = vmul.f32 %v138, %v1063
    %v1166 = vmul.f32 %v139, %v1063
    %v1167 = vmul.f32 %v140, %v1063
    %v1168 = vmul.f32 %v141, %v1063
    %v1169 = vmul.f32 %v142, %v1063
    %v1170 = vmul.f32 %v143, %v1063
    %v1171 = vmul.f32 %v144, %v1063
    %v1172 = vmul.f32 %v145, %v1063
    %v1173 = vmul.f32 %v146, %v1063
    %v1174 = vmul.f32 %v147, %v1063
    %v1175 = vmul.f32 %v148, %v1063
    %v1176 = vmul.f32 %v149, %v1063
    %v1177 = vmul.f32 %v150, %v1063
    %v1178 = vmul.f32 %v151, %v1063
    %v1179 = vmul.f32 %v152, %v1063
    %v1180 = vmul.f32 %v153, %v1063
    %v1181 = vmul.f32 %v154, %v1063
    %v1182 = vmul.f32 %v155, %v1063
    %v1183 = vmul.f32 %v156, %v1063
    %v1184 = vmul.f32 %v157, %v1063
    %v1185 = vmul.f32 %v158, %v1063
    %v1186 = vmul.f32 %v159, %v1063
    %v1187 = vmul.f32 %v160, %v1063
    %v1188 = vmul.f32 %v161, %v1063
    %v1189 = vmul.f32 %v162, %v1063
    %v1190 = vmul.f32 %v163, %v1063
    %v1191 = vmul.f32 %v164, %v1063
    %v1192 = vmul.f32 %v165, %v1063
    %v1193 = vmul.f32 %v166, %v1063
    %v1194 = vmul.f32 %v167, %v1063
    %v1195 = vmul.f32 %v168, %v1063
    %v1196 = vmul.f32 %v169, %v1063
    %v1197 = vmul.f32 %v170, %v1063
    %v1198 = vmul.f32 %v171, %v1063
    %v1199 = vmul.f32 %v172, %v1063
    %v1200 = vmul.f32 %v173, %v1063
    %v1201 = vmul.f32 %v174, %v1063
    %v1202 = vmul.f32 %v175, %v1063
    %v1203 = vmul.f32 %v176, %v1063
    %v1204 = vmul.f32 %v177, %v1063
    %v1205 = vmul.f32 %v178, %v1063
    %v1206 = vmul.f32 %v179, %v1063
    %v1207 = vmul.f32 %v180, %v1063
    %v1208 = vmul.f32 %v181, %v1063
    %v1209 = vmul.f32 %v182, %v1063
    %v1210 = vmul.f32 %v183, %v1063
    %v1211 = vmul.f32 %v184, %v1063
    %v1212 = vmul.f32 %v185, %v1063
    %v1213 = vmul.f32 %v186, %v1063
    %v1214 = vmul.f32 %v187, %v1063
    %v1215 = vmul.f32 %v188, %v1063
    %v1216 = vmul.f32 %v189, %v1063
    %v1217 = vmul.f32 %v190, %v1063
    %v1218 = vmul.f32 %v191, %v1063
    %v1219 = vmul.f32 %v192, %v1063
    %v1220 = vmul.f32 %v193, %v1063
    %v1221 = vmul.f32 %v194, %v1063
    %v1222 = vmul.f32 %v195, %v1063
    %v1223 = vmul.f32 %v196, %v1063
    %v1224 = vmul.f32 %v197, %v1063
    %v1225 = vmul.f32 %v198, %v1063
    %v1226 = vmul.f32 %v199, %v1063
    %v1227 = vmul.f32 %v200, %v1063
    %v1228 = vmul.f32 %v201, %v1063
    %v1229 = vmul.f32 %v202, %v1063
    %v1230 = vmul.f32 %v203, %v1063
    %v1231 = vmul.f32 %v204, %v1063
    %v1232 = vmul.f32 %v205, %v1063
    %v1233 = vmul.f32 %v206, %v1063
    %v1234 = vmul.f32 %v207, %v1063
    %v1235 = vmul.f32 %v208, %v1063
    %v1236 = vmul.f32 %v209, %v1063
    %v1237 = vmul.f32 %v210, %v1063
    %v1238 = vmul.f32 %v211, %v1063
    %v1239 = vmul.f32 %v212, %v1063
    %v1240 = vmul.f32 %v213, %v1063
    %v1241 = vmul.f32 %v214, %v1063
    %v1242 = vmul.f32 %v215, %v1063
    %v1243 = vmul.f32 %v216, %v1063
    %v1244 = vmul.f32 %v217, %v1063
    %v1245 = vmul.f32 %v218, %v1063
    %v1246 = vmul.f32 %v219, %v1063
    %v1247 = vmul.f32 %v220, %v1063
    %v1248 = vmul.f32 %v221, %v1063
    %v1249 = vmul.f32 %v222, %v1063
    %v1250 = vmul.f32 %v223, %v1063
    %v1251 = vmul.f32 %v224, %v1063
    %v1252 = vmul.f32 %v225, %v1063
    %v1253 = vmul.f32 %v226, %v1063
    %v1254 = vmul.f32 %v227, %v1063
    %v1255 = vmul.f32 %v228, %v1063
    %v1256 = vmul.f32 %v229, %v1063
    %v1257 = vmul.f32 %v230, %v1063
    %v1258 = vmul.f32 %v231, %v1063
    %v1259 = vmul.f32 %v232, %v1063
    %v1260 = vmul.f32 %v233, %v1063
    %v1261 = vmul.f32 %v234, %v1063
    %v1262 = vmul.f32 %v235, %v1063
    %v1263 = vmul.f32 %v236, %v1063
    %v1264 = vmul.f32 %v237, %v1063
    %v1265 = vmul.f32 %v238, %v1063
    %v1266 = vmul.f32 %v239, %v1063
    %v1267 = vmul.f32 %v240, %v1063
    %v1268 = vmul.f32 %v241, %v1063
    %v1269 = vmul.f32 %v242, %v1063
    %v1270 = vmul.f32 %v243, %v1063
    %v1271 = vmul.f32 %v244, %v1063
    %v1272 = vmul.f32 %v245, %v1063
    %v1273 = vmul.f32 %v246, %v1063
    %v1274 = vmul.f32 %v247, %v1063
    %v1275 = vmul.f32 %v248, %v1063
    %v1276 = vmul.f32 %v249, %v1063
    %v1277 = vmul.f32 %v250, %v1063
    %v1278 = vmul.f32 %v251, %v1063
    %v1279 = vmul.f32 %v252, %v1063
    %v1280 = vmul.f32 %v253, %v1063
    %v1281 = vmul.f32 %v254, %v1063
    %v1282 = vmul.f32 %v255, %v1063
    %v1283 = vmul.f32 %v256, %v1063
    %v1284 = vmul.f32 %v257, %v1063
    %v1285 = vmul.f32 %v258, %v1063
    %v1286 = vmul.f32 %v259, %v1063
    %v1287 = vmul.f32 %v260, %v1063
    %v1288 = vmul.f32 %v261, %v1063
    %v1289 = vmul.f32 %v262, %v1063
    %v1290 = vmul.f32 %v263, %v1063
    %v1291 = vmul.f32 %v264, %v1063
    %v1292 = vmul.f32 %v265, %v1063
    %v1293 = vmul.f32 %v266, %v1063
    %v1294 = vmul.f32 %v267, %v1063
    %v1295 = vmul.f32 %v268, %v1063
    %v1296 = vmul.f32 %v269, %v1063
    %v1297 = vmul.f32 %v270, %v1063
    %v1298 = vmul.f32 %v271, %v1063
    %v1299 = vmul.f32 %v272, %v1063
    %v1300 = vmul.f32 %v273, %v1063
    %v1301 = vmul.f32 %v274, %v1063
    %v1302 = vmul.f32 %v275, %v1063
    %v1303 = vmul.f32 %v276, %v1063
    %v1304 = vmul.f32 %v277, %v1063
    %v1305 = vmul.f32 %v278, %v1063
    %v1306 = vmul.f32 %v279, %v1063
    %v1307 = vmul.f32 %v280, %v1063
    %v1308 = vmul.f32 %v281, %v1063
    %v1309 = vmul.f32 %v282, %v1063
    %v1310 = vmul.f32 %v283, %v1063
    %v1311 = vmul.f32 %v284, %v1063
    %v1312 = vmul.f32 %v285, %v1063
    %v1313 = vmul.f32 %v286, %v1063
    %v1314 = vmul.f32 %v287, %v1063
    %v1315 = vmul.f32 %v288, %v1063
    %v1316 = vmul.f32 %v289, %v1063
    %v1317 = vmul.f32 %v290, %v1063
    %v1318 = vmul.f32 %v291, %v1063
    %v1319 = vmul.f32 %v292, %v1063
    %v1320 = vmul.f32 %v293, %v1063
    %v1321 = vmul.f32 %v294, %v1063
    %v1322 = vmul.f32 %v295, %v1063
    %v1323 = vmul.f32 %v296, %v1063
    %v1324 = vmul.f32 %v297, %v1063
    %v1325 = vmul.f32 %v298, %v1063
    %v1326 = vmul.f32 %v299, %v1063
    %v1327 = vmul.f32 %v300, %v1063
    %v1328 = vmul.f32 %v301, %v1063
    %v1329 = vmul.f32 %v302, %v1063
    %v1330 = vmul.f32 %v303, %v1063
    %v1331 = vmul.f32 %v304, %v1063
    %v1332 = vmul.f32 %v305, %v1063
    %v1333 = vmul.f32 %v306, %v1063
    %v1334 = vmul.f32 %v307, %v1063
    %v1335 = vmul.f32 %v308, %v1063
    %v1336 = vmul.f32 %v309, %v1063
    %v1337 = vmul.f32 %v310, %v1063
    %v1338 = vmul.f32 %v311, %v1063
    %v1339 = vmul.f32 %v312, %v1063
    %v1340 = vmul.f32 %v313, %v1063
    %v1341 = vmul.f32 %v314, %v1063
    %v1342 = vmul.f32 %v315, %v1063
    %v1343 = vmul.f32 %v316, %v1063
    %v1344 = vmul.f32 %v317, %v1063
    %v1345 = vmul.f32 %v318, %v1063
    %v1346 = vmul.f32 %v319, %v1063
    %v1347 = vmul.f32 %v320, %v1063
    %v1348 = vmul.f32 %v321, %v1063
    %v1349 = vmul.f32 %v322, %v1063
    %v1350 = vmul.f32 %v323, %v1063
    %v1351 = vmul.f32 %v324, %v1063
    %v1352 = vmul.f32 %v325, %v1063
    %v1353 = vmul.f32 %v326, %v1063
    %v1354 = vmul.f32 %v327, %v1063
    %v1355 = vmul.f32 %v328, %v1063
    %v1356 = vmul.f32 %v329, %v1063
    %v1357 = vmul.f32 %v330, %v1063
    %v1358 = vmul.f32 %v331, %v1063
    %v1359 = vmul.f32 %v332, %v1063
    %v1360 = vmul.f32 %v333, %v1063
    %v1361 = vmul.f32 %v334, %v1063
    %v1362 = vmul.f32 %v335, %v1063
    %v1363 = vmul.f32 %v336, %v1063
    %v1364 = vmul.f32 %v337, %v1063
    %v1365 = vmul.f32 %v338, %v1063
    %v1366 = vmul.f32 %v339, %v1063
    %v1367 = vmul.f32 %v340, %v1063
    %v1368 = vmul.f32 %v341, %v1063
    %v1369 = vmul.f32 %v342, %v1063
    %v1370 = vmul.f32 %v343, %v1063
    %v1371 = vmul.f32 %v344, %v1063
    %v1372 = vmul.f32 %v345, %v1063
    %v1373 = vmul.f32 %v346, %v1063
    %v1374 = vmul.f32 %v347, %v1063
    %v1375 = vmul.f32 %v348, %v1063
    %v1376 = vmul.f32 %v349, %v1063
    %v1377 = vmul.f32 %v350, %v1063
    %v1378 = vmul.f32 %v351, %v1063
    %v1379 = vmul.f32 %v352, %v1063
    %v1380 = vmul.f32 %v353, %v1063
    %v1381 = vmul.f32 %v354, %v1063
    %v1382 = vmul.f32 %v355, %v1063
    %v1383 = vmul.f32 %v356, %v1063
    %v1384 = vmul.f32 %v357, %v1063
    %v1385 = vmul.f32 %v358, %v1063
    %v1386 = vmul.f32 %v359, %v1063
    %v1387 = vmul.f32 %v360, %v1063
    %v1388 = vmul.f32 %v361, %v1063
    %v1389 = vmul.f32 %v362, %v1063
    %v1390 = vmul.f32 %v363, %v1063
    %v1391 = vmul.f32 %v364, %v1063
    %v1392 = vmul.f32 %v365, %v1063
    %v1393 = vmul.f32 %v366, %v1063
    %v1394 = vmul.f32 %v367, %v1063
    %v1395 = vmul.f32 %v368, %v1063
    %v1396 = vmul.f32 %v369, %v1063
    %v1397 = vmul.f32 %v370, %v1063
    %v1398 = vmul.f32 %v371, %v1063
    %v1399 = vmul.f32 %v372, %v1063
    %v1400 = vmul.f32 %v373, %v1063
    %v1401 = vmul.f32 %v374, %v1063
    %v1402 = vmul.f32 %v375, %v1063
    %v1403 = vmul.f32 %v376, %v1063
    %v1404 = vmul.f32 %v377, %v1063
    %v1405 = vmul.f32 %v378, %v1063
    %v1406 = vmul.f32 %v379, %v1063
    %v1407 = vmul.f32 %v380, %v1063
    %v1408 = vmul.f32 %v381, %v1063
    %v1409 = vmul.f32 %v382, %v1063
    %v1410 = vmul.f32 %v383, %v1063
    %v1411 = vmul.f32 %v384, %v1063
    %v1412 = vmul.f32 %v385, %v1063
    %v1413 = vmul.f32 %v386, %v1063
    %v1414 = vmul.f32 %v387, %v1063
    %v1415 = vmul.f32 %v388, %v1063
    %v1416 = vmul.f32 %v389, %v1063
    %v1417 = vmul.f32 %v390, %v1063
    %v1418 = vmul.f32 %v391, %v1063
    %v1419 = vmul.f32 %v392, %v1063
    %v1420 = vmul.f32 %v393, %v1063
    %v1421 = vmul.f32 %v394, %v1063
    %v1422 = vmul.f32 %v395, %v1063
    %v1423 = vmul.f32 %v396, %v1063
    %v1424 = vmul.f32 %v397, %v1063
    %v1425 = vmul.f32 %v398, %v1063
    %v1426 = vmul.f32 %v399, %v1063
    %v1427 = vmul.f32 %v400, %v1063
    %v1428 = vmul.f32 %v401, %v1063
    %v1429 = vmul.f32 %v402, %v1063
    %v1430 = vmul.f32 %v403, %v1063
    %v1431 = vmul.f32 %v404, %v1063
    %v1432 = vmul.f32 %v405, %v1063
    %v1433 = vmul.f32 %v406, %v1063
    %v1434 = vmul.f32 %v407, %v1063
    %v1435 = vmul.f32 %v408, %v1063
    %v1436 = vmul.f32 %v409, %v1063
    %v1437 = vmul.f32 %v410, %v1063
    %v1438 = vmul.f32 %v411, %v1063
    %v1439 = vmul.f32 %v412, %v1063
    %v1440 = vmul.f32 %v413, %v1063
    %v1441 = vmul.f32 %v414, %v1063
    %v1442 = vmul.f32 %v415, %v1063
    %v1443 = vmul.f32 %v416, %v1063
    %v1444 = vmul.f32 %v417, %v1063
    %v1445 = vmul.f32 %v418, %v1063
    %v1446 = vmul.f32 %v419, %v1063
    %v1447 = vmul.f32 %v420, %v1063
    %v1448 = vmul.f32 %v421, %v1063
    %v1449 = vmul.f32 %v422, %v1063
    %v1450 = vmul.f32 %v423, %v1063
    %v1451 = vmul.f32 %v424, %v1063
    %v1452 = vmul.f32 %v425, %v1063
    %v1453 = vmul.f32 %v426, %v1063
    %v1454 = vmul.f32 %v427, %v1063
    %v1455 = vmul.f32 %v428, %v1063
    %v1456 = vmul.f32 %v429, %v1063
    %v1457 = vmul.f32 %v430, %v1063
    %v1458 = vmul.f32 %v431, %v1063
    %v1459 = vmul.f32 %v432, %v1063
    %v1460 = vmul.f32 %v433, %v1063
    %v1461 = vmul.f32 %v434, %v1063
    %v1462 = vmul.f32 %v435, %v1063
    %v1463 = vmul.f32 %v436, %v1063
    %v1464 = vmul.f32 %v437, %v1063
    %v1465 = vmul.f32 %v438, %v1063
    %v1466 = vmul.f32 %v439, %v1063
    %v1467 = vmul.f32 %v440, %v1063
    %v1468 = vmul.f32 %v441, %v1063
    %v1469 = vmul.f32 %v442, %v1063
    %v1470 = vmul.f32 %v443, %v1063
    %v1471 = vmul.f32 %v444, %v1063
    %v1472 = vmul.f32 %v445, %v1063
    %v1473 = vmul.f32 %v446, %v1063
    %v1474 = vmul.f32 %v447, %v1063
    %v1475 = vmul.f32 %v448, %v1063
    %v1476 = vmul.f32 %v449, %v1063
    %v1477 = vmul.f32 %v450, %v1063
    %v1478 = vmul.f32 %v451, %v1063
    %v1479 = vmul.f32 %v452, %v1063
    %v1480 = vmul.f32 %v453, %v1063
    %v1481 = vmul.f32 %v454, %v1063
    %v1482 = vmul.f32 %v455, %v1063
    %v1483 = vmul.f32 %v456, %v1063
    %v1484 = vmul.f32 %v457, %v1063
    %v1485 = vmul.f32 %v458, %v1063
    %v1486 = vmul.f32 %v459, %v1063
    %v1487 = vmul.f32 %v460, %v1063
    %v1488 = vmul.f32 %v461, %v1063
    %v1489 = vmul.f32 %v462, %v1063
    %v1490 = vmul.f32 %v463, %v1063
    %v1491 = vmul.f32 %v464, %v1063
    %v1492 = vmul.f32 %v465, %v1063
    %v1493 = vmul.f32 %v466, %v1063
    %v1494 = vmul.f32 %v467, %v1063
    %v1495 = vmul.f32 %v468, %v1063
    %v1496 = vmul.f32 %v469, %v1063
    %v1497 = vmul.f32 %v470, %v1063
    %v1498 = vmul.f32 %v471, %v1063
    %v1499 = vmul.f32 %v472, %v1063
    %v1500 = vmul.f32 %v473, %v1063
    %v1501 = vmul.f32 %v474, %v1063
    %v1502 = vmul.f32 %v475, %v1063
    %v1503 = vmul.f32 %v476, %v1063
    %v1504 = vmul.f32 %v477, %v1063
    %v1505 = vmul.f32 %v478, %v1063
    %v1506 = vmul.f32 %v479, %v1063
    %v1507 = vmul.f32 %v480, %v1063
    %v1508 = vmul.f32 %v481, %v1063
    %v1509 = vmul.f32 %v482, %v1063
    %v1510 = vmul.f32 %v483, %v1063
    %v1511 = vmul.f32 %v484, %v1063
    %v1512 = vmul.f32 %v485, %v1063
    %v1513 = vmul.f32 %v486, %v1063
    %v1514 = vmul.f32 %v487, %v1063
    %v1515 = vmul.f32 %v488, %v1063
    %v1516 = vmul.f32 %v489, %v1063
    %v1517 = vmul.f32 %v490, %v1063
    %v1518 = vmul.f32 %v491, %v1063
    %v1519 = vmul.f32 %v492, %v1063
    %v1520 = vmul.f32 %v493, %v1063
    %v1521 = vmul.f32 %v494, %v1063
    %v1522 = vmul.f32 %v495, %v1063
    %v1523 = vmul.f32 %v496, %v1063
    %v1524 = vmul.f32 %v497, %v1063
    %v1525 = vmul.f32 %v498, %v1063
    %v1526 = vmul.f32 %v499, %v1063
    %v1527 = vmul.f32 %v500, %v1063
    %v1528 = vmul.f32 %v501, %v1063
    %v1529 = vmul.f32 %v502, %v1063
    %v1530 = vmul.f32 %v503, %v1063
    %v1531 = vmul.f32 %v504, %v1063
    %v1532 = vmul.f32 %v505, %v1063
    %v1533 = vmul.f32 %v506, %v1063
    %v1534 = vmul.f32 %v507, %v1063
    %v1535 = vmul.f32 %v508, %v1063
    %v1536 = vmul.f32 %v509, %v1063
    %v1537 = vmul.f32 %v510, %v1063
    %v1538 = vmul.f32 %v511, %v1063
    %v1539 = vmul.f32 %v512, %v1063
    %v1540 = vmul.f32 %v513, %v1063
    %v1541 = vmul.f32 %v514, %v1063
    %v1542 = vmul.f32 %v515, %v1063
    %v1543 = vmul.f32 %v516, %v1063
    %v1544 = vmul.f32 %v517, %v1063
    %v1545 = vmul.f32 %v518, %v1063
    %v1546 = vmul.f32 %v519, %v1063
    %v1547 = vmul.f32 %v520, %v1063
    %v1548 = vmul.f32 %v521, %v1063
    %v1549 = vmul.f32 %v522, %v1063
    %v1550 = vmul.f32 %v523, %v1063
    %v1551 = vmul.f32 %v524, %v1063
    %v1552 = vmul.f32 %v525, %v1063
    %v1553 = vmul.f32 %v526, %v1063
    %v1554 = vmul.f32 %v527, %v1063
    %v1555 = vmul.f32 %v528, %v1063
    %v1556 = vmul.f32 %v529, %v1063
    %v1557 = vmul.f32 %v530, %v1063
    %v1558 = vmul.f32 %v531, %v1063
    %v1559 = vmul.f32 %v532, %v1063
    %v1560 = vmul.f32 %v533, %v1063
    %v1561 = vmul.f32 %v534, %v1063
    %v1562 = vmul.f32 %v535, %v1063
    %v1563 = vmul.f32 %v536, %v1063
    %v1564 = vmul.f32 %v537, %v1063
    %v1565 = vmul.f32 %v538, %v1063
    %v1566 = vmul.f32 %v539, %v1063
    %v1567 = vmul.f32 %v540, %v1063
    %v1568 = vmul.f32 %v541, %v1063
    %v1569 = vmul.f32 %v542, %v1063
    %v1570 = vmul.f32 %v543, %v1063
    %v1571 = vmul.f32 %v544, %v1063
    %v1572 = vmul.f32 %v545, %v1063
    %v1573 = vmul.f32 %v546, %v1063
    %v1574 = vmul.f32 %v547, %v1063
    %v1575 = vmul.f32 %v548, %v1063
    %v1576 = vmul.f32 %v549, %v1063
    %v1577 = vmul.f32 %v550, %v1063
    %v1578 = vmul.f32 %v551, %v1063
    %v1579 = vmul.f32 %v552, %v1063
    %v1580 = vmul.f32 %v553, %v1063
    %v1581 = vmul.f32 %v554, %v1063
    %v1582 = vmul.f32 %v555, %v1063
    %v1583 = vmul.f32 %v556, %v1063
    %v1584 = vmul.f32 %v557, %v1063
    %v1585 = vmul.f32 %v558, %v1063
    %v1586 = vmul.f32 %v559, %v1063
    %v1587 = vmul.f32 %v560, %v1063
    %v1588 = vmul.f32 %v561, %v1063
    %v1589 = vmul.f32 %v562, %v1063
    %v1590 = vmul.f32 %v563, %v1063
    %v1591 = vmul.f32 %v564, %v1063
    %v1592 = vmul.f32 %v565, %v1063
    %v1593 = vmul.f32 %v566, %v1063
    %v1594 = vmul.f32 %v567, %v1063
    %v1595 = vmul.f32 %v568, %v1063
    %v1596 = vmul.f32 %v569, %v1063
    %v1597 = vmul.f32 %v570, %v1063
    %v1598 = vmul.f32 %v571, %v1063
    %v1599 = vmul.f32 %v572, %v1063
    %v1600 = vmul.f32 %v573, %v1063
    %v1601 = vmul.f32 %v574, %v1063
    %v1602 = vmul.f32 %v575, %v1063
    %v1603 = vmul.f32 %v576, %v1063
    %v1604 = vmul.f32 %v577, %v1063
    %v1605 = vmul.f32 %v578, %v1063
    %v1606 = vmul.f32 %v579, %v1063
    %v1607 = vmul.f32 %v580, %v1063
    %v1608 = vmul.f32 %v581, %v1063
    %v1609 = vmul.f32 %v582, %v1063
    %v1610 = vmul.f32 %v583, %v1063
    %v1611 = vmul.f32 %v584, %v1063
    %v1612 = vmul.f32 %v585, %v1063
    %v1613 = vmul.f32 %v586, %v1063
    %v1614 = vmul.f32 %v587, %v1063
    %v1615 = vmul.f32 %v588, %v1063
    %v1616 = vmul.f32 %v589, %v1063
    %v1617 = vmul.f32 %v590, %v1063
    %v1618 = vmul.f32 %v591, %v1063
    %v1619 = vmul.f32 %v592, %v1063
    %v1620 = vmul.f32 %v593, %v1063
    %v1621 = vmul.f32 %v594, %v1063
    %v1622 = vmul.f32 %v595, %v1063
    %v1623 = vmul.f32 %v596, %v1063
    %v1624 = vmul.f32 %v597, %v1063
    %v1625 = vmul.f32 %v598, %v1063
    %v1626 = vmul.f32 %v599, %v1063
    %v1627 = vmul.f32 %v600, %v1063
    %v1628 = vmul.f32 %v601, %v1063
    %v1629 = vmul.f32 %v602, %v1063
    %v1630 = vmul.f32 %v603, %v1063
    %v1631 = vmul.f32 %v604, %v1063
    %v1632 = vmul.f32 %v605, %v1063
    %v1633 = vmul.f32 %v606, %v1063
    %v1634 = vmul.f32 %v607, %v1063
    %v1635 = vmul.f32 %v608, %v1063
    %v1636 = vmul.f32 %v609, %v1063
    %v1637 = vmul.f32 %v610, %v1063
    %v1638 = vmul.f32 %v611, %v1063
    %v1639 = vmul.f32 %v612, %v1063
    %v1640 = vmul.f32 %v613, %v1063
    %v1641 = vmul.f32 %v614, %v1063
    %v1642 = vmul.f32 %v615, %v1063
    %v1643 = vmul.f32 %v616, %v1063
    %v1644 = vmul.f32 %v617, %v1063
    %v1645 = vmul.f32 %v618, %v1063
    %v1646 = vmul.f32 %v619, %v1063
    %v1647 = vmul.f32 %v620, %v1063
    %v1648 = vmul.f32 %v621, %v1063
    %v1649 = vmul.f32 %v622, %v1063
    %v1650 = vmul.f32 %v623, %v1063
    %v1651 = vmul.f32 %v624, %v1063
    %v1652 = vmul.f32 %v625, %v1063
    %v1653 = vmul.f32 %v626, %v1063
    %v1654 = vmul.f32 %v627, %v1063
    %v1655 = vmul.f32 %v628, %v1063
    %v1656 = vmul.f32 %v629, %v1063
    %v1657 = vmul.f32 %v630, %v1063
    %v1658 = vmul.f32 %v631, %v1063
    %v1659 = vmul.f32 %v632, %v1063
    %v1660 = vmul.f32 %v633, %v1063
    %v1661 = vmul.f32 %v634, %v1063
    %v1662 = vmul.f32 %v635, %v1063
    %v1663 = vmul.f32 %v636, %v1063
    %v1664 = vmul.f32 %v637, %v1063
    %v1665 = vmul.f32 %v638, %v1063
    %v1666 = vmul.f32 %v639, %v1063
    %v1667 = vmul.f32 %v640, %v1063
    %v1668 = vmul.f32 %v641, %v1063
    %v1669 = vmul.f32 %v642, %v1063
    %v1670 = vmul.f32 %v643, %v1063
    %v1671 = vmul.f32 %v644, %v1063
    %v1672 = vmul.f32 %v645, %v1063
    %v1673 = vmul.f32 %v646, %v1063
    %v1674 = vmul.f32 %v647, %v1063
    %v1675 = vmul.f32 %v648, %v1063
    %v1676 = vmul.f32 %v649, %v1063
    %v1677 = vmul.f32 %v650, %v1063
    %v1678 = vmul.f32 %v651, %v1063
    %v1679 = vmul.f32 %v652, %v1063
    %v1680 = vmul.f32 %v653, %v1063
    %v1681 = vmul.f32 %v654, %v1063
    %v1682 = vmul.f32 %v655, %v1063
    %v1683 = vmul.f32 %v656, %v1063
    %v1684 = vmul.f32 %v657, %v1063
    %v1685 = vmul.f32 %v658, %v1063
    %v1686 = vmul.f32 %v659, %v1063
    %v1687 = vmul.f32 %v660, %v1063
    %v1688 = vmul.f32 %v661, %v1063
    %v1689 = vmul.f32 %v662, %v1063
    %v1690 = vmul.f32 %v663, %v1063
    %v1691 = vmul.f32 %v664, %v1063
    %v1692 = vmul.f32 %v665, %v1063
    %v1693 = vmul.f32 %v666, %v1063
    %v1694 = vmul.f32 %v667, %v1063
    %v1695 = vmul.f32 %v668, %v1063
    %v1696 = vmul.f32 %v669, %v1063
    %v1697 = vmul.f32 %v670, %v1063
    %v1698 = vmul.f32 %v671, %v1063
    %v1699 = vmul.f32 %v672, %v1063
    %v1700 = vmul.f32 %v673, %v1063
    %v1701 = vmul.f32 %v674, %v1063
    %v1702 = vmul.f32 %v675, %v1063
    %v1703 = vmul.f32 %v676, %v1063
    %v1704 = vmul.f32 %v677, %v1063
    %v1705 = vmul.f32 %v678, %v1063
    %v1706 = vmul.f32 %v679, %v1063
    %v1707 = vmul.f32 %v680, %v1063
    %v1708 = vmul.f32 %v681, %v1063
    %v1709 = vmul.f32 %v682, %v1063
    %v1710 = vmul.f32 %v683, %v1063
    %v1711 = vmul.f32 %v684, %v1063
    %v1712 = vmul.f32 %v685, %v1063
    %v1713 = vmul.f32 %v686, %v1063
    %v1714 = vmul.f32 %v687, %v1063
    %v1715 = vmul.f32 %v688, %v1063
    %v1716 = vmul.f32 %v689, %v1063
    %v1717 = vmul.f32 %v690, %v1063
    %v1718 = vmul.f32 %v691, %v1063
    %v1719 = vmul.f32 %v692, %v1063
    %v1720 = vmul.f32 %v693, %v1063
    %v1721 = vmul.f32 %v694, %v1063
    %v1722 = vmul.f32 %v695, %v1063
    %v1723 = vmul.f32 %v696, %v1063
    %v1724 = vmul.f32 %v697, %v1063
    %v1725 = vmul.f32 %v698, %v1063
    %v1726 = vmul.f32 %v699, %v1063
    %v1727 = vmul.f32 %v700, %v1063
    %v1728 = vmul.f32 %v701, %v1063
    %v1729 = vmul.f32 %v702, %v1063
    %v1730 = vmul.f32 %v703, %v1063
    %v1731 = vmul.f32 %v704, %v1063
    %v1732 = vmul.f32 %v705, %v1063
    %v1733 = vmul.f32 %v706, %v1063
    %v1734 = vmul.f32 %v707, %v1063
    %v1735 = vmul.f32 %v708, %v1063
    %v1736 = vmul.f32 %v709, %v1063
    %v1737 = vmul.f32 %v710, %v1063
    %v1738 = vmul.f32 %v711, %v1063
    %v1739 = vmul.f32 %v712, %v1063
    %v1740 = vmul.f32 %v713, %v1063
    %v1741 = vmul.f32 %v714, %v1063
    %v1742 = vmul.f32 %v715, %v1063
    %v1743 = vmul.f32 %v716, %v1063
    %v1744 = vmul.f32 %v717, %v1063
    %v1745 = vmul.f32 %v718, %v1063
    %v1746 = vmul.f32 %v719, %v1063
    %v1747 = vmul.f32 %v720, %v1063
    %v1748 = vmul.f32 %v721, %v1063
    %v1749 = vmul.f32 %v722, %v1063
    %v1750 = vmul.f32 %v723, %v1063
    %v1751 = vmul.f32 %v724, %v1063
    %v1752 = vmul.f32 %v725, %v1063
    %v1753 = vmul.f32 %v726, %v1063
    %v1754 = vmul.f32 %v727, %v1063
    %v1755 = vmul.f32 %v728, %v1063
    %v1756 = vmul.f32 %v729, %v1063
    %v1757 = vmul.f32 %v730, %v1063
    %v1758 = vmul.f32 %v731, %v1063
    %v1759 = vmul.f32 %v732, %v1063
    %v1760 = vmul.f32 %v733, %v1063
    %v1761 = vmul.f32 %v734, %v1063
    %v1762 = vmul.f32 %v735, %v1063
    %v1763 = vmul.f32 %v736, %v1063
    %v1764 = vmul.f32 %v737, %v1063
    %v1765 = vmul.f32 %v738, %v1063
    %v1766 = vmul.f32 %v739, %v1063
    %v1767 = vmul.f32 %v740, %v1063
    %v1768 = vmul.f32 %v741, %v1063
    %v1769 = vmul.f32 %v742, %v1063
    %v1770 = vmul.f32 %v743, %v1063
    %v1771 = vmul.f32 %v744, %v1063
    %v1772 = vmul.f32 %v745, %v1063
    %v1773 = vmul.f32 %v746, %v1063
    %v1774 = vmul.f32 %v747, %v1063
    %v1775 = vmul.f32 %v748, %v1063
    %v1776 = vmul.f32 %v749, %v1063
    %v1777 = vmul.f32 %v750, %v1063
    %v1778 = vmul.f32 %v751, %v1063
    %v1779 = vmul.f32 %v752, %v1063
    %v1780 = vmul.f32 %v753, %v1063
    %v1781 = vmul.f32 %v754, %v1063
    %v1782 = vmul.f32 %v755, %v1063
    %v1783 = vmul.f32 %v756, %v1063
    %v1784 = vmul.f32 %v757, %v1063
    %v1785 = vmul.f32 %v758, %v1063
    %v1786 = vmul.f32 %v759, %v1063
    %v1787 = vmul.f32 %v760, %v1063
    %v1788 = vmul.f32 %v761, %v1063
    %v1789 = vmul.f32 %v762, %v1063
    %v1790 = vmul.f32 %v763, %v1063
    %v1791 = vmul.f32 %v764, %v1063
    %v1792 = vmul.f32 %v765, %v1063
    %v1793 = vmul.f32 %v766, %v1063
    %v1794 = vmul.f32 %v767, %v1063
    %v1795 = vmul.f32 %v768, %v1063
    %v1796 = vmul.f32 %v769, %v1063
    %v1797 = vmul.f32 %v770, %v1063
    %v1798 = vmul.f32 %v771, %v1063
    %v1799 = vmul.f32 %v772, %v1063
    %v1800 = vmul.f32 %v773, %v1063
    %v1801 = vmul.f32 %v774, %v1063
    %v1802 = vmul.f32 %v775, %v1063
    %v1803 = vmul.f32 %v776, %v1063
    %v1804 = vmul.f32 %v777, %v1063
    %v1805 = vmul.f32 %v778, %v1063
    %v1806 = vmul.f32 %v779, %v1063
    %v1807 = vmul.f32 %v780, %v1063
    %v1808 = vmul.f32 %v781, %v1063
    %v1809 = vmul.f32 %v782, %v1063
    %v1810 = vmul.f32 %v783, %v1063
    %v1811 = vmul.f32 %v784, %v1063
    %v1812 = vmul.f32 %v785, %v1063
    %v1813 = vmul.f32 %v786, %v1063
    %v1814 = vmul.f32 %v787, %v1063
    %v1815 = vmul.f32 %v788, %v1063
    %v1816 = vmul.f32 %v789, %v1063
    %v1817 = vmul.f32 %v790, %v1063
    %v1818 = vmul.f32 %v791, %v1063
    %v1819 = vmul.f32 %v792, %v1063
    %v1820 = vmul.f32 %v793, %v1063
    %v1821 = vmul.f32 %v794, %v1063
    %v1822 = vmul.f32 %v795, %v1063
    %v1823 = vmul.f32 %v796, %v1063
    %v1824 = vmul.f32 %v797, %v1063
    %v1825 = vmul.f32 %v798, %v1063
    %v1826 = vmul.f32 %v799, %v1063
    %v1827 = vmul.f32 %v800, %v1063
    %v1828 = vmul.f32 %v801, %v1063
    %v1829 = vmul.f32 %v802, %v1063
    %v1830 = vmul.f32 %v803, %v1063
    %v1831 = vmul.f32 %v804, %v1063
    %v1832 = vmul.f32 %v805, %v1063
    %v1833 = vmul.f32 %v806, %v1063
    %v1834 = vmul.f32 %v807, %v1063
    %v1835 = vmul.f32 %v808, %v1063
    %v1836 = vmul.f32 %v809, %v1063
    %v1837 = vmul.f32 %v810, %v1063
    %v1838 = vmul.f32 %v811, %v1063
    %v1839 = vmul.f32 %v812, %v1063
    %v1840 = vmul.f32 %v813, %v1063
    %v1841 = vmul.f32 %v814, %v1063
    %v1842 = vmul.f32 %v815, %v1063
    %v1843 = vmul.f32 %v816, %v1063
    %v1844 = vmul.f32 %v817, %v1063
    %v1845 = vmul.f32 %v818, %v1063
    %v1846 = vmul.f32 %v819, %v1063
    %v1847 = vmul.f32 %v820, %v1063
    %v1848 = vmul.f32 %v821, %v1063
    %v1849 = vmul.f32 %v822, %v1063
    %v1850 = vmul.f32 %v823, %v1063
    %v1851 = vmul.f32 %v824, %v1063
    %v1852 = vmul.f32 %v825, %v1063
    %v1853 = vmul.f32 %v826, %v1063
    %v1854 = vmul.f32 %v827, %v1063
    %v1855 = vmul.f32 %v828, %v1063
    %v1856 = vmul.f32 %v829, %v1063
    %v1857 = vmul.f32 %v830, %v1063
    %v1858 = vmul.f32 %v831, %v1063
    %v1859 = vmul.f32 %v832, %v1063
    %v1860 = vmul.f32 %v833, %v1063
    %v1861 = vmul.f32 %v834, %v1063
    %v1862 = vmul.f32 %v835, %v1063
    %v1863 = vmul.f32 %v836, %v1063
    %v1864 = vmul.f32 %v837, %v1063
    %v1865 = vmul.f32 %v838, %v1063
    %v1866 = vmul.f32 %v839, %v1063
    %v1867 = vmul.f32 %v840, %v1063
    %v1868 = vmul.f32 %v841, %v1063
    %v1869 = vmul.f32 %v842, %v1063
    %v1870 = vmul.f32 %v843, %v1063
    %v1871 = vmul.f32 %v844, %v1063
    %v1872 = vmul.f32 %v845, %v1063
    %v1873 = vmul.f32 %v846, %v1063
    %v1874 = vmul.f32 %v847, %v1063
    %v1875 = vmul.f32 %v848, %v1063
    %v1876 = vmul.f32 %v849, %v1063
    %v1877 = vmul.f32 %v850, %v1063
    %v1878 = vmul.f32 %v851, %v1063
    %v1879 = vmul.f32 %v852, %v1063
    %v1880 = vmul.f32 %v853, %v1063
    %v1881 = vmul.f32 %v854, %v1063
    %v1882 = vmul.f32 %v855, %v1063
    %v1883 = vmul.f32 %v856, %v1063
    %v1884 = vmul.f32 %v857, %v1063
    %v1885 = vmul.f32 %v858, %v1063
    %v1886 = vmul.f32 %v859, %v1063
    %v1887 = vmul.f32 %v860, %v1063
    %v1888 = vmul.f32 %v861, %v1063
    %v1889 = vmul.f32 %v862, %v1063
    %v1890 = vmul.f32 %v863, %v1063
    %v1891 = vmul.f32 %v864, %v1063
    %v1892 = vmul.f32 %v865, %v1063
    %v1893 = vmul.f32 %v866, %v1063
    %v1894 = vmul.f32 %v867, %v1063
    %v1895 = vmul.f32 %v868, %v1063
    %v1896 = vmul.f32 %v869, %v1063
    %v1897 = vmul.f32 %v870, %v1063
    %v1898 = vmul.f32 %v871, %v1063
    %v1899 = vmul.f32 %v872, %v1063
    %v1900 = vmul.f32 %v873, %v1063
    %v1901 = vmul.f32 %v874, %v1063
    %v1902 = vmul.f32 %v875, %v1063
    %v1903 = vmul.f32 %v876, %v1063
    %v1904 = vmul.f32 %v877, %v1063
    %v1905 = vmul.f32 %v878, %v1063
    %v1906 = vmul.f32 %v879, %v1063
    %v1907 = vmul.f32 %v880, %v1063
    %v1908 = vmul.f32 %v881, %v1063
    %v1909 = vmul.f32 %v882, %v1063
    %v1910 = vmul.f32 %v883, %v1063
    %v1911 = vmul.f32 %v884, %v1063
    %v1912 = vmul.f32 %v885, %v1063
    %v1913 = vmul.f32 %v886, %v1063
    %v1914 = vmul.f32 %v887, %v1063
    %v1915 = vmul.f32 %v888, %v1063
    %v1916 = vmul.f32 %v889, %v1063
    %v1917 = vmul.f32 %v890, %v1063
    %v1918 = vmul.f32 %v891, %v1063
    %v1919 = vmul.f32 %v892, %v1063
    %v1920 = vmul.f32 %v893, %v1063
    %v1921 = vmul.f32 %v894, %v1063
    %v1922 = vmul.f32 %v895, %v1063
    %v1923 = vmul.f32 %v896, %v1063
    %v1924 = vmul.f32 %v897, %v1063
    %v1925 = vmul.f32 %v898, %v1063
    %v1926 = vmul.f32 %v899, %v1063
    %v1927 = vmul.f32 %v900, %v1063
    %v1928 = vmul.f32 %v901, %v1063
    %v1929 = vmul.f32 %v902, %v1063
    %v1930 = vmul.f32 %v903, %v1063
    %v1931 = vmul.f32 %v904, %v1063
    %v1932 = vmul.f32 %v905, %v1063
    %v1933 = vmul.f32 %v906, %v1063
    %v1934 = vmul.f32 %v907, %v1063
    %v1935 = vmul.f32 %v908, %v1063
    %v1936 = vmul.f32 %v909, %v1063
    %v1937 = vmul.f32 %v910, %v1063
    %v1938 = vmul.f32 %v911, %v1063
    %v1939 = vmul.f32 %v912, %v1063
    %v1940 = vmul.f32 %v913, %v1063
    %v1941 = vmul.f32 %v914, %v1063
    %v1942 = vmul.f32 %v915, %v1063
    %v1943 = vmul.f32 %v916, %v1063
    %v1944 = vmul.f32 %v917, %v1063
    %v1945 = vmul.f32 %v918, %v1063
    %v1946 = vmul.f32 %v919, %v1063
    %v1947 = vmul.f32 %v920, %v1063
    %v1948 = vmul.f32 %v921, %v1063
    %v1949 = vmul.f32 %v922, %v1063
    %v1950 = vmul.f32 %v923, %v1063
    %v1951 = vmul.f32 %v924, %v1063
    %v1952 = vmul.f32 %v925, %v1063
    %v1953 = vmul.f32 %v926, %v1063
    %v1954 = vmul.f32 %v927, %v1063
    %v1955 = vmul.f32 %v928, %v1063
    %v1956 = vmul.f32 %v929, %v1063
    %v1957 = vmul.f32 %v930, %v1063
    %v1958 = vmul.f32 %v931, %v1063
    %v1959 = vmul.f32 %v932, %v1063
    %v1960 = vmul.f32 %v933, %v1063
    %v1961 = vmul.f32 %v934, %v1063
    %v1962 = vmul.f32 %v935, %v1063
    %v1963 = vmul.f32 %v936, %v1063
    %v1964 = vmul.f32 %v937, %v1063
    %v1965 = vmul.f32 %v938, %v1063
    %v1966 = vmul.f32 %v939, %v1063
    %v1967 = vmul.f32 %v940, %v1063
    %v1968 = vmul.f32 %v941, %v1063
    %v1969 = vmul.f32 %v942, %v1063
    %v1970 = vmul.f32 %v943, %v1063
    %v1971 = vmul.f32 %v944, %v1063
    %v1972 = vmul.f32 %v945, %v1063
    %v1973 = vmul.f32 %v946, %v1063
    %v1974 = vmul.f32 %v947, %v1063
    %v1975 = vmul.f32 %v948, %v1063
    %v1976 = vmul.f32 %v949, %v1063
    %v1977 = vmul.f32 %v950, %v1063
    %v1978 = vmul.f32 %v951, %v1063
    %v1979 = vmul.f32 %v952, %v1063
    %v1980 = vmul.f32 %v953, %v1063
    %v1981 = vmul.f32 %v954, %v1063
    %v1982 = vmul.f32 %v955, %v1063
    %v1983 = vmul.f32 %v956, %v1063
    %v1984 = vmul.f32 %v957, %v1063
    %v1985 = vmul.f32 %v958, %v1063
    %v1986 = vmul.f32 %v959, %v1063
    %v1987 = vmul.f32 %v960, %v1063
    %v1988 = vmul.f32 %v961, %v1063
    %v1989 = vmul.f32 %v962, %v1063
    %v1990 = vmul.f32 %v963, %v1063
    %v1991 = vmul.f32 %v964, %v1063
    %v1992 = vmul.f32 %v965, %v1063
    %v1993 = vmul.f32 %v966, %v1063
    %v1994 = vmul.f32 %v967, %v1063
    %v1995 = vmul.f32 %v968, %v1063
    %v1996 = vmul.f32 %v969, %v1063
    %v1997 = vmul.f32 %v970, %v1063
    %v1998 = vmul.f32 %v971, %v1063
    %v1999 = vmul.f32 %v972, %v1063
    %v2000 = vmul.f32 %v973, %v1063
    %v2001 = vmul.f32 %v974, %v1063
    %v2002 = vmul.f32 %v975, %v1063
    %v2003 = vmul.f32 %v976, %v1063
    %v2004 = vmul.f32 %v977, %v1063
    %v2005 = vmul.f32 %v978, %v1063
    %v2006 = vmul.f32 %v979, %v1063
    %v2007 = vmul.f32 %v980, %v1063
    %v2008 = vmul.f32 %v981, %v1063
    %v2009 = vmul.f32 %v982, %v1063
    %v2010 = vmul.f32 %v983, %v1063
    %v2011 = vmul.f32 %v984, %v1063
    %v2012 = vmul.f32 %v985, %v1063
    %v2013 = vmul.f32 %v986, %v1063
    %v2014 = vmul.f32 %v987, %v1063
    %v2015 = vmul.f32 %v988, %v1063
    %v2016 = vmul.f32 %v989, %v1063
    %v2017 = vmul.f32 %v990, %v1063
    %v2018 = vmul.f32 %v991, %v1063
    %v2019 = vmul.f32 %v992, %v1063
    %v2020 = vmul.f32 %v993, %v1063
    %v2021 = vmul.f32 %v994, %v1063
    %v2022 = vmul.f32 %v995, %v1063
    %v2023 = vmul.f32 %v996, %v1063
    %v2024 = vmul.f32 %v997, %v1063
    %v2025 = vmul.f32 %v998, %v1063
    %v2026 = vmul.f32 %v999, %v1063
    %v2027 = vmul.f32 %v1000, %v1063
    %v2028 = vmul.f32 %v1001, %v1063
    %v2029 = vmul.f32 %v1002, %v1063
    %v2030 = vmul.f32 %v1003, %v1063
    %v2031 = vmul.f32 %v1004, %v1063
    %v2032 = vmul.f32 %v1005, %v1063
    %v2033 = vmul.f32 %v1006, %v1063
    %v2034 = vmul.f32 %v1007, %v1063
    %v2035 = vmul.f32 %v1008, %v1063
    %v2036 = vmul.f32 %v1009, %v1063
    %v2037 = vmul.f32 %v1010, %v1063
    %v2038 = vmul.f32 %v1011, %v1063
    %v2039 = vmul.f32 %v1012, %v1063
    %v2040 = vmul.f32 %v1013, %v1063
    %v2041 = vmul.f32 %v1014, %v1063
    %v2042 = vmul.f32 %v1015, %v1063
    %v2043 = vmul.f32 %v1016, %v1063
    %v2044 = vmul.f32 %v1017, %v1063
    %v2045 = vmul.f32 %v1018, %v1063
    %v2046 = vmul.f32 %v1019, %v1063
    %v2047 = vmul.f32 %v1020, %v1063
    %v2048 = vmul.f32 %v1021, %v1063
    %v2049 = vmul.f32 %v1022, %v1063
    %v2050 = vmul.f32 %v1023, %v1063
    %v2051 = vmul.f32 %v1024, %v1063
    %v2052 = vmul.f32 %v1025, %v1063
    %v2053 = vmul.f32 %v1026, %v1063
    %v2054 = vmul.f32 %v1027, %v1063
    %v2055 = vmul.f32 %v1028, %v1063
    %v2056 = vmul.f32 %v1029, %v1063
    %v2057 = vmul.f32 %v1030, %v1063
    %v2058 = vmul.f32 %v1031, %v1063
    %v2059 = vmul.f32 %v1032, %v1063
    %v2060 = vmul.f32 %v1033, %v1063
    %v2061 = vmul.f32 %v1034, %v1063
    %v2062 = vmul.f32 %v1035, %v1063
    %v2063 = vmul.f32 %v1036, %v1063
    %v2064 = vmul.f32 %v1037, %v1063
    %v2065 = vmul.f32 %v1038, %v1063
    %v2066 = vmul.f32 %v1039, %v1063
    %v2067 = vmul.f32 %v1040, %v1063
    %v2068 = vmul.f32 %v1041, %v1063
    %v2069 = vmul.f32 %v1042, %v1063
    %v2070 = vmul.f32 %v1043, %v1063
    %v2071 = vmul.f32 %v1044, %v1063
    %v2072 = vmul.f32 %v1045, %v1063
    %v2073 = vmul.f32 %v1046, %v1063
    %v2074 = vmul.f32 %v1047, %v1063
    %v2075 = vmul.f32 %v1048, %v1063
    %v2076 = vmul.f32 %v1049, %v1063
    %v2077 = vmul.f32 %v1050, %v1063
    %v2078 = vmul.f32 %v1051, %v1063
    %v2079 = vmul.f32 %v1052, %v1063
    %v2080 = vmul.f32 %v1053, %v1063
    %v2081 = vmul.f32 %v1054, %v1063
    %v2082 = vmul.f32 %v1055, %v1063
    %v2083 = vmul.f32 %v1056, %v1063
    %v2084 = vmul.f32 %v1057, %v1063
    %v2085 = vmul.f32 %v1058, %v1063
    %v2086 = vmul.f32 %v1059, %v1063
    %v2087 = vmul.f32 %v1060, %v1063
    %v2088 = vstv %s1062
    %v2089 = vadd.f32 %v1064, %v2088
    %v2090 = vadd.f32 %v1065, %v2088
    %v2091 = vadd.f32 %v1066, %v2088
    %v2092 = vadd.f32 %v1067, %v2088
    %v2093 = vadd.f32 %v1068, %v2088
    %v2094 = vadd.f32 %v1069, %v2088
    %v2095 = vadd.f32 %v1070, %v2088
    %v2096 = vadd.f32 %v1071, %v2088
    %v2097 = vadd.f32 %v1072, %v2088
    %v2098 = vadd.f32 %v1073, %v2088
    %v2099 = vadd.f32 %v1074, %v2088
    %v2100 = vadd.f32 %v1075, %v2088
    %v2101 = vadd.f32 %v1076, %v2088
    %v2102 = vadd.f32 %v1077, %v2088
    %v2103 = vadd.f32 %v1078, %v2088
    %v2104 = vadd.f32 %v1079, %v2088
    %v2105 = vadd.f32 %v1080, %v2088
    %v2106 = vadd.f32 %v1081, %v2088
    %v2107 = vadd.f32 %v1082, %v2088
    %v2108 = vadd.f32 %v1083, %v2088
    %v2109 = vadd.f32 %v1084, %v2088
    %v2110 = vadd.f32 %v1085, %v2088
    %v2111 = vadd.f32 %v1086, %v2088
    %v2112 = vadd.f32 %v1087, %v2088
    %v2113 = vadd.f32 %v1088, %v2088
    %v2114 = vadd.f32 %v1089, %v2088
    %v2115 = vadd.f32 %v1090, %v2088
    %v2116 = vadd.f32 %v1091, %v2088
    %v2117 = vadd.f32 %v1092, %v2088
    %v2118 = vadd.f32 %v1093, %v2088
    %v2119 = vadd.f32 %v1094, %v2088
    %v2120 = vadd.f32 %v1095, %v2088
    %v2121 = vadd.f32 %v1096, %v2088
    %v2122 = vadd.f32 %v1097, %v2088
    %v2123 = vadd.f32 %v1098, %v2088
    %v2124 = vadd.f32 %v1099, %v2088
    %v2125 = vadd.f32 %v1100, %v2088
    %v2126 = vadd.f32 %v1101, %v2088
    %v2127 = vadd.f32 %v1102, %v2088
    %v2128 = vadd.f32 %v1103, %v2088
    %v2129 = vadd.f32 %v1104, %v2088
    %v2130 = vadd.f32 %v1105, %v2088
    %v2131 = vadd.f32 %v1106, %v2088
    %v2132 = vadd.f32 %v1107, %v2088
    %v2133 = vadd.f32 %v1108, %v2088
    %v2134 = vadd.f32 %v1109, %v2088
    %v2135 = vadd.f32 %v1110, %v2088
    %v2136 = vadd.f32 %v1111, %v2088
    %v2137 = vadd.f32 %v1112, %v2088
    %v2138 = vadd.f32 %v1113, %v2088
    %v2139 = vadd.f32 %v1114, %v2088
    %v2140 = vadd.f32 %v1115, %v2088
    %v2141 = vadd.f32 %v1116, %v2088
    %v2142 = vadd.f32 %v1117, %v2088
    %v2143 = vadd.f32 %v1118, %v2088
    %v2144 = vadd.f32 %v1119, %v2088
    %v2145 = vadd.f32 %v1120, %v2088
    %v2146 = vadd.f32 %v1121, %v2088
    %v2147 = vadd.f32 %v1122, %v2088
    %v2148 = vadd.f32 %v1123, %v2088
    %v2149 = vadd.f32 %v1124, %v2088
    %v2150 = vadd.f32 %v1125, %v2088
    %v2151 = vadd.f32 %v1126, %v2088
    %v2152 = vadd.f32 %v1127, %v2088
    %v2153 = vadd.f32 %v1128, %v2088
    %v2154 = vadd.f32 %v1129, %v2088
    %v2155 = vadd.f32 %v1130, %v2088
    %v2156 = vadd.f32 %v1131, %v2088
    %v2157 = vadd.f32 %v1132, %v2088
    %v2158 = vadd.f32 %v1133, %v2088
    %v2159 = vadd.f32 %v1134, %v2088
    %v2160 = vadd.f32 %v1135, %v2088
    %v2161 = vadd.f32 %v1136, %v2088
    %v2162 = vadd.f32 %v1137, %v2088
    %v2163 = vadd.f32 %v1138, %v2088
    %v2164 = vadd.f32 %v1139, %v2088
    %v2165 = vadd.f32 %v1140, %v2088
    %v2166 = vadd.f32 %v1141, %v2088
    %v2167 = vadd.f32 %v1142, %v2088
    %v2168 = vadd.f32 %v1143, %v2088
    %v2169 = vadd.f32 %v1144, %v2088
    %v2170 = vadd.f32 %v1145, %v2088
    %v2171 = vadd.f32 %v1146, %v2088
    %v2172 = vadd.f32 %v1147, %v2088
    %v2173 = vadd.f32 %v1148, %v2088
    %v2174 = vadd.f32 %v1149, %v2088
    %v2175 = vadd.f32 %v1150, %v2088
    %v2176 = vadd.f32 %v1151, %v2088
    %v2177 = vadd.f32 %v1152, %v2088
    %v2178 = vadd.f32 %v1153, %v2088
    %v2179 = vadd.f32 %v1154, %v2088
    %v2180 = vadd.f32 %v1155, %v2088
    %v2181 = vadd.f32 %v1156, %v2088
    %v2182 = vadd.f32 %v1157, %v2088
    %v2183 = vadd.f32 %v1158, %v2088
    %v2184 = vadd.f32 %v1159, %v2088
    %v2185 = vadd.f32 %v1160, %v2088
    %v2186 = vadd.f32 %v1161, %v2088
    %v2187 = vadd.f32 %v1162, %v2088
    %v2188 = vadd.f32 %v1163, %v2088
    %v2189 = vadd.f32 %v1164, %v2088
    %v2190 = vadd.f32 %v1165, %v2088
    %v2191 = vadd.f32 %v1166, %v2088
    %v2192 = vadd.f32 %v1167, %v2088
    %v2193 = vadd.f32 %v1168, %v2088
    %v2194 = vadd.f32 %v1169, %v2088
    %v2195 = vadd.f32 %v1170, %v2088
    %v2196 = vadd.f32 %v1171, %v2088
    %v2197 = vadd.f32 %v1172, %v2088
    %v2198 = vadd.f32 %v1173, %v2088
    %v2199 = vadd.f32 %v1174, %v2088
    %v2200 = vadd.f32 %v1175, %v2088
    %v2201 = vadd.f32 %v1176, %v2088
    %v2202 = vadd.f32 %v1177, %v2088
    %v2203 = vadd.f32 %v1178, %v2088
    %v2204 = vadd.f32 %v1179, %v2088
    %v2205 = vadd.f32 %v1180, %v2088
    %v2206 = vadd.f32 %v1181, %v2088
    %v2207 = vadd.f32 %v1182, %v2088
    %v2208 = vadd.f32 %v1183, %v2088
    %v2209 = vadd.f32 %v1184, %v2088
    %v2210 = vadd.f32 %v1185, %v2088
    %v2211 = vadd.f32 %v1186, %v2088
    %v2212 = vadd.f32 %v1187, %v2088
    %v2213 = vadd.f32 %v1188, %v2088
    %v2214 = vadd.f32 %v1189, %v2088
    %v2215 = vadd.f32 %v1190, %v2088
    %v2216 = vadd.f32 %v1191, %v2088
    %v2217 = vadd.f32 %v1192, %v2088
    %v2218 = vadd.f32 %v1193, %v2088
    %v2219 = vadd.f32 %v1194, %v2088
    %v2220 = vadd.f32 %v1195, %v2088
    %v2221 = vadd.f32 %v1196, %v2088
    %v2222 = vadd.f32 %v1197, %v2088
    %v2223 = vadd.f32 %v1198, %v2088
    %v2224 = vadd.f32 %v1199, %v2088
    %v2225 = vadd.f32 %v1200, %v2088
    %v2226 = vadd.f32 %v1201, %v2088
    %v2227 = vadd.f32 %v1202, %v2088
    %v2228 = vadd.f32 %v1203, %v2088
    %v2229 = vadd.f32 %v1204, %v2088
    %v2230 = vadd.f32 %v1205, %v2088
    %v2231 = vadd.f32 %v1206, %v2088
    %v2232 = vadd.f32 %v1207, %v2088
    %v2233 = vadd.f32 %v1208, %v2088
    %v2234 = vadd.f32 %v1209, %v2088
    %v2235 = vadd.f32 %v1210, %v2088
    %v2236 = vadd.f32 %v1211, %v2088
    %v2237 = vadd.f32 %v1212, %v2088
    %v2238 = vadd.f32 %v1213, %v2088
    %v2239 = vadd.f32 %v1214, %v2088
    %v2240 = vadd.f32 %v1215, %v2088
    %v2241 = vadd.f32 %v1216, %v2088
    %v2242 = vadd.f32 %v1217, %v2088
    %v2243 = vadd.f32 %v1218, %v2088
    %v2244 = vadd.f32 %v1219, %v2088
    %v2245 = vadd.f32 %v1220, %v2088
    %v2246 = vadd.f32 %v1221, %v2088
    %v2247 = vadd.f32 %v1222, %v2088
    %v2248 = vadd.f32 %v1223, %v2088
    %v2249 = vadd.f32 %v1224, %v2088
    %v2250 = vadd.f32 %v1225, %v2088
    %v2251 = vadd.f32 %v1226, %v2088
    %v2252 = vadd.f32 %v1227, %v2088
    %v2253 = vadd.f32 %v1228, %v2088
    %v2254 = vadd.f32 %v1229, %v2088
    %v2255 = vadd.f32 %v1230, %v2088
    %v2256 = vadd.f32 %v1231, %v2088
    %v2257 = vadd.f32 %v1232, %v2088
    %v2258 = vadd.f32 %v1233, %v2088
    %v2259 = vadd.f32 %v1234, %v2088
    %v2260 = vadd.f32 %v1235, %v2088
    %v2261 = vadd.f32 %v1236, %v2088
    %v2262 = vadd.f32 %v1237, %v2088
    %v2263 = vadd.f32 %v1238, %v2088
    %v2264 = vadd.f32 %v1239, %v2088
    %v2265 = vadd.f32 %v1240, %v2088
    %v2266 = vadd.f32 %v1241, %v2088
    %v2267 = vadd.f32 %v1242, %v2088
    %v2268 = vadd.f32 %v1243, %v2088
    %v2269 = vadd.f32 %v1244, %v2088
    %v2270 = vadd.f32 %v1245, %v2088
    %v2271 = vadd.f32 %v1246, %v2088
    %v2272 = vadd.f32 %v1247, %v2088
    %v2273 = vadd.f32 %v1248, %v2088
    %v2274 = vadd.f32 %v1249, %v2088
    %v2275 = vadd.f32 %v1250, %v2088
    %v2276 = vadd.f32 %v1251, %v2088
    %v2277 = vadd.f32 %v1252, %v2088
    %v2278 = vadd.f32 %v1253, %v2088
    %v2279 = vadd.f32 %v1254, %v2088
    %v2280 = vadd.f32 %v1255, %v2088
    %v2281 = vadd.f32 %v1256, %v2088
    %v2282 = vadd.f32 %v1257, %v2088
    %v2283 = vadd.f32 %v1258, %v2088
    %v2284 = vadd.f32 %v1259, %v2088
    %v2285 = vadd.f32 %v1260, %v2088
    %v2286 = vadd.f32 %v1261, %v2088
    %v2287 = vadd.f32 %v1262, %v2088
    %v2288 = vadd.f32 %v1263, %v2088
    %v2289 = vadd.f32 %v1264, %v2088
    %v2290 = vadd.f32 %v1265, %v2088
    %v2291 = vadd.f32 %v1266, %v2088
    %v2292 = vadd.f32 %v1267, %v2088
    %v2293 = vadd.f32 %v1268, %v2088
    %v2294 = vadd.f32 %v1269, %v2088
    %v2295 = vadd.f32 %v1270, %v2088
    %v2296 = vadd.f32 %v1271, %v2088
    %v2297 = vadd.f32 %v1272, %v2088
    %v2298 = vadd.f32 %v1273, %v2088
    %v2299 = vadd.f32 %v1274, %v2088
    %v2300 = vadd.f32 %v1275, %v2088
    %v2301 = vadd.f32 %v1276, %v2088
    %v2302 = vadd.f32 %v1277, %v2088
    %v2303 = vadd.f32 %v1278, %v2088
    %v2304 = vadd.f32 %v1279, %v2088
    %v2305 = vadd.f32 %v1280, %v2088
    %v2306 = vadd.f32 %v1281, %v2088
    %v2307 = vadd.f32 %v1282, %v2088
    %v2308 = vadd.f32 %v1283, %v2088
    %v2309 = vadd.f32 %v1284, %v2088
    %v2310 = vadd.f32 %v1285, %v2088
    %v2311 = vadd.f32 %v1286, %v2088
    %v2312 = vadd.f32 %v1287, %v2088
    %v2313 = vadd.f32 %v1288, %v2088
    %v2314 = vadd.f32 %v1289, %v2088
    %v2315 = vadd.f32 %v1290, %v2088
    %v2316 = vadd.f32 %v1291, %v2088
    %v2317 = vadd.f32 %v1292, %v2088
    %v2318 = vadd.f32 %v1293, %v2088
    %v2319 = vadd.f32 %v1294, %v2088
    %v2320 = vadd.f32 %v1295, %v2088
    %v2321 = vadd.f32 %v1296, %v2088
    %v2322 = vadd.f32 %v1297, %v2088
    %v2323 = vadd.f32 %v1298, %v2088
    %v2324 = vadd.f32 %v1299, %v2088
    %v2325 = vadd.f32 %v1300, %v2088
    %v2326 = vadd.f32 %v1301, %v2088
    %v2327 = vadd.f32 %v1302, %v2088
    %v2328 = vadd.f32 %v1303, %v2088
    %v2329 = vadd.f32 %v1304, %v2088
    %v2330 = vadd.f32 %v1305, %v2088
    %v2331 = vadd.f32 %v1306, %v2088
    %v2332 = vadd.f32 %v1307, %v2088
    %v2333 = vadd.f32 %v1308, %v2088
    %v2334 = vadd.f32 %v1309, %v2088
    %v2335 = vadd.f32 %v1310, %v2088
    %v2336 = vadd.f32 %v1311, %v2088
    %v2337 = vadd.f32 %v1312, %v2088
    %v2338 = vadd.f32 %v1313, %v2088
    %v2339 = vadd.f32 %v1314, %v2088
    %v2340 = vadd.f32 %v1315, %v2088
    %v2341 = vadd.f32 %v1316, %v2088
    %v2342 = vadd.f32 %v1317, %v2088
    %v2343 = vadd.f32 %v1318, %v2088
    %v2344 = vadd.f32 %v1319, %v2088
    %v2345 = vadd.f32 %v1320, %v2088
    %v2346 = vadd.f32 %v1321, %v2088
    %v2347 = vadd.f32 %v1322, %v2088
    %v2348 = vadd.f32 %v1323, %v2088
    %v2349 = vadd.f32 %v1324, %v2088
    %v2350 = vadd.f32 %v1325, %v2088
    %v2351 = vadd.f32 %v1326, %v2088
    %v2352 = vadd.f32 %v1327, %v2088
    %v2353 = vadd.f32 %v1328, %v2088
    %v2354 = vadd.f32 %v1329, %v2088
    %v2355 = vadd.f32 %v1330, %v2088
    %v2356 = vadd.f32 %v1331, %v2088
    %v2357 = vadd.f32 %v1332, %v2088
    %v2358 = vadd.f32 %v1333, %v2088
    %v2359 = vadd.f32 %v1334, %v2088
    %v2360 = vadd.f32 %v1335, %v2088
    %v2361 = vadd.f32 %v1336, %v2088
    %v2362 = vadd.f32 %v1337, %v2088
    %v2363 = vadd.f32 %v1338, %v2088
    %v2364 = vadd.f32 %v1339, %v2088
    %v2365 = vadd.f32 %v1340, %v2088
    %v2366 = vadd.f32 %v1341, %v2088
    %v2367 = vadd.f32 %v1342, %v2088
    %v2368 = vadd.f32 %v1343, %v2088
    %v2369 = vadd.f32 %v1344, %v2088
    %v2370 = vadd.f32 %v1345, %v2088
    %v2371 = vadd.f32 %v1346, %v2088
    %v2372 = vadd.f32 %v1347, %v2088
    %v2373 = vadd.f32 %v1348, %v2088
    %v2374 = vadd.f32 %v1349, %v2088
    %v2375 = vadd.f32 %v1350, %v2088
    %v2376 = vadd.f32 %v1351, %v2088
    %v2377 = vadd.f32 %v1352, %v2088
    %v2378 = vadd.f32 %v1353, %v2088
    %v2379 = vadd.f32 %v1354, %v2088
    %v2380 = vadd.f32 %v1355, %v2088
    %v2381 = vadd.f32 %v1356, %v2088
    %v2382 = vadd.f32 %v1357, %v2088
    %v2383 = vadd.f32 %v1358, %v2088
    %v2384 = vadd.f32 %v1359, %v2088
    %v2385 = vadd.f32 %v1360, %v2088
    %v2386 = vadd.f32 %v1361, %v2088
    %v2387 = vadd.f32 %v1362, %v2088
    %v2388 = vadd.f32 %v1363, %v2088
    %v2389 = vadd.f32 %v1364, %v2088
    %v2390 = vadd.f32 %v1365, %v2088
    %v2391 = vadd.f32 %v1366, %v2088
    %v2392 = vadd.f32 %v1367, %v2088
    %v2393 = vadd.f32 %v1368, %v2088
    %v2394 = vadd.f32 %v1369, %v2088
    %v2395 = vadd.f32 %v1370, %v2088
    %v2396 = vadd.f32 %v1371, %v2088
    %v2397 = vadd.f32 %v1372, %v2088
    %v2398 = vadd.f32 %v1373, %v2088
    %v2399 = vadd.f32 %v1374, %v2088
    %v2400 = vadd.f32 %v1375, %v2088
    %v2401 = vadd.f32 %v1376, %v2088
    %v2402 = vadd.f32 %v1377, %v2088
    %v2403 = vadd.f32 %v1378, %v2088
    %v2404 = vadd.f32 %v1379, %v2088
    %v2405 = vadd.f32 %v1380, %v2088
    %v2406 = vadd.f32 %v1381, %v2088
    %v2407 = vadd.f32 %v1382, %v2088
    %v2408 = vadd.f32 %v1383, %v2088
    %v2409 = vadd.f32 %v1384, %v2088
    %v2410 = vadd.f32 %v1385, %v2088
    %v2411 = vadd.f32 %v1386, %v2088
    %v2412 = vadd.f32 %v1387, %v2088
    %v2413 = vadd.f32 %v1388, %v2088
    %v2414 = vadd.f32 %v1389, %v2088
    %v2415 = vadd.f32 %v1390, %v2088
    %v2416 = vadd.f32 %v1391, %v2088
    %v2417 = vadd.f32 %v1392, %v2088
    %v2418 = vadd.f32 %v1393, %v2088
    %v2419 = vadd.f32 %v1394, %v2088
    %v2420 = vadd.f32 %v1395, %v2088
    %v2421 = vadd.f32 %v1396, %v2088
    %v2422 = vadd.f32 %v1397, %v2088
    %v2423 = vadd.f32 %v1398, %v2088
    %v2424 = vadd.f32 %v1399, %v2088
    %v2425 = vadd.f32 %v1400, %v2088
    %v2426 = vadd.f32 %v1401, %v2088
    %v2427 = vadd.f32 %v1402, %v2088
    %v2428 = vadd.f32 %v1403, %v2088
    %v2429 = vadd.f32 %v1404, %v2088
    %v2430 = vadd.f32 %v1405, %v2088
    %v2431 = vadd.f32 %v1406, %v2088
    %v2432 = vadd.f32 %v1407, %v2088
    %v2433 = vadd.f32 %v1408, %v2088
    %v2434 = vadd.f32 %v1409, %v2088
    %v2435 = vadd.f32 %v1410, %v2088
    %v2436 = vadd.f32 %v1411, %v2088
    %v2437 = vadd.f32 %v1412, %v2088
    %v2438 = vadd.f32 %v1413, %v2088
    %v2439 = vadd.f32 %v1414, %v2088
    %v2440 = vadd.f32 %v1415, %v2088
    %v2441 = vadd.f32 %v1416, %v2088
    %v2442 = vadd.f32 %v1417, %v2088
    %v2443 = vadd.f32 %v1418, %v2088
    %v2444 = vadd.f32 %v1419, %v2088
    %v2445 = vadd.f32 %v1420, %v2088
    %v2446 = vadd.f32 %v1421, %v2088
    %v2447 = vadd.f32 %v1422, %v2088
    %v2448 = vadd.f32 %v1423, %v2088
    %v2449 = vadd.f32 %v1424, %v2088
    %v2450 = vadd.f32 %v1425, %v2088
    %v2451 = vadd.f32 %v1426, %v2088
    %v2452 = vadd.f32 %v1427, %v2088
    %v2453 = vadd.f32 %v1428, %v2088
    %v2454 = vadd.f32 %v1429, %v2088
    %v2455 = vadd.f32 %v1430, %v2088
    %v2456 = vadd.f32 %v1431, %v2088
    %v2457 = vadd.f32 %v1432, %v2088
    %v2458 = vadd.f32 %v1433, %v2088
    %v2459 = vadd.f32 %v1434, %v2088
    %v2460 = vadd.f32 %v1435, %v2088
    %v2461 = vadd.f32 %v1436, %v2088
    %v2462 = vadd.f32 %v1437, %v2088
    %v2463 = vadd.f32 %v1438, %v2088
    %v2464 = vadd.f32 %v1439, %v2088
    %v2465 = vadd.f32 %v1440, %v2088
    %v2466 = vadd.f32 %v1441, %v2088
    %v2467 = vadd.f32 %v1442, %v2088
    %v2468 = vadd.f32 %v1443, %v2088
    %v2469 = vadd.f32 %v1444, %v2088
    %v2470 = vadd.f32 %v1445, %v2088
    %v2471 = vadd.f32 %v1446, %v2088
    %v2472 = vadd.f32 %v1447, %v2088
    %v2473 = vadd.f32 %v1448, %v2088
    %v2474 = vadd.f32 %v1449, %v2088
    %v2475 = vadd.f32 %v1450, %v2088
    %v2476 = vadd.f32 %v1451, %v2088
    %v2477 = vadd.f32 %v1452, %v2088
    %v2478 = vadd.f32 %v1453, %v2088
    %v2479 = vadd.f32 %v1454, %v2088
    %v2480 = vadd.f32 %v1455, %v2088
    %v2481 = vadd.f32 %v1456, %v2088
    %v2482 = vadd.f32 %v1457, %v2088
    %v2483 = vadd.f32 %v1458, %v2088
    %v2484 = vadd.f32 %v1459, %v2088
    %v2485 = vadd.f32 %v1460, %v2088
    %v2486 = vadd.f32 %v1461, %v2088
    %v2487 = vadd.f32 %v1462, %v2088
    %v2488 = vadd.f32 %v1463, %v2088
    %v2489 = vadd.f32 %v1464, %v2088
    %v2490 = vadd.f32 %v1465, %v2088
    %v2491 = vadd.f32 %v1466, %v2088
    %v2492 = vadd.f32 %v1467, %v2088
    %v2493 = vadd.f32 %v1468, %v2088
    %v2494 = vadd.f32 %v1469, %v2088
    %v2495 = vadd.f32 %v1470, %v2088
    %v2496 = vadd.f32 %v1471, %v2088
    %v2497 = vadd.f32 %v1472, %v2088
    %v2498 = vadd.f32 %v1473, %v2088
    %v2499 = vadd.f32 %v1474, %v2088
    %v2500 = vadd.f32 %v1475, %v2088
    %v2501 = vadd.f32 %v1476, %v2088
    %v2502 = vadd.f32 %v1477, %v2088
    %v2503 = vadd.f32 %v1478, %v2088
    %v2504 = vadd.f32 %v1479, %v2088
    %v2505 = vadd.f32 %v1480, %v2088
    %v2506 = vadd.f32 %v1481, %v2088
    %v2507 = vadd.f32 %v1482, %v2088
    %v2508 = vadd.f32 %v1483, %v2088
    %v2509 = vadd.f32 %v1484, %v2088
    %v2510 = vadd.f32 %v1485, %v2088
    %v2511 = vadd.f32 %v1486, %v2088
    %v2512 = vadd.f32 %v1487, %v2088
    %v2513 = vadd.f32 %v1488, %v2088
    %v2514 = vadd.f32 %v1489, %v2088
    %v2515 = vadd.f32 %v1490, %v2088
    %v2516 = vadd.f32 %v1491, %v2088
    %v2517 = vadd.f32 %v1492, %v2088
    %v2518 = vadd.f32 %v1493, %v2088
    %v2519 = vadd.f32 %v1494, %v2088
    %v2520 = vadd.f32 %v1495, %v2088
    %v2521 = vadd.f32 %v1496, %v2088
    %v2522 = vadd.f32 %v1497, %v2088
    %v2523 = vadd.f32 %v1498, %v2088
    %v2524 = vadd.f32 %v1499, %v2088
    %v2525 = vadd.f32 %v1500, %v2088
    %v2526 = vadd.f32 %v1501, %v2088
    %v2527 = vadd.f32 %v1502, %v2088
    %v2528 = vadd.f32 %v1503, %v2088
    %v2529 = vadd.f32 %v1504, %v2088
    %v2530 = vadd.f32 %v1505, %v2088
    %v2531 = vadd.f32 %v1506, %v2088
    %v2532 = vadd.f32 %v1507, %v2088
    %v2533 = vadd.f32 %v1508, %v2088
    %v2534 = vadd.f32 %v1509, %v2088
    %v2535 = vadd.f32 %v1510, %v2088
    %v2536 = vadd.f32 %v1511, %v2088
    %v2537 = vadd.f32 %v1512, %v2088
    %v2538 = vadd.f32 %v1513, %v2088
    %v2539 = vadd.f32 %v1514, %v2088
    %v2540 = vadd.f32 %v1515, %v2088
    %v2541 = vadd.f32 %v1516, %v2088
    %v2542 = vadd.f32 %v1517, %v2088
    %v2543 = vadd.f32 %v1518, %v2088
    %v2544 = vadd.f32 %v1519, %v2088
    %v2545 = vadd.f32 %v1520, %v2088
    %v2546 = vadd.f32 %v1521, %v2088
    %v2547 = vadd.f32 %v1522, %v2088
    %v2548 = vadd.f32 %v1523, %v2088
    %v2549 = vadd.f32 %v1524, %v2088
    %v2550 = vadd.f32 %v1525, %v2088
    %v2551 = vadd.f32 %v1526, %v2088
    %v2552 = vadd.f32 %v1527, %v2088
    %v2553 = vadd.f32 %v1528, %v2088
    %v2554 = vadd.f32 %v1529, %v2088
    %v2555 = vadd.f32 %v1530, %v2088
    %v2556 = vadd.f32 %v1531, %v2088
    %v2557 = vadd.f32 %v1532, %v2088
    %v2558 = vadd.f32 %v1533, %v2088
    %v2559 = vadd.f32 %v1534, %v2088
    %v2560 = vadd.f32 %v1535, %v2088
    %v2561 = vadd.f32 %v1536, %v2088
    %v2562 = vadd.f32 %v1537, %v2088
    %v2563 = vadd.f32 %v1538, %v2088
    %v2564 = vadd.f32 %v1539, %v2088
    %v2565 = vadd.f32 %v1540, %v2088
    %v2566 = vadd.f32 %v1541, %v2088
    %v2567 = vadd.f32 %v1542, %v2088
    %v2568 = vadd.f32 %v1543, %v2088
    %v2569 = vadd.f32 %v1544, %v2088
    %v2570 = vadd.f32 %v1545, %v2088
    %v2571 = vadd.f32 %v1546, %v2088
    %v2572 = vadd.f32 %v1547, %v2088
    %v2573 = vadd.f32 %v1548, %v2088
    %v2574 = vadd.f32 %v1549, %v2088
    %v2575 = vadd.f32 %v1550, %v2088
    %v2576 = vadd.f32 %v1551, %v2088
    %v2577 = vadd.f32 %v1552, %v2088
    %v2578 = vadd.f32 %v1553, %v2088
    %v2579 = vadd.f32 %v1554, %v2088
    %v2580 = vadd.f32 %v1555, %v2088
    %v2581 = vadd.f32 %v1556, %v2088
    %v2582 = vadd.f32 %v1557, %v2088
    %v2583 = vadd.f32 %v1558, %v2088
    %v2584 = vadd.f32 %v1559, %v2088
    %v2585 = vadd.f32 %v1560, %v2088
    %v2586 = vadd.f32 %v1561, %v2088
    %v2587 = vadd.f32 %v1562, %v2088
    %v2588 = vadd.f32 %v1563, %v2088
    %v2589 = vadd.f32 %v1564, %v2088
    %v2590 = vadd.f32 %v1565, %v2088
    %v2591 = vadd.f32 %v1566, %v2088
    %v2592 = vadd.f32 %v1567, %v2088
    %v2593 = vadd.f32 %v1568, %v2088
    %v2594 = vadd.f32 %v1569, %v2088
    %v2595 = vadd.f32 %v1570, %v2088
    %v2596 = vadd.f32 %v1571, %v2088
    %v2597 = vadd.f32 %v1572, %v2088
    %v2598 = vadd.f32 %v1573, %v2088
    %v2599 = vadd.f32 %v1574, %v2088
    %v2600 = vadd.f32 %v1575, %v2088
    %v2601 = vadd.f32 %v1576, %v2088
    %v2602 = vadd.f32 %v1577, %v2088
    %v2603 = vadd.f32 %v1578, %v2088
    %v2604 = vadd.f32 %v1579, %v2088
    %v2605 = vadd.f32 %v1580, %v2088
    %v2606 = vadd.f32 %v1581, %v2088
    %v2607 = vadd.f32 %v1582, %v2088
    %v2608 = vadd.f32 %v1583, %v2088
    %v2609 = vadd.f32 %v1584, %v2088
    %v2610 = vadd.f32 %v1585, %v2088
    %v2611 = vadd.f32 %v1586, %v2088
    %v2612 = vadd.f32 %v1587, %v2088
    %v2613 = vadd.f32 %v1588, %v2088
    %v2614 = vadd.f32 %v1589, %v2088
    %v2615 = vadd.f32 %v1590, %v2088
    %v2616 = vadd.f32 %v1591, %v2088
    %v2617 = vadd.f32 %v1592, %v2088
    %v2618 = vadd.f32 %v1593, %v2088
    %v2619 = vadd.f32 %v1594, %v2088
    %v2620 = vadd.f32 %v1595, %v2088
    %v2621 = vadd.f32 %v1596, %v2088
    %v2622 = vadd.f32 %v1597, %v2088
    %v2623 = vadd.f32 %v1598, %v2088
    %v2624 = vadd.f32 %v1599, %v2088
    %v2625 = vadd.f32 %v1600, %v2088
    %v2626 = vadd.f32 %v1601, %v2088
    %v2627 = vadd.f32 %v1602, %v2088
    %v2628 = vadd.f32 %v1603, %v2088
    %v2629 = vadd.f32 %v1604, %v2088
    %v2630 = vadd.f32 %v1605, %v2088
    %v2631 = vadd.f32 %v1606, %v2088
    %v2632 = vadd.f32 %v1607, %v2088
    %v2633 = vadd.f32 %v1608, %v2088
    %v2634 = vadd.f32 %v1609, %v2088
    %v2635 = vadd.f32 %v1610, %v2088
    %v2636 = vadd.f32 %v1611, %v2088
    %v2637 = vadd.f32 %v1612, %v2088
    %v2638 = vadd.f32 %v1613, %v2088
    %v2639 = vadd.f32 %v1614, %v2088
    %v2640 = vadd.f32 %v1615, %v2088
    %v2641 = vadd.f32 %v1616, %v2088
    %v2642 = vadd.f32 %v1617, %v2088
    %v2643 = vadd.f32 %v1618, %v2088
    %v2644 = vadd.f32 %v1619, %v2088
    %v2645 = vadd.f32 %v1620, %v2088
    %v2646 = vadd.f32 %v1621, %v2088
    %v2647 = vadd.f32 %v1622, %v2088
    %v2648 = vadd.f32 %v1623, %v2088
    %v2649 = vadd.f32 %v1624, %v2088
    %v2650 = vadd.f32 %v1625, %v2088
    %v2651 = vadd.f32 %v1626, %v2088
    %v2652 = vadd.f32 %v1627, %v2088
    %v2653 = vadd.f32 %v1628, %v2088
    %v2654 = vadd.f32 %v1629, %v2088
    %v2655 = vadd.f32 %v1630, %v2088
    %v2656 = vadd.f32 %v1631, %v2088
    %v2657 = vadd.f32 %v1632, %v2088
    %v2658 = vadd.f32 %v1633, %v2088
    %v2659 = vadd.f32 %v1634, %v2088
    %v2660 = vadd.f32 %v1635, %v2088
    %v2661 = vadd.f32 %v1636, %v2088
    %v2662 = vadd.f32 %v1637, %v2088
    %v2663 = vadd.f32 %v1638, %v2088
    %v2664 = vadd.f32 %v1639, %v2088
    %v2665 = vadd.f32 %v1640, %v2088
    %v2666 = vadd.f32 %v1641, %v2088
    %v2667 = vadd.f32 %v1642, %v2088
    %v2668 = vadd.f32 %v1643, %v2088
    %v2669 = vadd.f32 %v1644, %v2088
    %v2670 = vadd.f32 %v1645, %v2088
    %v2671 = vadd.f32 %v1646, %v2088
    %v2672 = vadd.f32 %v1647, %v2088
    %v2673 = vadd.f32 %v1648, %v2088
    %v2674 = vadd.f32 %v1649, %v2088
    %v2675 = vadd.f32 %v1650, %v2088
    %v2676 = vadd.f32 %v1651, %v2088
    %v2677 = vadd.f32 %v1652, %v2088
    %v2678 = vadd.f32 %v1653, %v2088
    %v2679 = vadd.f32 %v1654, %v2088
    %v2680 = vadd.f32 %v1655, %v2088
    %v2681 = vadd.f32 %v1656, %v2088
    %v2682 = vadd.f32 %v1657, %v2088
    %v2683 = vadd.f32 %v1658, %v2088
    %v2684 = vadd.f32 %v1659, %v2088
    %v2685 = vadd.f32 %v1660, %v2088
    %v2686 = vadd.f32 %v1661, %v2088
    %v2687 = vadd.f32 %v1662, %v2088
    %v2688 = vadd.f32 %v1663, %v2088
    %v2689 = vadd.f32 %v1664, %v2088
    %v2690 = vadd.f32 %v1665, %v2088
    %v2691 = vadd.f32 %v1666, %v2088
    %v2692 = vadd.f32 %v1667, %v2088
    %v2693 = vadd.f32 %v1668, %v2088
    %v2694 = vadd.f32 %v1669, %v2088
    %v2695 = vadd.f32 %v1670, %v2088
    %v2696 = vadd.f32 %v1671, %v2088
    %v2697 = vadd.f32 %v1672, %v2088
    %v2698 = vadd.f32 %v1673, %v2088
    %v2699 = vadd.f32 %v1674, %v2088
    %v2700 = vadd.f32 %v1675, %v2088
    %v2701 = vadd.f32 %v1676, %v2088
    %v2702 = vadd.f32 %v1677, %v2088
    %v2703 = vadd.f32 %v1678, %v2088
    %v2704 = vadd.f32 %v1679, %v2088
    %v2705 = vadd.f32 %v1680, %v2088
    %v2706 = vadd.f32 %v1681, %v2088
    %v2707 = vadd.f32 %v1682, %v2088
    %v2708 = vadd.f32 %v1683, %v2088
    %v2709 = vadd.f32 %v1684, %v2088
    %v2710 = vadd.f32 %v1685, %v2088
    %v2711 = vadd.f32 %v1686, %v2088
    %v2712 = vadd.f32 %v1687, %v2088
    %v2713 = vadd.f32 %v1688, %v2088
    %v2714 = vadd.f32 %v1689, %v2088
    %v2715 = vadd.f32 %v1690, %v2088
    %v2716 = vadd.f32 %v1691, %v2088
    %v2717 = vadd.f32 %v1692, %v2088
    %v2718 = vadd.f32 %v1693, %v2088
    %v2719 = vadd.f32 %v1694, %v2088
    %v2720 = vadd.f32 %v1695, %v2088
    %v2721 = vadd.f32 %v1696, %v2088
    %v2722 = vadd.f32 %v1697, %v2088
    %v2723 = vadd.f32 %v1698, %v2088
    %v2724 = vadd.f32 %v1699, %v2088
    %v2725 = vadd.f32 %v1700, %v2088
    %v2726 = vadd.f32 %v1701, %v2088
    %v2727 = vadd.f32 %v1702, %v2088
    %v2728 = vadd.f32 %v1703, %v2088
    %v2729 = vadd.f32 %v1704, %v2088
    %v2730 = vadd.f32 %v1705, %v2088
    %v2731 = vadd.f32 %v1706, %v2088
    %v2732 = vadd.f32 %v1707, %v2088
    %v2733 = vadd.f32 %v1708, %v2088
    %v2734 = vadd.f32 %v1709, %v2088
    %v2735 = vadd.f32 %v1710, %v2088
    %v2736 = vadd.f32 %v1711, %v2088
    %v2737 = vadd.f32 %v1712, %v2088
    %v2738 = vadd.f32 %v1713, %v2088
    %v2739 = vadd.f32 %v1714, %v2088
    %v2740 = vadd.f32 %v1715, %v2088
    %v2741 = vadd.f32 %v1716, %v2088
    %v2742 = vadd.f32 %v1717, %v2088
    %v2743 = vadd.f32 %v1718, %v2088
    %v2744 = vadd.f32 %v1719, %v2088
    %v2745 = vadd.f32 %v1720, %v2088
    %v2746 = vadd.f32 %v1721, %v2088
    %v2747 = vadd.f32 %v1722, %v2088
    %v2748 = vadd.f32 %v1723, %v2088
    %v2749 = vadd.f32 %v1724, %v2088
    %v2750 = vadd.f32 %v1725, %v2088
    %v2751 = vadd.f32 %v1726, %v2088
    %v2752 = vadd.f32 %v1727, %v2088
    %v2753 = vadd.f32 %v1728, %v2088
    %v2754 = vadd.f32 %v1729, %v2088
    %v2755 = vadd.f32 %v1730, %v2088
    %v2756 = vadd.f32 %v1731, %v2088
    %v2757 = vadd.f32 %v1732, %v2088
    %v2758 = vadd.f32 %v1733, %v2088
    %v2759 = vadd.f32 %v1734, %v2088
    %v2760 = vadd.f32 %v1735, %v2088
    %v2761 = vadd.f32 %v1736, %v2088
    %v2762 = vadd.f32 %v1737, %v2088
    %v2763 = vadd.f32 %v1738, %v2088
    %v2764 = vadd.f32 %v1739, %v2088
    %v2765 = vadd.f32 %v1740, %v2088
    %v2766 = vadd.f32 %v1741, %v2088
    %v2767 = vadd.f32 %v1742, %v2088
    %v2768 = vadd.f32 %v1743, %v2088
    %v2769 = vadd.f32 %v1744, %v2088
    %v2770 = vadd.f32 %v1745, %v2088
    %v2771 = vadd.f32 %v1746, %v2088
    %v2772 = vadd.f32 %v1747, %v2088
    %v2773 = vadd.f32 %v1748, %v2088
    %v2774 = vadd.f32 %v1749, %v2088
    %v2775 = vadd.f32 %v1750, %v2088
    %v2776 = vadd.f32 %v1751, %v2088
    %v2777 = vadd.f32 %v1752, %v2088
    %v2778 = vadd.f32 %v1753, %v2088
    %v2779 = vadd.f32 %v1754, %v2088
    %v2780 = vadd.f32 %v1755, %v2088
    %v2781 = vadd.f32 %v1756, %v2088
    %v2782 = vadd.f32 %v1757, %v2088
    %v2783 = vadd.f32 %v1758, %v2088
    %v2784 = vadd.f32 %v1759, %v2088
    %v2785 = vadd.f32 %v1760, %v2088
    %v2786 = vadd.f32 %v1761, %v2088
    %v2787 = vadd.f32 %v1762, %v2088
    %v2788 = vadd.f32 %v1763, %v2088
    %v2789 = vadd.f32 %v1764, %v2088
    %v2790 = vadd.f32 %v1765, %v2088
    %v2791 = vadd.f32 %v1766, %v2088
    %v2792 = vadd.f32 %v1767, %v2088
    %v2793 = vadd.f32 %v1768, %v2088
    %v2794 = vadd.f32 %v1769, %v2088
    %v2795 = vadd.f32 %v1770, %v2088
    %v2796 = vadd.f32 %v1771, %v2088
    %v2797 = vadd.f32 %v1772, %v2088
    %v2798 = vadd.f32 %v1773, %v2088
    %v2799 = vadd.f32 %v1774, %v2088
    %v2800 = vadd.f32 %v1775, %v2088
    %v2801 = vadd.f32 %v1776, %v2088
    %v2802 = vadd.f32 %v1777, %v2088
    %v2803 = vadd.f32 %v1778, %v2088
    %v2804 = vadd.f32 %v1779, %v2088
    %v2805 = vadd.f32 %v1780, %v2088
    %v2806 = vadd.f32 %v1781, %v2088
    %v2807 = vadd.f32 %v1782, %v2088
    %v2808 = vadd.f32 %v1783, %v2088
    %v2809 = vadd.f32 %v1784, %v2088
    %v2810 = vadd.f32 %v1785, %v2088
    %v2811 = vadd.f32 %v1786, %v2088
    %v2812 = vadd.f32 %v1787, %v2088
    %v2813 = vadd.f32 %v1788, %v2088
    %v2814 = vadd.f32 %v1789, %v2088
    %v2815 = vadd.f32 %v1790, %v2088
    %v2816 = vadd.f32 %v1791, %v2088
    %v2817 = vadd.f32 %v1792, %v2088
    %v2818 = vadd.f32 %v1793, %v2088
    %v2819 = vadd.f32 %v1794, %v2088
    %v2820 = vadd.f32 %v1795, %v2088
    %v2821 = vadd.f32 %v1796, %v2088
    %v2822 = vadd.f32 %v1797, %v2088
    %v2823 = vadd.f32 %v1798, %v2088
    %v2824 = vadd.f32 %v1799, %v2088
    %v2825 = vadd.f32 %v1800, %v2088
    %v2826 = vadd.f32 %v1801, %v2088
    %v2827 = vadd.f32 %v1802, %v2088
    %v2828 = vadd.f32 %v1803, %v2088
    %v2829 = vadd.f32 %v1804, %v2088
    %v2830 = vadd.f32 %v1805, %v2088
    %v2831 = vadd.f32 %v1806, %v2088
    %v2832 = vadd.f32 %v1807, %v2088
    %v2833 = vadd.f32 %v1808, %v2088
    %v2834 = vadd.f32 %v1809, %v2088
    %v2835 = vadd.f32 %v1810, %v2088
    %v2836 = vadd.f32 %v1811, %v2088
    %v2837 = vadd.f32 %v1812, %v2088
    %v2838 = vadd.f32 %v1813, %v2088
    %v2839 = vadd.f32 %v1814, %v2088
    %v2840 = vadd.f32 %v1815, %v2088
    %v2841 = vadd.f32 %v1816, %v2088
    %v2842 = vadd.f32 %v1817, %v2088
    %v2843 = vadd.f32 %v1818, %v2088
    %v2844 = vadd.f32 %v1819, %v2088
    %v2845 = vadd.f32 %v1820, %v2088
    %v2846 = vadd.f32 %v1821, %v2088
    %v2847 = vadd.f32 %v1822, %v2088
    %v2848 = vadd.f32 %v1823, %v2088
    %v2849 = vadd.f32 %v1824, %v2088
    %v2850 = vadd.f32 %v1825, %v2088
    %v2851 = vadd.f32 %v1826, %v2088
    %v2852 = vadd.f32 %v1827, %v2088
    %v2853 = vadd.f32 %v1828, %v2088
    %v2854 = vadd.f32 %v1829, %v2088
    %v2855 = vadd.f32 %v1830, %v2088
    %v2856 = vadd.f32 %v1831, %v2088
    %v2857 = vadd.f32 %v1832, %v2088
    %v2858 = vadd.f32 %v1833, %v2088
    %v2859 = vadd.f32 %v1834, %v2088
    %v2860 = vadd.f32 %v1835, %v2088
    %v2861 = vadd.f32 %v1836, %v2088
    %v2862 = vadd.f32 %v1837, %v2088
    %v2863 = vadd.f32 %v1838, %v2088
    %v2864 = vadd.f32 %v1839, %v2088
    %v2865 = vadd.f32 %v1840, %v2088
    %v2866 = vadd.f32 %v1841, %v2088
    %v2867 = vadd.f32 %v1842, %v2088
    %v2868 = vadd.f32 %v1843, %v2088
    %v2869 = vadd.f32 %v1844, %v2088
    %v2870 = vadd.f32 %v1845, %v2088
    %v2871 = vadd.f32 %v1846, %v2088
    %v2872 = vadd.f32 %v1847, %v2088
    %v2873 = vadd.f32 %v1848, %v2088
    %v2874 = vadd.f32 %v1849, %v2088
    %v2875 = vadd.f32 %v1850, %v2088
    %v2876 = vadd.f32 %v1851, %v2088
    %v2877 = vadd.f32 %v1852, %v2088
    %v2878 = vadd.f32 %v1853, %v2088
    %v2879 = vadd.f32 %v1854, %v2088
    %v2880 = vadd.f32 %v1855, %v2088
    %v2881 = vadd.f32 %v1856, %v2088
    %v2882 = vadd.f32 %v1857, %v2088
    %v2883 = vadd.f32 %v1858, %v2088
    %v2884 = vadd.f32 %v1859, %v2088
    %v2885 = vadd.f32 %v1860, %v2088
    %v2886 = vadd.f32 %v1861, %v2088
    %v2887 = vadd.f32 %v1862, %v2088
    %v2888 = vadd.f32 %v1863, %v2088
    %v2889 = vadd.f32 %v1864, %v2088
    %v2890 = vadd.f32 %v1865, %v2088
    %v2891 = vadd.f32 %v1866, %v2088
    %v2892 = vadd.f32 %v1867, %v2088
    %v2893 = vadd.f32 %v1868, %v2088
    %v2894 = vadd.f32 %v1869, %v2088
    %v2895 = vadd.f32 %v1870, %v2088
    %v2896 = vadd.f32 %v1871, %v2088
    %v2897 = vadd.f32 %v1872, %v2088
    %v2898 = vadd.f32 %v1873, %v2088
    %v2899 = vadd.f32 %v1874, %v2088
    %v2900 = vadd.f32 %v1875, %v2088
    %v2901 = vadd.f32 %v1876, %v2088
    %v2902 = vadd.f32 %v1877, %v2088
    %v2903 = vadd.f32 %v1878, %v2088
    %v2904 = vadd.f32 %v1879, %v2088
    %v2905 = vadd.f32 %v1880, %v2088
    %v2906 = vadd.f32 %v1881, %v2088
    %v2907 = vadd.f32 %v1882, %v2088
    %v2908 = vadd.f32 %v1883, %v2088
    %v2909 = vadd.f32 %v1884, %v2088
    %v2910 = vadd.f32 %v1885, %v2088
    %v2911 = vadd.f32 %v1886, %v2088
    %v2912 = vadd.f32 %v1887, %v2088
    %v2913 = vadd.f32 %v1888, %v2088
    %v2914 = vadd.f32 %v1889, %v2088
    %v2915 = vadd.f32 %v1890, %v2088
    %v2916 = vadd.f32 %v1891, %v2088
    %v2917 = vadd.f32 %v1892, %v2088
    %v2918 = vadd.f32 %v1893, %v2088
    %v2919 = vadd.f32 %v1894, %v2088
    %v2920 = vadd.f32 %v1895, %v2088
    %v2921 = vadd.f32 %v1896, %v2088
    %v2922 = vadd.f32 %v1897, %v2088
    %v2923 = vadd.f32 %v1898, %v2088
    %v2924 = vadd.f32 %v1899, %v2088
    %v2925 = vadd.f32 %v1900, %v2088
    %v2926 = vadd.f32 %v1901, %v2088
    %v2927 = vadd.f32 %v1902, %v2088
    %v2928 = vadd.f32 %v1903, %v2088
    %v2929 = vadd.f32 %v1904, %v2088
    %v2930 = vadd.f32 %v1905, %v2088
    %v2931 = vadd.f32 %v1906, %v2088
    %v2932 = vadd.f32 %v1907, %v2088
    %v2933 = vadd.f32 %v1908, %v2088
    %v2934 = vadd.f32 %v1909, %v2088
    %v2935 = vadd.f32 %v1910, %v2088
    %v2936 = vadd.f32 %v1911, %v2088
    %v2937 = vadd.f32 %v1912, %v2088
    %v2938 = vadd.f32 %v1913, %v2088
    %v2939 = vadd.f32 %v1914, %v2088
    %v2940 = vadd.f32 %v1915, %v2088
    %v2941 = vadd.f32 %v1916, %v2088
    %v2942 = vadd.f32 %v1917, %v2088
    %v2943 = vadd.f32 %v1918, %v2088
    %v2944 = vadd.f32 %v1919, %v2088
    %v2945 = vadd.f32 %v1920, %v2088
    %v2946 = vadd.f32 %v1921, %v2088
    %v2947 = vadd.f32 %v1922, %v2088
    %v2948 = vadd.f32 %v1923, %v2088
    %v2949 = vadd.f32 %v1924, %v2088
    %v2950 = vadd.f32 %v1925, %v2088
    %v2951 = vadd.f32 %v1926, %v2088
    %v2952 = vadd.f32 %v1927, %v2088
    %v2953 = vadd.f32 %v1928, %v2088
    %v2954 = vadd.f32 %v1929, %v2088
    %v2955 = vadd.f32 %v1930, %v2088
    %v2956 = vadd.f32 %v1931, %v2088
    %v2957 = vadd.f32 %v1932, %v2088
    %v2958 = vadd.f32 %v1933, %v2088
    %v2959 = vadd.f32 %v1934, %v2088
    %v2960 = vadd.f32 %v1935, %v2088
    %v2961 = vadd.f32 %v1936, %v2088
    %v2962 = vadd.f32 %v1937, %v2088
    %v2963 = vadd.f32 %v1938, %v2088
    %v2964 = vadd.f32 %v1939, %v2088
    %v2965 = vadd.f32 %v1940, %v2088
    %v2966 = vadd.f32 %v1941, %v2088
    %v2967 = vadd.f32 %v1942, %v2088
    %v2968 = vadd.f32 %v1943, %v2088
    %v2969 = vadd.f32 %v1944, %v2088
    %v2970 = vadd.f32 %v1945, %v2088
    %v2971 = vadd.f32 %v1946, %v2088
    %v2972 = vadd.f32 %v1947, %v2088
    %v2973 = vadd.f32 %v1948, %v2088
    %v2974 = vadd.f32 %v1949, %v2088
    %v2975 = vadd.f32 %v1950, %v2088
    %v2976 = vadd.f32 %v1951, %v2088
    %v2977 = vadd.f32 %v1952, %v2088
    %v2978 = vadd.f32 %v1953, %v2088
    %v2979 = vadd.f32 %v1954, %v2088
    %v2980 = vadd.f32 %v1955, %v2088
    %v2981 = vadd.f32 %v1956, %v2088
    %v2982 = vadd.f32 %v1957, %v2088
    %v2983 = vadd.f32 %v1958, %v2088
    %v2984 = vadd.f32 %v1959, %v2088
    %v2985 = vadd.f32 %v1960, %v2088
    %v2986 = vadd.f32 %v1961, %v2088
    %v2987 = vadd.f32 %v1962, %v2088
    %v2988 = vadd.f32 %v1963, %v2088
    %v2989 = vadd.f32 %v1964, %v2088
    %v2990 = vadd.f32 %v1965, %v2088
    %v2991 = vadd.f32 %v1966, %v2088
    %v2992 = vadd.f32 %v1967, %v2088
    %v2993 = vadd.f32 %v1968, %v2088
    %v2994 = vadd.f32 %v1969, %v2088
    %v2995 = vadd.f32 %v1970, %v2088
    %v2996 = vadd.f32 %v1971, %v2088
    %v2997 = vadd.f32 %v1972, %v2088
    %v2998 = vadd.f32 %v1973, %v2088
    %v2999 = vadd.f32 %v1974, %v2088
    %v3000 = vadd.f32 %v1975, %v2088
    %v3001 = vadd.f32 %v1976, %v2088
    %v3002 = vadd.f32 %v1977, %v2088
    %v3003 = vadd.f32 %v1978, %v2088
    %v3004 = vadd.f32 %v1979, %v2088
    %v3005 = vadd.f32 %v1980, %v2088
    %v3006 = vadd.f32 %v1981, %v2088
    %v3007 = vadd.f32 %v1982, %v2088
    %v3008 = vadd.f32 %v1983, %v2088
    %v3009 = vadd.f32 %v1984, %v2088
    %v3010 = vadd.f32 %v1985, %v2088
    %v3011 = vadd.f32 %v1986, %v2088
    %v3012 = vadd.f32 %v1987, %v2088
    %v3013 = vadd.f32 %v1988, %v2088
    %v3014 = vadd.f32 %v1989, %v2088
    %v3015 = vadd.f32 %v1990, %v2088
    %v3016 = vadd.f32 %v1991, %v2088
    %v3017 = vadd.f32 %v1992, %v2088
    %v3018 = vadd.f32 %v1993, %v2088
    %v3019 = vadd.f32 %v1994, %v2088
    %v3020 = vadd.f32 %v1995, %v2088
    %v3021 = vadd.f32 %v1996, %v2088
    %v3022 = vadd.f32 %v1997, %v2088
    %v3023 = vadd.f32 %v1998, %v2088
    %v3024 = vadd.f32 %v1999, %v2088
    %v3025 = vadd.f32 %v2000, %v2088
    %v3026 = vadd.f32 %v2001, %v2088
    %v3027 = vadd.f32 %v2002, %v2088
    %v3028 = vadd.f32 %v2003, %v2088
    %v3029 = vadd.f32 %v2004, %v2088
    %v3030 = vadd.f32 %v2005, %v2088
    %v3031 = vadd.f32 %v2006, %v2088
    %v3032 = vadd.f32 %v2007, %v2088
    %v3033 = vadd.f32 %v2008, %v2088
    %v3034 = vadd.f32 %v2009, %v2088
    %v3035 = vadd.f32 %v2010, %v2088
    %v3036 = vadd.f32 %v2011, %v2088
    %v3037 = vadd.f32 %v2012, %v2088
    %v3038 = vadd.f32 %v2013, %v2088
    %v3039 = vadd.f32 %v2014, %v2088
    %v3040 = vadd.f32 %v2015, %v2088
    %v3041 = vadd.f32 %v2016, %v2088
    %v3042 = vadd.f32 %v2017, %v2088
    %v3043 = vadd.f32 %v2018, %v2088
    %v3044 = vadd.f32 %v2019, %v2088
    %v3045 = vadd.f32 %v2020, %v2088
    %v3046 = vadd.f32 %v2021, %v2088
    %v3047 = vadd.f32 %v2022, %v2088
    %v3048 = vadd.f32 %v2023, %v2088
    %v3049 = vadd.f32 %v2024, %v2088
    %v3050 = vadd.f32 %v2025, %v2088
    %v3051 = vadd.f32 %v2026, %v2088
    %v3052 = vadd.f32 %v2027, %v2088
    %v3053 = vadd.f32 %v2028, %v2088
    %v3054 = vadd.f32 %v2029, %v2088
    %v3055 = vadd.f32 %v2030, %v2088
    %v3056 = vadd.f32 %v2031, %v2088
    %v3057 = vadd.f32 %v2032, %v2088
    %v3058 = vadd.f32 %v2033, %v2088
    %v3059 = vadd.f32 %v2034, %v2088
    %v3060 = vadd.f32 %v2035, %v2088
    %v3061 = vadd.f32 %v2036, %v2088
    %v3062 = vadd.f32 %v2037, %v2088
    %v3063 = vadd.f32 %v2038, %v2088
    %v3064 = vadd.f32 %v2039, %v2088
    %v3065 = vadd.f32 %v2040, %v2088
    %v3066 = vadd.f32 %v2041, %v2088
    %v3067 = vadd.f32 %v2042, %v2088
    %v3068 = vadd.f32 %v2043, %v2088
    %v3069 = vadd.f32 %v2044, %v2088
    %v3070 = vadd.f32 %v2045, %v2088
    %v3071 = vadd.f32 %v2046, %v2088
    %v3072 = vadd.f32 %v2047, %v2088
    %v3073 = vadd.f32 %v2048, %v2088
    %v3074 = vadd.f32 %v2049, %v2088
    %v3075 = vadd.f32 %v2050, %v2088
    %v3076 = vadd.f32 %v2051, %v2088
    %v3077 = vadd.f32 %v2052, %v2088
    %v3078 = vadd.f32 %v2053, %v2088
    %v3079 = vadd.f32 %v2054, %v2088
    %v3080 = vadd.f32 %v2055, %v2088
    %v3081 = vadd.f32 %v2056, %v2088
    %v3082 = vadd.f32 %v2057, %v2088
    %v3083 = vadd.f32 %v2058, %v2088
    %v3084 = vadd.f32 %v2059, %v2088
    %v3085 = vadd.f32 %v2060, %v2088
    %v3086 = vadd.f32 %v2061, %v2088
    %v3087 = vadd.f32 %v2062, %v2088
    %v3088 = vadd.f32 %v2063, %v2088
    %v3089 = vadd.f32 %v2064, %v2088
    %v3090 = vadd.f32 %v2065, %v2088
    %v3091 = vadd.f32 %v2066, %v2088
    %v3092 = vadd.f32 %v2067, %v2088
    %v3093 = vadd.f32 %v2068, %v2088
    %v3094 = vadd.f32 %v2069, %v2088
    %v3095 = vadd.f32 %v2070, %v2088
    %v3096 = vadd.f32 %v2071, %v2088
    %v3097 = vadd.f32 %v2072, %v2088
    %v3098 = vadd.f32 %v2073, %v2088
    %v3099 = vadd.f32 %v2074, %v2088
    %v3100 = vadd.f32 %v2075, %v2088
    %v3101 = vadd.f32 %v2076, %v2088
    %v3102 = vadd.f32 %v2077, %v2088
    %v3103 = vadd.f32 %v2078, %v2088
    %v3104 = vadd.f32 %v2079, %v2088
    %v3105 = vadd.f32 %v2080, %v2088
    %v3106 = vadd.f32 %v2081, %v2088
    %v3107 = vadd.f32 %v2082, %v2088
    %v3108 = vadd.f32 %v2083, %v2088
    %v3109 = vadd.f32 %v2084, %v2088
    %v3110 = vadd.f32 %v2085, %v2088
    %v3111 = vadd.f32 %v2086, %v2088
    %v3112 = vadd.f32 %v2087, %v2088
    %3113 = vst [vmem:[#allocation7] sm:$0xff] %v2089
    %3114 = vst [vmem:[#allocation7 + $0x8] sm:$0xff] %v2090
    %3115 = vst [vmem:[#allocation7 + $0x10] sm:$0xff] %v2091
    %3116 = vst [vmem:[#allocation7 + $0x18] sm:$0xff] %v2092
    %3117 = vst [vmem:[#allocation7 + $0x20] sm:$0xff] %v2093
    %3118 = vst [vmem:[#allocation7 + $0x28] sm:$0xff] %v2094
    %3119 = vst [vmem:[#allocation7 + $0x30] sm:$0xff] %v2095
    %3120 = vst [vmem:[#allocation7 + $0x38] sm:$0xff] %v2096
    %3121 = vst [vmem:[#allocation7 + $0x40] sm:$0xff] %v2097
    %3122 = vst [vmem:[#allocation7 + $0x48] sm:$0xff] %v2098
    %3123 = vst [vmem:[#allocation7 + $0x50] sm:$0xff] %v2099
    %3124 = vst [vmem:[#allocation7 + $0x58] sm:$0xff] %v2100
    %3125 = vst [vmem:[#allocation7 + $0x60] sm:$0xff] %v2101
    %3126 = vst [vmem:[#allocation7 + $0x68] sm:$0xff] %v2102
    %3127 = vst [vmem:[#allocation7 + $0x70] sm:$0xff] %v2103
    %3128 = vst [vmem:[#allocation7 + $0x78] sm:$0xff] %v2104
    %3129 = vst [vmem:[#allocation7 + $0x80] sm:$0xff] %v2105
    %3130 = vst [vmem:[#allocation7 + $0x88] sm:$0xff] %v2106
    %3131 = vst [vmem:[#allocation7 + $0x90] sm:$0xff] %v2107
    %3132 = vst [vmem:[#allocation7 + $0x98] sm:$0xff] %v2108
    %3133 = vst [vmem:[#allocation7 + $0xa0] sm:$0xff] %v2109
    %3134 = vst [vmem:[#allocation7 + $0xa8] sm:$0xff] %v2110
    %3135 = vst [vmem:[#allocation7 + $0xb0] sm:$0xff] %v2111
    %3136 = vst [vmem:[#allocation7 + $0xb8] sm:$0xff] %v2112
    %3137 = vst [vmem:[#allocation7 + $0xc0] sm:$0xff] %v2113
    %3138 = vst [vmem:[#allocation7 + $0xc8] sm:$0xff] %v2114
    %3139 = vst [vmem:[#allocation7 + $0xd0] sm:$0xff] %v2115
    %3140 = vst [vmem:[#allocation7 + $0xd8] sm:$0xff] %v2116
    %3141 = vst [vmem:[#allocation7 + $0xe0] sm:$0xff] %v2117
    %3142 = vst [vmem:[#allocation7 + $0xe8] sm:$0xff] %v2118
    %3143 = vst [vmem:[#allocation7 + $0xf0] sm:$0xff] %v2119
    %3144 = vst [vmem:[#allocation7 + $0xf8] sm:$0xff] %v2120
    %3145 = vst [vmem:[#allocation7 + $0x100] sm:$0xff] %v2121
    %3146 = vst [vmem:[#allocation7 + $0x108] sm:$0xff] %v2122
    %3147 = vst [vmem:[#allocation7 + $0x110] sm:$0xff] %v2123
    %3148 = vst [vmem:[#allocation7 + $0x118] sm:$0xff] %v2124
    %3149 = vst [vmem:[#allocation7 + $0x120] sm:$0xff] %v2125
    %3150 = vst [vmem:[#allocation7 + $0x128] sm:$0xff] %v2126
    %3151 = vst [vmem:[#allocation7 + $0x130] sm:$0xff] %v2127
    %3152 = vst [vmem:[#allocation7 + $0x138] sm:$0xff] %v2128
    %3153 = vst [vmem:[#allocation7 + $0x140] sm:$0xff] %v2129
    %3154 = vst [vmem:[#allocation7 + $0x148] sm:$0xff] %v2130
    %3155 = vst [vmem:[#allocation7 + $0x150] sm:$0xff] %v2131
    %3156 = vst [vmem:[#allocation7 + $0x158] sm:$0xff] %v2132
    %3157 = vst [vmem:[#allocation7 + $0x160] sm:$0xff] %v2133
    %3158 = vst [vmem:[#allocation7 + $0x168] sm:$0xff] %v2134
    %3159 = vst [vmem:[#allocation7 + $0x170] sm:$0xff] %v2135
    %3160 = vst [vmem:[#allocation7 + $0x178] sm:$0xff] %v2136
    %3161 = vst [vmem:[#allocation7 + $0x180] sm:$0xff] %v2137
    %3162 = vst [vmem:[#allocation7 + $0x188] sm:$0xff] %v2138
    %3163 = vst [vmem:[#allocation7 + $0x190] sm:$0xff] %v2139
    %3164 = vst [vmem:[#allocation7 + $0x198] sm:$0xff] %v2140
    %3165 = vst [vmem:[#allocation7 + $0x1a0] sm:$0xff] %v2141
    %3166 = vst [vmem:[#allocation7 + $0x1a8] sm:$0xff] %v2142
    %3167 = vst [vmem:[#allocation7 + $0x1b0] sm:$0xff] %v2143
    %3168 = vst [vmem:[#allocation7 + $0x1b8] sm:$0xff] %v2144
    %3169 = vst [vmem:[#allocation7 + $0x1c0] sm:$0xff] %v2145
    %3170 = vst [vmem:[#allocation7 + $0x1c8] sm:$0xff] %v2146
    %3171 = vst [vmem:[#allocation7 + $0x1d0] sm:$0xff] %v2147
    %3172 = vst [vmem:[#allocation7 + $0x1d8] sm:$0xff] %v2148
    %3173 = vst [vmem:[#allocation7 + $0x1e0] sm:$0xff] %v2149
    %3174 = vst [vmem:[#allocation7 + $0x1e8] sm:$0xff] %v2150
    %3175 = vst [vmem:[#allocation7 + $0x1f0] sm:$0xff] %v2151
    %3176 = vst [vmem:[#allocation7 + $0x1f8] sm:$0xff] %v2152
    %3177 = vst [vmem:[#allocation7 + $0x200] sm:$0xff] %v2153
    %3178 = vst [vmem:[#allocation7 + $0x208] sm:$0xff] %v2154
    %3179 = vst [vmem:[#allocation7 + $0x210] sm:$0xff] %v2155
    %3180 = vst [vmem:[#allocation7 + $0x218] sm:$0xff] %v2156
    %3181 = vst [vmem:[#allocation7 + $0x220] sm:$0xff] %v2157
    %3182 = vst [vmem:[#allocation7 + $0x228] sm:$0xff] %v2158
    %3183 = vst [vmem:[#allocation7 + $0x230] sm:$0xff] %v2159
    %3184 = vst [vmem:[#allocation7 + $0x238] sm:$0xff] %v2160
    %3185 = vst [vmem:[#allocation7 + $0x240] sm:$0xff] %v2161
    %3186 = vst [vmem:[#allocation7 + $0x248] sm:$0xff] %v2162
    %3187 = vst [vmem:[#allocation7 + $0x250] sm:$0xff] %v2163
    %3188 = vst [vmem:[#allocation7 + $0x258] sm:$0xff] %v2164
    %3189 = vst [vmem:[#allocation7 + $0x260] sm:$0xff] %v2165
    %3190 = vst [vmem:[#allocation7 + $0x268] sm:$0xff] %v2166
    %3191 = vst [vmem:[#allocation7 + $0x270] sm:$0xff] %v2167
    %3192 = vst [vmem:[#allocation7 + $0x278] sm:$0xff] %v2168
    %3193 = vst [vmem:[#allocation7 + $0x280] sm:$0xff] %v2169
    %3194 = vst [vmem:[#allocation7 + $0x288] sm:$0xff] %v2170
    %3195 = vst [vmem:[#allocation7 + $0x290] sm:$0xff] %v2171
    %3196 = vst [vmem:[#allocation7 + $0x298] sm:$0xff] %v2172
    %3197 = vst [vmem:[#allocation7 + $0x2a0] sm:$0xff] %v2173
    %3198 = vst [vmem:[#allocation7 + $0x2a8] sm:$0xff] %v2174
    %3199 = vst [vmem:[#allocation7 + $0x2b0] sm:$0xff] %v2175
    %3200 = vst [vmem:[#allocation7 + $0x2b8] sm:$0xff] %v2176
    %3201 = vst [vmem:[#allocation7 + $0x2c0] sm:$0xff] %v2177
    %3202 = vst [vmem:[#allocation7 + $0x2c8] sm:$0xff] %v2178
    %3203 = vst [vmem:[#allocation7 + $0x2d0] sm:$0xff] %v2179
    %3204 = vst [vmem:[#allocation7 + $0x2d8] sm:$0xff] %v2180
    %3205 = vst [vmem:[#allocation7 + $0x2e0] sm:$0xff] %v2181
    %3206 = vst [vmem:[#allocation7 + $0x2e8] sm:$0xff] %v2182
    %3207 = vst [vmem:[#allocation7 + $0x2f0] sm:$0xff] %v2183
    %3208 = vst [vmem:[#allocation7 + $0x2f8] sm:$0xff] %v2184
    %3209 = vst [vmem:[#allocation7 + $0x300] sm:$0xff] %v2185
    %3210 = vst [vmem:[#allocation7 + $0x308] sm:$0xff] %v2186
    %3211 = vst [vmem:[#allocation7 + $0x310] sm:$0xff] %v2187
    %3212 = vst [vmem:[#allocation7 + $0x318] sm:$0xff] %v2188
    %3213 = vst [vmem:[#allocation7 + $0x320] sm:$0xff] %v2189
    %3214 = vst [vmem:[#allocation7 + $0x328] sm:$0xff] %v2190
    %3215 = vst [vmem:[#allocation7 + $0x330] sm:$0xff] %v2191
    %3216 = vst [vmem:[#allocation7 + $0x338] sm:$0xff] %v2192
    %3217 = vst [vmem:[#allocation7 + $0x340] sm:$0xff] %v2193
    %3218 = vst [vmem:[#allocation7 + $0x348] sm:$0xff] %v2194
    %3219 = vst [vmem:[#allocation7 + $0x350] sm:$0xff] %v2195
    %3220 = vst [vmem:[#allocation7 + $0x358] sm:$0xff] %v2196
    %3221 = vst [vmem:[#allocation7 + $0x360] sm:$0xff] %v2197
    %3222 = vst [vmem:[#allocation7 + $0x368] sm:$0xff] %v2198
    %3223 = vst [vmem:[#allocation7 + $0x370] sm:$0xff] %v2199
    %3224 = vst [vmem:[#allocation7 + $0x378] sm:$0xff] %v2200
    %3225 = vst [vmem:[#allocation7 + $0x380] sm:$0xff] %v2201
    %3226 = vst [vmem:[#allocation7 + $0x388] sm:$0xff] %v2202
    %3227 = vst [vmem:[#allocation7 + $0x390] sm:$0xff] %v2203
    %3228 = vst [vmem:[#allocation7 + $0x398] sm:$0xff] %v2204
    %3229 = vst [vmem:[#allocation7 + $0x3a0] sm:$0xff] %v2205
    %3230 = vst [vmem:[#allocation7 + $0x3a8] sm:$0xff] %v2206
    %3231 = vst [vmem:[#allocation7 + $0x3b0] sm:$0xff] %v2207
    %3232 = vst [vmem:[#allocation7 + $0x3b8] sm:$0xff] %v2208
    %3233 = vst [vmem:[#allocation7 + $0x3c0] sm:$0xff] %v2209
    %3234 = vst [vmem:[#allocation7 + $0x3c8] sm:$0xff] %v2210
    %3235 = vst [vmem:[#allocation7 + $0x3d0] sm:$0xff] %v2211
    %3236 = vst [vmem:[#allocation7 + $0x3d8] sm:$0xff] %v2212
    %3237 = vst [vmem:[#allocation7 + $0x3e0] sm:$0xff] %v2213
    %3238 = vst [vmem:[#allocation7 + $0x3e8] sm:$0xff] %v2214
    %3239 = vst [vmem:[#allocation7 + $0x3f0] sm:$0xff] %v2215
    %3240 = vst [vmem:[#allocation7 + $0x3f8] sm:$0xff] %v2216
    %3241 = vst [vmem:[#allocation7 + $0x400] sm:$0xff] %v2217
    %3242 = vst [vmem:[#allocation7 + $0x408] sm:$0xff] %v2218
    %3243 = vst [vmem:[#allocation7 + $0x410] sm:$0xff] %v2219
    %3244 = vst [vmem:[#allocation7 + $0x418] sm:$0xff] %v2220
    %3245 = vst [vmem:[#allocation7 + $0x420] sm:$0xff] %v2221
    %3246 = vst [vmem:[#allocation7 + $0x428] sm:$0xff] %v2222
    %3247 = vst [vmem:[#allocation7 + $0x430] sm:$0xff] %v2223
    %3248 = vst [vmem:[#allocation7 + $0x438] sm:$0xff] %v2224
    %3249 = vst [vmem:[#allocation7 + $0x440] sm:$0xff] %v2225
    %3250 = vst [vmem:[#allocation7 + $0x448] sm:$0xff] %v2226
    %3251 = vst [vmem:[#allocation7 + $0x450] sm:$0xff] %v2227
    %3252 = vst [vmem:[#allocation7 + $0x458] sm:$0xff] %v2228
    %3253 = vst [vmem:[#allocation7 + $0x460] sm:$0xff] %v2229
    %3254 = vst [vmem:[#allocation7 + $0x468] sm:$0xff] %v2230
    %3255 = vst [vmem:[#allocation7 + $0x470] sm:$0xff] %v2231
    %3256 = vst [vmem:[#allocation7 + $0x478] sm:$0xff] %v2232
    %3257 = vst [vmem:[#allocation7 + $0x480] sm:$0xff] %v2233
    %3258 = vst [vmem:[#allocation7 + $0x488] sm:$0xff] %v2234
    %3259 = vst [vmem:[#allocation7 + $0x490] sm:$0xff] %v2235
    %3260 = vst [vmem:[#allocation7 + $0x498] sm:$0xff] %v2236
    %3261 = vst [vmem:[#allocation7 + $0x4a0] sm:$0xff] %v2237
    %3262 = vst [vmem:[#allocation7 + $0x4a8] sm:$0xff] %v2238
    %3263 = vst [vmem:[#allocation7 + $0x4b0] sm:$0xff] %v2239
    %3264 = vst [vmem:[#allocation7 + $0x4b8] sm:$0xff] %v2240
    %3265 = vst [vmem:[#allocation7 + $0x4c0] sm:$0xff] %v2241
    %3266 = vst [vmem:[#allocation7 + $0x4c8] sm:$0xff] %v2242
    %3267 = vst [vmem:[#allocation7 + $0x4d0] sm:$0xff] %v2243
    %3268 = vst [vmem:[#allocation7 + $0x4d8] sm:$0xff] %v2244
    %3269 = vst [vmem:[#allocation7 + $0x4e0] sm:$0xff] %v2245
    %3270 = vst [vmem:[#allocation7 + $0x4e8] sm:$0xff] %v2246
    %3271 = vst [vmem:[#allocation7 + $0x4f0] sm:$0xff] %v2247
    %3272 = vst [vmem:[#allocation7 + $0x4f8] sm:$0xff] %v2248
    %3273 = vst [vmem:[#allocation7 + $0x500] sm:$0xff] %v2249
    %3274 = vst [vmem:[#allocation7 + $0x508] sm:$0xff] %v2250
    %3275 = vst [vmem:[#allocation7 + $0x510] sm:$0xff] %v2251
    %3276 = vst [vmem:[#allocation7 + $0x518] sm:$0xff] %v2252
    %3277 = vst [vmem:[#allocation7 + $0x520] sm:$0xff] %v2253
    %3278 = vst [vmem:[#allocation7 + $0x528] sm:$0xff] %v2254
    %3279 = vst [vmem:[#allocation7 + $0x530] sm:$0xff] %v2255
    %3280 = vst [vmem:[#allocation7 + $0x538] sm:$0xff] %v2256
    %3281 = vst [vmem:[#allocation7 + $0x540] sm:$0xff] %v2257
    %3282 = vst [vmem:[#allocation7 + $0x548] sm:$0xff] %v2258
    %3283 = vst [vmem:[#allocation7 + $0x550] sm:$0xff] %v2259
    %3284 = vst [vmem:[#allocation7 + $0x558] sm:$0xff] %v2260
    %3285 = vst [vmem:[#allocation7 + $0x560] sm:$0xff] %v2261
    %3286 = vst [vmem:[#allocation7 + $0x568] sm:$0xff] %v2262
    %3287 = vst [vmem:[#allocation7 + $0x570] sm:$0xff] %v2263
    %3288 = vst [vmem:[#allocation7 + $0x578] sm:$0xff] %v2264
    %3289 = vst [vmem:[#allocation7 + $0x580] sm:$0xff] %v2265
    %3290 = vst [vmem:[#allocation7 + $0x588] sm:$0xff] %v2266
    %3291 = vst [vmem:[#allocation7 + $0x590] sm:$0xff] %v2267
    %3292 = vst [vmem:[#allocation7 + $0x598] sm:$0xff] %v2268
    %3293 = vst [vmem:[#allocation7 + $0x5a0] sm:$0xff] %v2269
    %3294 = vst [vmem:[#allocation7 + $0x5a8] sm:$0xff] %v2270
    %3295 = vst [vmem:[#allocation7 + $0x5b0] sm:$0xff] %v2271
    %3296 = vst [vmem:[#allocation7 + $0x5b8] sm:$0xff] %v2272
    %3297 = vst [vmem:[#allocation7 + $0x5c0] sm:$0xff] %v2273
    %3298 = vst [vmem:[#allocation7 + $0x5c8] sm:$0xff] %v2274
    %3299 = vst [vmem:[#allocation7 + $0x5d0] sm:$0xff] %v2275
    %3300 = vst [vmem:[#allocation7 + $0x5d8] sm:$0xff] %v2276
    %3301 = vst [vmem:[#allocation7 + $0x5e0] sm:$0xff] %v2277
    %3302 = vst [vmem:[#allocation7 + $0x5e8] sm:$0xff] %v2278
    %3303 = vst [vmem:[#allocation7 + $0x5f0] sm:$0xff] %v2279
    %3304 = vst [vmem:[#allocation7 + $0x5f8] sm:$0xff] %v2280
    %3305 = vst [vmem:[#allocation7 + $0x600] sm:$0xff] %v2281
    %3306 = vst [vmem:[#allocation7 + $0x608] sm:$0xff] %v2282
    %3307 = vst [vmem:[#allocation7 + $0x610] sm:$0xff] %v2283
    %3308 = vst [vmem:[#allocation7 + $0x618] sm:$0xff] %v2284
    %3309 = vst [vmem:[#allocation7 + $0x620] sm:$0xff] %v2285
    %3310 = vst [vmem:[#allocation7 + $0x628] sm:$0xff] %v2286
    %3311 = vst [vmem:[#allocation7 + $0x630] sm:$0xff] %v2287
    %3312 = vst [vmem:[#allocation7 + $0x638] sm:$0xff] %v2288
    %3313 = vst [vmem:[#allocation7 + $0x640] sm:$0xff] %v2289
    %3314 = vst [vmem:[#allocation7 + $0x648] sm:$0xff] %v2290
    %3315 = vst [vmem:[#allocation7 + $0x650] sm:$0xff] %v2291
    %3316 = vst [vmem:[#allocation7 + $0x658] sm:$0xff] %v2292
    %3317 = vst [vmem:[#allocation7 + $0x660] sm:$0xff] %v2293
    %3318 = vst [vmem:[#allocation7 + $0x668] sm:$0xff] %v2294
    %3319 = vst [vmem:[#allocation7 + $0x670] sm:$0xff] %v2295
    %3320 = vst [vmem:[#allocation7 + $0x678] sm:$0xff] %v2296
    %3321 = vst [vmem:[#allocation7 + $0x680] sm:$0xff] %v2297
    %3322 = vst [vmem:[#allocation7 + $0x688] sm:$0xff] %v2298
    %3323 = vst [vmem:[#allocation7 + $0x690] sm:$0xff] %v2299
    %3324 = vst [vmem:[#allocation7 + $0x698] sm:$0xff] %v2300
    %3325 = vst [vmem:[#allocation7 + $0x6a0] sm:$0xff] %v2301
    %3326 = vst [vmem:[#allocation7 + $0x6a8] sm:$0xff] %v2302
    %3327 = vst [vmem:[#allocation7 + $0x6b0] sm:$0xff] %v2303
    %3328 = vst [vmem:[#allocation7 + $0x6b8] sm:$0xff] %v2304
    %3329 = vst [vmem:[#allocation7 + $0x6c0] sm:$0xff] %v2305
    %3330 = vst [vmem:[#allocation7 + $0x6c8] sm:$0xff] %v2306
    %3331 = vst [vmem:[#allocation7 + $0x6d0] sm:$0xff] %v2307
    %3332 = vst [vmem:[#allocation7 + $0x6d8] sm:$0xff] %v2308
    %3333 = vst [vmem:[#allocation7 + $0x6e0] sm:$0xff] %v2309
    %3334 = vst [vmem:[#allocation7 + $0x6e8] sm:$0xff] %v2310
    %3335 = vst [vmem:[#allocation7 + $0x6f0] sm:$0xff] %v2311
    %3336 = vst [vmem:[#allocation7 + $0x6f8] sm:$0xff] %v2312
    %3337 = vst [vmem:[#allocation7 + $0x700] sm:$0xff] %v2313
    %3338 = vst [vmem:[#allocation7 + $0x708] sm:$0xff] %v2314
    %3339 = vst [vmem:[#allocation7 + $0x710] sm:$0xff] %v2315
    %3340 = vst [vmem:[#allocation7 + $0x718] sm:$0xff] %v2316
    %3341 = vst [vmem:[#allocation7 + $0x720] sm:$0xff] %v2317
    %3342 = vst [vmem:[#allocation7 + $0x728] sm:$0xff] %v2318
    %3343 = vst [vmem:[#allocation7 + $0x730] sm:$0xff] %v2319
    %3344 = vst [vmem:[#allocation7 + $0x738] sm:$0xff] %v2320
    %3345 = vst [vmem:[#allocation7 + $0x740] sm:$0xff] %v2321
    %3346 = vst [vmem:[#allocation7 + $0x748] sm:$0xff] %v2322
    %3347 = vst [vmem:[#allocation7 + $0x750] sm:$0xff] %v2323
    %3348 = vst [vmem:[#allocation7 + $0x758] sm:$0xff] %v2324
    %3349 = vst [vmem:[#allocation7 + $0x760] sm:$0xff] %v2325
    %3350 = vst [vmem:[#allocation7 + $0x768] sm:$0xff] %v2326
    %3351 = vst [vmem:[#allocation7 + $0x770] sm:$0xff] %v2327
    %3352 = vst [vmem:[#allocation7 + $0x778] sm:$0xff] %v2328
    %3353 = vst [vmem:[#allocation7 + $0x780] sm:$0xff] %v2329
    %3354 = vst [vmem:[#allocation7 + $0x788] sm:$0xff] %v2330
    %3355 = vst [vmem:[#allocation7 + $0x790] sm:$0xff] %v2331
    %3356 = vst [vmem:[#allocation7 + $0x798] sm:$0xff] %v2332
    %3357 = vst [vmem:[#allocation7 + $0x7a0] sm:$0xff] %v2333
    %3358 = vst [vmem:[#allocation7 + $0x7a8] sm:$0xff] %v2334
    %3359 = vst [vmem:[#allocation7 + $0x7b0] sm:$0xff] %v2335
    %3360 = vst [vmem:[#allocation7 + $0x7b8] sm:$0xff] %v2336
    %3361 = vst [vmem:[#allocation7 + $0x7c0] sm:$0xff] %v2337
    %3362 = vst [vmem:[#allocation7 + $0x7c8] sm:$0xff] %v2338
    %3363 = vst [vmem:[#allocation7 + $0x7d0] sm:$0xff] %v2339
    %3364 = vst [vmem:[#allocation7 + $0x7d8] sm:$0xff] %v2340
    %3365 = vst [vmem:[#allocation7 + $0x7e0] sm:$0xff] %v2341
    %3366 = vst [vmem:[#allocation7 + $0x7e8] sm:$0xff] %v2342
    %3367 = vst [vmem:[#allocation7 + $0x7f0] sm:$0xff] %v2343
    %3368 = vst [vmem:[#allocation7 + $0x7f8] sm:$0xff] %v2344
    %3369 = vst [vmem:[#allocation7 + $0x800] sm:$0xff] %v2345
    %3370 = vst [vmem:[#allocation7 + $0x808] sm:$0xff] %v2346
    %3371 = vst [vmem:[#allocation7 + $0x810] sm:$0xff] %v2347
    %3372 = vst [vmem:[#allocation7 + $0x818] sm:$0xff] %v2348
    %3373 = vst [vmem:[#allocation7 + $0x820] sm:$0xff] %v2349
    %3374 = vst [vmem:[#allocation7 + $0x828] sm:$0xff] %v2350
    %3375 = vst [vmem:[#allocation7 + $0x830] sm:$0xff] %v2351
    %3376 = vst [vmem:[#allocation7 + $0x838] sm:$0xff] %v2352
    %3377 = vst [vmem:[#allocation7 + $0x840] sm:$0xff] %v2353
    %3378 = vst [vmem:[#allocation7 + $0x848] sm:$0xff] %v2354
    %3379 = vst [vmem:[#allocation7 + $0x850] sm:$0xff] %v2355
    %3380 = vst [vmem:[#allocation7 + $0x858] sm:$0xff] %v2356
    %3381 = vst [vmem:[#allocation7 + $0x860] sm:$0xff] %v2357
    %3382 = vst [vmem:[#allocation7 + $0x868] sm:$0xff] %v2358
    %3383 = vst [vmem:[#allocation7 + $0x870] sm:$0xff] %v2359
    %3384 = vst [vmem:[#allocation7 + $0x878] sm:$0xff] %v2360
    %3385 = vst [vmem:[#allocation7 + $0x880] sm:$0xff] %v2361
    %3386 = vst [vmem:[#allocation7 + $0x888] sm:$0xff] %v2362
    %3387 = vst [vmem:[#allocation7 + $0x890] sm:$0xff] %v2363
    %3388 = vst [vmem:[#allocation7 + $0x898] sm:$0xff] %v2364
    %3389 = vst [vmem:[#allocation7 + $0x8a0] sm:$0xff] %v2365
    %3390 = vst [vmem:[#allocation7 + $0x8a8] sm:$0xff] %v2366
    %3391 = vst [vmem:[#allocation7 + $0x8b0] sm:$0xff] %v2367
    %3392 = vst [vmem:[#allocation7 + $0x8b8] sm:$0xff] %v2368
    %3393 = vst [vmem:[#allocation7 + $0x8c0] sm:$0xff] %v2369
    %3394 = vst [vmem:[#allocation7 + $0x8c8] sm:$0xff] %v2370
    %3395 = vst [vmem:[#allocation7 + $0x8d0] sm:$0xff] %v2371
    %3396 = vst [vmem:[#allocation7 + $0x8d8] sm:$0xff] %v2372
    %3397 = vst [vmem:[#allocation7 + $0x8e0] sm:$0xff] %v2373
    %3398 = vst [vmem:[#allocation7 + $0x8e8] sm:$0xff] %v2374
    %3399 = vst [vmem:[#allocation7 + $0x8f0] sm:$0xff] %v2375
    %3400 = vst [vmem:[#allocation7 + $0x8f8] sm:$0xff] %v2376
    %3401 = vst [vmem:[#allocation7 + $0x900] sm:$0xff] %v2377
    %3402 = vst [vmem:[#allocation7 + $0x908] sm:$0xff] %v2378
    %3403 = vst [vmem:[#allocation7 + $0x910] sm:$0xff] %v2379
    %3404 = vst [vmem:[#allocation7 + $0x918] sm:$0xff] %v2380
    %3405 = vst [vmem:[#allocation7 + $0x920] sm:$0xff] %v2381
    %3406 = vst [vmem:[#allocation7 + $0x928] sm:$0xff] %v2382
    %3407 = vst [vmem:[#allocation7 + $0x930] sm:$0xff] %v2383
    %3408 = vst [vmem:[#allocation7 + $0x938] sm:$0xff] %v2384
    %3409 = vst [vmem:[#allocation7 + $0x940] sm:$0xff] %v2385
    %3410 = vst [vmem:[#allocation7 + $0x948] sm:$0xff] %v2386
    %3411 = vst [vmem:[#allocation7 + $0x950] sm:$0xff] %v2387
    %3412 = vst [vmem:[#allocation7 + $0x958] sm:$0xff] %v2388
    %3413 = vst [vmem:[#allocation7 + $0x960] sm:$0xff] %v2389
    %3414 = vst [vmem:[#allocation7 + $0x968] sm:$0xff] %v2390
    %3415 = vst [vmem:[#allocation7 + $0x970] sm:$0xff] %v2391
    %3416 = vst [vmem:[#allocation7 + $0x978] sm:$0xff] %v2392
    %3417 = vst [vmem:[#allocation7 + $0x980] sm:$0xff] %v2393
    %3418 = vst [vmem:[#allocation7 + $0x988] sm:$0xff] %v2394
    %3419 = vst [vmem:[#allocation7 + $0x990] sm:$0xff] %v2395
    %3420 = vst [vmem:[#allocation7 + $0x998] sm:$0xff] %v2396
    %3421 = vst [vmem:[#allocation7 + $0x9a0] sm:$0xff] %v2397
    %3422 = vst [vmem:[#allocation7 + $0x9a8] sm:$0xff] %v2398
    %3423 = vst [vmem:[#allocation7 + $0x9b0] sm:$0xff] %v2399
    %3424 = vst [vmem:[#allocation7 + $0x9b8] sm:$0xff] %v2400
    %3425 = vst [vmem:[#allocation7 + $0x9c0] sm:$0xff] %v2401
    %3426 = vst [vmem:[#allocation7 + $0x9c8] sm:$0xff] %v2402
    %3427 = vst [vmem:[#allocation7 + $0x9d0] sm:$0xff] %v2403
    %3428 = vst [vmem:[#allocation7 + $0x9d8] sm:$0xff] %v2404
    %3429 = vst [vmem:[#allocation7 + $0x9e0] sm:$0xff] %v2405
    %3430 = vst [vmem:[#allocation7 + $0x9e8] sm:$0xff] %v2406
    %3431 = vst [vmem:[#allocation7 + $0x9f0] sm:$0xff] %v2407
    %3432 = vst [vmem:[#allocation7 + $0x9f8] sm:$0xff] %v2408
    %3433 = vst [vmem:[#allocation7 + $0xa00] sm:$0xff] %v2409
    %3434 = vst [vmem:[#allocation7 + $0xa08] sm:$0xff] %v2410
    %3435 = vst [vmem:[#allocation7 + $0xa10] sm:$0xff] %v2411
    %3436 = vst [vmem:[#allocation7 + $0xa18] sm:$0xff] %v2412
    %3437 = vst [vmem:[#allocation7 + $0xa20] sm:$0xff] %v2413
    %3438 = vst [vmem:[#allocation7 + $0xa28] sm:$0xff] %v2414
    %3439 = vst [vmem:[#allocation7 + $0xa30] sm:$0xff] %v2415
    %3440 = vst [vmem:[#allocation7 + $0xa38] sm:$0xff] %v2416
    %3441 = vst [vmem:[#allocation7 + $0xa40] sm:$0xff] %v2417
    %3442 = vst [vmem:[#allocation7 + $0xa48] sm:$0xff] %v2418
    %3443 = vst [vmem:[#allocation7 + $0xa50] sm:$0xff] %v2419
    %3444 = vst [vmem:[#allocation7 + $0xa58] sm:$0xff] %v2420
    %3445 = vst [vmem:[#allocation7 + $0xa60] sm:$0xff] %v2421
    %3446 = vst [vmem:[#allocation7 + $0xa68] sm:$0xff] %v2422
    %3447 = vst [vmem:[#allocation7 + $0xa70] sm:$0xff] %v2423
    %3448 = vst [vmem:[#allocation7 + $0xa78] sm:$0xff] %v2424
    %3449 = vst [vmem:[#allocation7 + $0xa80] sm:$0xff] %v2425
    %3450 = vst [vmem:[#allocation7 + $0xa88] sm:$0xff] %v2426
    %3451 = vst [vmem:[#allocation7 + $0xa90] sm:$0xff] %v2427
    %3452 = vst [vmem:[#allocation7 + $0xa98] sm:$0xff] %v2428
    %3453 = vst [vmem:[#allocation7 + $0xaa0] sm:$0xff] %v2429
    %3454 = vst [vmem:[#allocation7 + $0xaa8] sm:$0xff] %v2430
    %3455 = vst [vmem:[#allocation7 + $0xab0] sm:$0xff] %v2431
    %3456 = vst [vmem:[#allocation7 + $0xab8] sm:$0xff] %v2432
    %3457 = vst [vmem:[#allocation7 + $0xac0] sm:$0xff] %v2433
    %3458 = vst [vmem:[#allocation7 + $0xac8] sm:$0xff] %v2434
    %3459 = vst [vmem:[#allocation7 + $0xad0] sm:$0xff] %v2435
    %3460 = vst [vmem:[#allocation7 + $0xad8] sm:$0xff] %v2436
    %3461 = vst [vmem:[#allocation7 + $0xae0] sm:$0xff] %v2437
    %3462 = vst [vmem:[#allocation7 + $0xae8] sm:$0xff] %v2438
    %3463 = vst [vmem:[#allocation7 + $0xaf0] sm:$0xff] %v2439
    %3464 = vst [vmem:[#allocation7 + $0xaf8] sm:$0xff] %v2440
    %3465 = vst [vmem:[#allocation7 + $0xb00] sm:$0xff] %v2441
    %3466 = vst [vmem:[#allocation7 + $0xb08] sm:$0xff] %v2442
    %3467 = vst [vmem:[#allocation7 + $0xb10] sm:$0xff] %v2443
    %3468 = vst [vmem:[#allocation7 + $0xb18] sm:$0xff] %v2444
    %3469 = vst [vmem:[#allocation7 + $0xb20] sm:$0xff] %v2445
    %3470 = vst [vmem:[#allocation7 + $0xb28] sm:$0xff] %v2446
    %3471 = vst [vmem:[#allocation7 + $0xb30] sm:$0xff] %v2447
    %3472 = vst [vmem:[#allocation7 + $0xb38] sm:$0xff] %v2448
    %3473 = vst [vmem:[#allocation7 + $0xb40] sm:$0xff] %v2449
    %3474 = vst [vmem:[#allocation7 + $0xb48] sm:$0xff] %v2450
    %3475 = vst [vmem:[#allocation7 + $0xb50] sm:$0xff] %v2451
    %3476 = vst [vmem:[#allocation7 + $0xb58] sm:$0xff] %v2452
    %3477 = vst [vmem:[#allocation7 + $0xb60] sm:$0xff] %v2453
    %3478 = vst [vmem:[#allocation7 + $0xb68] sm:$0xff] %v2454
    %3479 = vst [vmem:[#allocation7 + $0xb70] sm:$0xff] %v2455
    %3480 = vst [vmem:[#allocation7 + $0xb78] sm:$0xff] %v2456
    %3481 = vst [vmem:[#allocation7 + $0xb80] sm:$0xff] %v2457
    %3482 = vst [vmem:[#allocation7 + $0xb88] sm:$0xff] %v2458
    %3483 = vst [vmem:[#allocation7 + $0xb90] sm:$0xff] %v2459
    %3484 = vst [vmem:[#allocation7 + $0xb98] sm:$0xff] %v2460
    %3485 = vst [vmem:[#allocation7 + $0xba0] sm:$0xff] %v2461
    %3486 = vst [vmem:[#allocation7 + $0xba8] sm:$0xff] %v2462
    %3487 = vst [vmem:[#allocation7 + $0xbb0] sm:$0xff] %v2463
    %3488 = vst [vmem:[#allocation7 + $0xbb8] sm:$0xff] %v2464
    %3489 = vst [vmem:[#allocation7 + $0xbc0] sm:$0xff] %v2465
    %3490 = vst [vmem:[#allocation7 + $0xbc8] sm:$0xff] %v2466
    %3491 = vst [vmem:[#allocation7 + $0xbd0] sm:$0xff] %v2467
    %3492 = vst [vmem:[#allocation7 + $0xbd8] sm:$0xff] %v2468
    %3493 = vst [vmem:[#allocation7 + $0xbe0] sm:$0xff] %v2469
    %3494 = vst [vmem:[#allocation7 + $0xbe8] sm:$0xff] %v2470
    %3495 = vst [vmem:[#allocation7 + $0xbf0] sm:$0xff] %v2471
    %3496 = vst [vmem:[#allocation7 + $0xbf8] sm:$0xff] %v2472
    %3497 = vst [vmem:[#allocation7 + $0xc00] sm:$0xff] %v2473
    %3498 = vst [vmem:[#allocation7 + $0xc08] sm:$0xff] %v2474
    %3499 = vst [vmem:[#allocation7 + $0xc10] sm:$0xff] %v2475
    %3500 = vst [vmem:[#allocation7 + $0xc18] sm:$0xff] %v2476
    %3501 = vst [vmem:[#allocation7 + $0xc20] sm:$0xff] %v2477
    %3502 = vst [vmem:[#allocation7 + $0xc28] sm:$0xff] %v2478
    %3503 = vst [vmem:[#allocation7 + $0xc30] sm:$0xff] %v2479
    %3504 = vst [vmem:[#allocation7 + $0xc38] sm:$0xff] %v2480
    %3505 = vst [vmem:[#allocation7 + $0xc40] sm:$0xff] %v2481
    %3506 = vst [vmem:[#allocation7 + $0xc48] sm:$0xff] %v2482
    %3507 = vst [vmem:[#allocation7 + $0xc50] sm:$0xff] %v2483
    %3508 = vst [vmem:[#allocation7 + $0xc58] sm:$0xff] %v2484
    %3509 = vst [vmem:[#allocation7 + $0xc60] sm:$0xff] %v2485
    %3510 = vst [vmem:[#allocation7 + $0xc68] sm:$0xff] %v2486
    %3511 = vst [vmem:[#allocation7 + $0xc70] sm:$0xff] %v2487
    %3512 = vst [vmem:[#allocation7 + $0xc78] sm:$0xff] %v2488
    %3513 = vst [vmem:[#allocation7 + $0xc80] sm:$0xff] %v2489
    %3514 = vst [vmem:[#allocation7 + $0xc88] sm:$0xff] %v2490
    %3515 = vst [vmem:[#allocation7 + $0xc90] sm:$0xff] %v2491
    %3516 = vst [vmem:[#allocation7 + $0xc98] sm:$0xff] %v2492
    %3517 = vst [vmem:[#allocation7 + $0xca0] sm:$0xff] %v2493
    %3518 = vst [vmem:[#allocation7 + $0xca8] sm:$0xff] %v2494
    %3519 = vst [vmem:[#allocation7 + $0xcb0] sm:$0xff] %v2495
    %3520 = vst [vmem:[#allocation7 + $0xcb8] sm:$0xff] %v2496
    %3521 = vst [vmem:[#allocation7 + $0xcc0] sm:$0xff] %v2497
    %3522 = vst [vmem:[#allocation7 + $0xcc8] sm:$0xff] %v2498
    %3523 = vst [vmem:[#allocation7 + $0xcd0] sm:$0xff] %v2499
    %3524 = vst [vmem:[#allocation7 + $0xcd8] sm:$0xff] %v2500
    %3525 = vst [vmem:[#allocation7 + $0xce0] sm:$0xff] %v2501
    %3526 = vst [vmem:[#allocation7 + $0xce8] sm:$0xff] %v2502
    %3527 = vst [vmem:[#allocation7 + $0xcf0] sm:$0xff] %v2503
    %3528 = vst [vmem:[#allocation7 + $0xcf8] sm:$0xff] %v2504
    %3529 = vst [vmem:[#allocation7 + $0xd00] sm:$0xff] %v2505
    %3530 = vst [vmem:[#allocation7 + $0xd08] sm:$0xff] %v2506
    %3531 = vst [vmem:[#allocation7 + $0xd10] sm:$0xff] %v2507
    %3532 = vst [vmem:[#allocation7 + $0xd18] sm:$0xff] %v2508
    %3533 = vst [vmem:[#allocation7 + $0xd20] sm:$0xff] %v2509
    %3534 = vst [vmem:[#allocation7 + $0xd28] sm:$0xff] %v2510
    %3535 = vst [vmem:[#allocation7 + $0xd30] sm:$0xff] %v2511
    %3536 = vst [vmem:[#allocation7 + $0xd38] sm:$0xff] %v2512
    %3537 = vst [vmem:[#allocation7 + $0xd40] sm:$0xff] %v2513
    %3538 = vst [vmem:[#allocation7 + $0xd48] sm:$0xff] %v2514
    %3539 = vst [vmem:[#allocation7 + $0xd50] sm:$0xff] %v2515
    %3540 = vst [vmem:[#allocation7 + $0xd58] sm:$0xff] %v2516
    %3541 = vst [vmem:[#allocation7 + $0xd60] sm:$0xff] %v2517
    %3542 = vst [vmem:[#allocation7 + $0xd68] sm:$0xff] %v2518
    %3543 = vst [vmem:[#allocation7 + $0xd70] sm:$0xff] %v2519
    %3544 = vst [vmem:[#allocation7 + $0xd78] sm:$0xff] %v2520
    %3545 = vst [vmem:[#allocation7 + $0xd80] sm:$0xff] %v2521
    %3546 = vst [vmem:[#allocation7 + $0xd88] sm:$0xff] %v2522
    %3547 = vst [vmem:[#allocation7 + $0xd90] sm:$0xff] %v2523
    %3548 = vst [vmem:[#allocation7 + $0xd98] sm:$0xff] %v2524
    %3549 = vst [vmem:[#allocation7 + $0xda0] sm:$0xff] %v2525
    %3550 = vst [vmem:[#allocation7 + $0xda8] sm:$0xff] %v2526
    %3551 = vst [vmem:[#allocation7 + $0xdb0] sm:$0xff] %v2527
    %3552 = vst [vmem:[#allocation7 + $0xdb8] sm:$0xff] %v2528
    %3553 = vst [vmem:[#allocation7 + $0xdc0] sm:$0xff] %v2529
    %3554 = vst [vmem:[#allocation7 + $0xdc8] sm:$0xff] %v2530
    %3555 = vst [vmem:[#allocation7 + $0xdd0] sm:$0xff] %v2531
    %3556 = vst [vmem:[#allocation7 + $0xdd8] sm:$0xff] %v2532
    %3557 = vst [vmem:[#allocation7 + $0xde0] sm:$0xff] %v2533
    %3558 = vst [vmem:[#allocation7 + $0xde8] sm:$0xff] %v2534
    %3559 = vst [vmem:[#allocation7 + $0xdf0] sm:$0xff] %v2535
    %3560 = vst [vmem:[#allocation7 + $0xdf8] sm:$0xff] %v2536
    %3561 = vst [vmem:[#allocation7 + $0xe00] sm:$0xff] %v2537
    %3562 = vst [vmem:[#allocation7 + $0xe08] sm:$0xff] %v2538
    %3563 = vst [vmem:[#allocation7 + $0xe10] sm:$0xff] %v2539
    %3564 = vst [vmem:[#allocation7 + $0xe18] sm:$0xff] %v2540
    %3565 = vst [vmem:[#allocation7 + $0xe20] sm:$0xff] %v2541
    %3566 = vst [vmem:[#allocation7 + $0xe28] sm:$0xff] %v2542
    %3567 = vst [vmem:[#allocation7 + $0xe30] sm:$0xff] %v2543
    %3568 = vst [vmem:[#allocation7 + $0xe38] sm:$0xff] %v2544
    %3569 = vst [vmem:[#allocation7 + $0xe40] sm:$0xff] %v2545
    %3570 = vst [vmem:[#allocation7 + $0xe48] sm:$0xff] %v2546
    %3571 = vst [vmem:[#allocation7 + $0xe50] sm:$0xff] %v2547
    %3572 = vst [vmem:[#allocation7 + $0xe58] sm:$0xff] %v2548
    %3573 = vst [vmem:[#allocation7 + $0xe60] sm:$0xff] %v2549
    %3574 = vst [vmem:[#allocation7 + $0xe68] sm:$0xff] %v2550
    %3575 = vst [vmem:[#allocation7 + $0xe70] sm:$0xff] %v2551
    %3576 = vst [vmem:[#allocation7 + $0xe78] sm:$0xff] %v2552
    %3577 = vst [vmem:[#allocation7 + $0xe80] sm:$0xff] %v2553
    %3578 = vst [vmem:[#allocation7 + $0xe88] sm:$0xff] %v2554
    %3579 = vst [vmem:[#allocation7 + $0xe90] sm:$0xff] %v2555
    %3580 = vst [vmem:[#allocation7 + $0xe98] sm:$0xff] %v2556
    %3581 = vst [vmem:[#allocation7 + $0xea0] sm:$0xff] %v2557
    %3582 = vst [vmem:[#allocation7 + $0xea8] sm:$0xff] %v2558
    %3583 = vst [vmem:[#allocation7 + $0xeb0] sm:$0xff] %v2559
    %3584 = vst [vmem:[#allocation7 + $0xeb8] sm:$0xff] %v2560
    %3585 = vst [vmem:[#allocation7 + $0xec0] sm:$0xff] %v2561
    %3586 = vst [vmem:[#allocation7 + $0xec8] sm:$0xff] %v2562
    %3587 = vst [vmem:[#allocation7 + $0xed0] sm:$0xff] %v2563
    %3588 = vst [vmem:[#allocation7 + $0xed8] sm:$0xff] %v2564
    %3589 = vst [vmem:[#allocation7 + $0xee0] sm:$0xff] %v2565
    %3590 = vst [vmem:[#allocation7 + $0xee8] sm:$0xff] %v2566
    %3591 = vst [vmem:[#allocation7 + $0xef0] sm:$0xff] %v2567
    %3592 = vst [vmem:[#allocation7 + $0xef8] sm:$0xff] %v2568
    %3593 = vst [vmem:[#allocation7 + $0xf00] sm:$0xff] %v2569
    %3594 = vst [vmem:[#allocation7 + $0xf08] sm:$0xff] %v2570
    %3595 = vst [vmem:[#allocation7 + $0xf10] sm:$0xff] %v2571
    %3596 = vst [vmem:[#allocation7 + $0xf18] sm:$0xff] %v2572
    %3597 = vst [vmem:[#allocation7 + $0xf20] sm:$0xff] %v2573
    %3598 = vst [vmem:[#allocation7 + $0xf28] sm:$0xff] %v2574
    %3599 = vst [vmem:[#allocation7 + $0xf30] sm:$0xff] %v2575
    %3600 = vst [vmem:[#allocation7 + $0xf38] sm:$0xff] %v2576
    %3601 = vst [vmem:[#allocation7 + $0xf40] sm:$0xff] %v2577
    %3602 = vst [vmem:[#allocation7 + $0xf48] sm:$0xff] %v2578
    %3603 = vst [vmem:[#allocation7 + $0xf50] sm:$0xff] %v2579
    %3604 = vst [vmem:[#allocation7 + $0xf58] sm:$0xff] %v2580
    %3605 = vst [vmem:[#allocation7 + $0xf60] sm:$0xff] %v2581
    %3606 = vst [vmem:[#allocation7 + $0xf68] sm:$0xff] %v2582
    %3607 = vst [vmem:[#allocation7 + $0xf70] sm:$0xff] %v2583
    %3608 = vst [vmem:[#allocation7 + $0xf78] sm:$0xff] %v2584
    %3609 = vst [vmem:[#allocation7 + $0xf80] sm:$0xff] %v2585
    %3610 = vst [vmem:[#allocation7 + $0xf88] sm:$0xff] %v2586
    %3611 = vst [vmem:[#allocation7 + $0xf90] sm:$0xff] %v2587
    %3612 = vst [vmem:[#allocation7 + $0xf98] sm:$0xff] %v2588
    %3613 = vst [vmem:[#allocation7 + $0xfa0] sm:$0xff] %v2589
    %3614 = vst [vmem:[#allocation7 + $0xfa8] sm:$0xff] %v2590
    %3615 = vst [vmem:[#allocation7 + $0xfb0] sm:$0xff] %v2591
    %3616 = vst [vmem:[#allocation7 + $0xfb8] sm:$0xff] %v2592
    %3617 = vst [vmem:[#allocation7 + $0xfc0] sm:$0xff] %v2593
    %3618 = vst [vmem:[#allocation7 + $0xfc8] sm:$0xff] %v2594
    %3619 = vst [vmem:[#allocation7 + $0xfd0] sm:$0xff] %v2595
    %3620 = vst [vmem:[#allocation7 + $0xfd8] sm:$0xff] %v2596
    %3621 = vst [vmem:[#allocation7 + $0xfe0] sm:$0xff] %v2597
    %3622 = vst [vmem:[#allocation7 + $0xfe8] sm:$0xff] %v2598
    %3623 = vst [vmem:[#allocation7 + $0xff0] sm:$0xff] %v2599
    %3624 = vst [vmem:[#allocation7 + $0xff8] sm:$0xff] %v2600
    %3625 = vst [vmem:[#allocation7 + $0x1000] sm:$0xff] %v2601
    %3626 = vst [vmem:[#allocation7 + $0x1008] sm:$0xff] %v2602
    %3627 = vst [vmem:[#allocation7 + $0x1010] sm:$0xff] %v2603
    %3628 = vst [vmem:[#allocation7 + $0x1018] sm:$0xff] %v2604
    %3629 = vst [vmem:[#allocation7 + $0x1020] sm:$0xff] %v2605
    %3630 = vst [vmem:[#allocation7 + $0x1028] sm:$0xff] %v2606
    %3631 = vst [vmem:[#allocation7 + $0x1030] sm:$0xff] %v2607
    %3632 = vst [vmem:[#allocation7 + $0x1038] sm:$0xff] %v2608
    %3633 = vst [vmem:[#allocation7 + $0x1040] sm:$0xff] %v2609
    %3634 = vst [vmem:[#allocation7 + $0x1048] sm:$0xff] %v2610
    %3635 = vst [vmem:[#allocation7 + $0x1050] sm:$0xff] %v2611
    %3636 = vst [vmem:[#allocation7 + $0x1058] sm:$0xff] %v2612
    %3637 = vst [vmem:[#allocation7 + $0x1060] sm:$0xff] %v2613
    %3638 = vst [vmem:[#allocation7 + $0x1068] sm:$0xff] %v2614
    %3639 = vst [vmem:[#allocation7 + $0x1070] sm:$0xff] %v2615
    %3640 = vst [vmem:[#allocation7 + $0x1078] sm:$0xff] %v2616
    %3641 = vst [vmem:[#allocation7 + $0x1080] sm:$0xff] %v2617
    %3642 = vst [vmem:[#allocation7 + $0x1088] sm:$0xff] %v2618
    %3643 = vst [vmem:[#allocation7 + $0x1090] sm:$0xff] %v2619
    %3644 = vst [vmem:[#allocation7 + $0x1098] sm:$0xff] %v2620
    %3645 = vst [vmem:[#allocation7 + $0x10a0] sm:$0xff] %v2621
    %3646 = vst [vmem:[#allocation7 + $0x10a8] sm:$0xff] %v2622
    %3647 = vst [vmem:[#allocation7 + $0x10b0] sm:$0xff] %v2623
    %3648 = vst [vmem:[#allocation7 + $0x10b8] sm:$0xff] %v2624
    %3649 = vst [vmem:[#allocation7 + $0x10c0] sm:$0xff] %v2625
    %3650 = vst [vmem:[#allocation7 + $0x10c8] sm:$0xff] %v2626
    %3651 = vst [vmem:[#allocation7 + $0x10d0] sm:$0xff] %v2627
    %3652 = vst [vmem:[#allocation7 + $0x10d8] sm:$0xff] %v2628
    %3653 = vst [vmem:[#allocation7 + $0x10e0] sm:$0xff] %v2629
    %3654 = vst [vmem:[#allocation7 + $0x10e8] sm:$0xff] %v2630
    %3655 = vst [vmem:[#allocation7 + $0x10f0] sm:$0xff] %v2631
    %3656 = vst [vmem:[#allocation7 + $0x10f8] sm:$0xff] %v2632
    %3657 = vst [vmem:[#allocation7 + $0x1100] sm:$0xff] %v2633
    %3658 = vst [vmem:[#allocation7 + $0x1108] sm:$0xff] %v2634
    %3659 = vst [vmem:[#allocation7 + $0x1110] sm:$0xff] %v2635
    %3660 = vst [vmem:[#allocation7 + $0x1118] sm:$0xff] %v2636
    %3661 = vst [vmem:[#allocation7 + $0x1120] sm:$0xff] %v2637
    %3662 = vst [vmem:[#allocation7 + $0x1128] sm:$0xff] %v2638
    %3663 = vst [vmem:[#allocation7 + $0x1130] sm:$0xff] %v2639
    %3664 = vst [vmem:[#allocation7 + $0x1138] sm:$0xff] %v2640
    %3665 = vst [vmem:[#allocation7 + $0x1140] sm:$0xff] %v2641
    %3666 = vst [vmem:[#allocation7 + $0x1148] sm:$0xff] %v2642
    %3667 = vst [vmem:[#allocation7 + $0x1150] sm:$0xff] %v2643
    %3668 = vst [vmem:[#allocation7 + $0x1158] sm:$0xff] %v2644
    %3669 = vst [vmem:[#allocation7 + $0x1160] sm:$0xff] %v2645
    %3670 = vst [vmem:[#allocation7 + $0x1168] sm:$0xff] %v2646
    %3671 = vst [vmem:[#allocation7 + $0x1170] sm:$0xff] %v2647
    %3672 = vst [vmem:[#allocation7 + $0x1178] sm:$0xff] %v2648
    %3673 = vst [vmem:[#allocation7 + $0x1180] sm:$0xff] %v2649
    %3674 = vst [vmem:[#allocation7 + $0x1188] sm:$0xff] %v2650
    %3675 = vst [vmem:[#allocation7 + $0x1190] sm:$0xff] %v2651
    %3676 = vst [vmem:[#allocation7 + $0x1198] sm:$0xff] %v2652
    %3677 = vst [vmem:[#allocation7 + $0x11a0] sm:$0xff] %v2653
    %3678 = vst [vmem:[#allocation7 + $0x11a8] sm:$0xff] %v2654
    %3679 = vst [vmem:[#allocation7 + $0x11b0] sm:$0xff] %v2655
    %3680 = vst [vmem:[#allocation7 + $0x11b8] sm:$0xff] %v2656
    %3681 = vst [vmem:[#allocation7 + $0x11c0] sm:$0xff] %v2657
    %3682 = vst [vmem:[#allocation7 + $0x11c8] sm:$0xff] %v2658
    %3683 = vst [vmem:[#allocation7 + $0x11d0] sm:$0xff] %v2659
    %3684 = vst [vmem:[#allocation7 + $0x11d8] sm:$0xff] %v2660
    %3685 = vst [vmem:[#allocation7 + $0x11e0] sm:$0xff] %v2661
    %3686 = vst [vmem:[#allocation7 + $0x11e8] sm:$0xff] %v2662
    %3687 = vst [vmem:[#allocation7 + $0x11f0] sm:$0xff] %v2663
    %3688 = vst [vmem:[#allocation7 + $0x11f8] sm:$0xff] %v2664
    %3689 = vst [vmem:[#allocation7 + $0x1200] sm:$0xff] %v2665
    %3690 = vst [vmem:[#allocation7 + $0x1208] sm:$0xff] %v2666
    %3691 = vst [vmem:[#allocation7 + $0x1210] sm:$0xff] %v2667
    %3692 = vst [vmem:[#allocation7 + $0x1218] sm:$0xff] %v2668
    %3693 = vst [vmem:[#allocation7 + $0x1220] sm:$0xff] %v2669
    %3694 = vst [vmem:[#allocation7 + $0x1228] sm:$0xff] %v2670
    %3695 = vst [vmem:[#allocation7 + $0x1230] sm:$0xff] %v2671
    %3696 = vst [vmem:[#allocation7 + $0x1238] sm:$0xff] %v2672
    %3697 = vst [vmem:[#allocation7 + $0x1240] sm:$0xff] %v2673
    %3698 = vst [vmem:[#allocation7 + $0x1248] sm:$0xff] %v2674
    %3699 = vst [vmem:[#allocation7 + $0x1250] sm:$0xff] %v2675
    %3700 = vst [vmem:[#allocation7 + $0x1258] sm:$0xff] %v2676
    %3701 = vst [vmem:[#allocation7 + $0x1260] sm:$0xff] %v2677
    %3702 = vst [vmem:[#allocation7 + $0x1268] sm:$0xff] %v2678
    %3703 = vst [vmem:[#allocation7 + $0x1270] sm:$0xff] %v2679
    %3704 = vst [vmem:[#allocation7 + $0x1278] sm:$0xff] %v2680
    %3705 = vst [vmem:[#allocation7 + $0x1280] sm:$0xff] %v2681
    %3706 = vst [vmem:[#allocation7 + $0x1288] sm:$0xff] %v2682
    %3707 = vst [vmem:[#allocation7 + $0x1290] sm:$0xff] %v2683
    %3708 = vst [vmem:[#allocation7 + $0x1298] sm:$0xff] %v2684
    %3709 = vst [vmem:[#allocation7 + $0x12a0] sm:$0xff] %v2685
    %3710 = vst [vmem:[#allocation7 + $0x12a8] sm:$0xff] %v2686
    %3711 = vst [vmem:[#allocation7 + $0x12b0] sm:$0xff] %v2687
    %3712 = vst [vmem:[#allocation7 + $0x12b8] sm:$0xff] %v2688
    %3713 = vst [vmem:[#allocation7 + $0x12c0] sm:$0xff] %v2689
    %3714 = vst [vmem:[#allocation7 + $0x12c8] sm:$0xff] %v2690
    %3715 = vst [vmem:[#allocation7 + $0x12d0] sm:$0xff] %v2691
    %3716 = vst [vmem:[#allocation7 + $0x12d8] sm:$0xff] %v2692
    %3717 = vst [vmem:[#allocation7 + $0x12e0] sm:$0xff] %v2693
    %3718 = vst [vmem:[#allocation7 + $0x12e8] sm:$0xff] %v2694
    %3719 = vst [vmem:[#allocation7 + $0x12f0] sm:$0xff] %v2695
    %3720 = vst [vmem:[#allocation7 + $0x12f8] sm:$0xff] %v2696
    %3721 = vst [vmem:[#allocation7 + $0x1300] sm:$0xff] %v2697
    %3722 = vst [vmem:[#allocation7 + $0x1308] sm:$0xff] %v2698
    %3723 = vst [vmem:[#allocation7 + $0x1310] sm:$0xff] %v2699
    %3724 = vst [vmem:[#allocation7 + $0x1318] sm:$0xff] %v2700
    %3725 = vst [vmem:[#allocation7 + $0x1320] sm:$0xff] %v2701
    %3726 = vst [vmem:[#allocation7 + $0x1328] sm:$0xff] %v2702
    %3727 = vst [vmem:[#allocation7 + $0x1330] sm:$0xff] %v2703
    %3728 = vst [vmem:[#allocation7 + $0x1338] sm:$0xff] %v2704
    %3729 = vst [vmem:[#allocation7 + $0x1340] sm:$0xff] %v2705
    %3730 = vst [vmem:[#allocation7 + $0x1348] sm:$0xff] %v2706
    %3731 = vst [vmem:[#allocation7 + $0x1350] sm:$0xff] %v2707
    %3732 = vst [vmem:[#allocation7 + $0x1358] sm:$0xff] %v2708
    %3733 = vst [vmem:[#allocation7 + $0x1360] sm:$0xff] %v2709
    %3734 = vst [vmem:[#allocation7 + $0x1368] sm:$0xff] %v2710
    %3735 = vst [vmem:[#allocation7 + $0x1370] sm:$0xff] %v2711
    %3736 = vst [vmem:[#allocation7 + $0x1378] sm:$0xff] %v2712
    %3737 = vst [vmem:[#allocation7 + $0x1380] sm:$0xff] %v2713
    %3738 = vst [vmem:[#allocation7 + $0x1388] sm:$0xff] %v2714
    %3739 = vst [vmem:[#allocation7 + $0x1390] sm:$0xff] %v2715
    %3740 = vst [vmem:[#allocation7 + $0x1398] sm:$0xff] %v2716
    %3741 = vst [vmem:[#allocation7 + $0x13a0] sm:$0xff] %v2717
    %3742 = vst [vmem:[#allocation7 + $0x13a8] sm:$0xff] %v2718
    %3743 = vst [vmem:[#allocation7 + $0x13b0] sm:$0xff] %v2719
    %3744 = vst [vmem:[#allocation7 + $0x13b8] sm:$0xff] %v2720
    %3745 = vst [vmem:[#allocation7 + $0x13c0] sm:$0xff] %v2721
    %3746 = vst [vmem:[#allocation7 + $0x13c8] sm:$0xff] %v2722
    %3747 = vst [vmem:[#allocation7 + $0x13d0] sm:$0xff] %v2723
    %3748 = vst [vmem:[#allocation7 + $0x13d8] sm:$0xff] %v2724
    %3749 = vst [vmem:[#allocation7 + $0x13e0] sm:$0xff] %v2725
    %3750 = vst [vmem:[#allocation7 + $0x13e8] sm:$0xff] %v2726
    %3751 = vst [vmem:[#allocation7 + $0x13f0] sm:$0xff] %v2727
    %3752 = vst [vmem:[#allocation7 + $0x13f8] sm:$0xff] %v2728
    %3753 = vst [vmem:[#allocation7 + $0x1400] sm:$0xff] %v2729
    %3754 = vst [vmem:[#allocation7 + $0x1408] sm:$0xff] %v2730
    %3755 = vst [vmem:[#allocation7 + $0x1410] sm:$0xff] %v2731
    %3756 = vst [vmem:[#allocation7 + $0x1418] sm:$0xff] %v2732
    %3757 = vst [vmem:[#allocation7 + $0x1420] sm:$0xff] %v2733
    %3758 = vst [vmem:[#allocation7 + $0x1428] sm:$0xff] %v2734
    %3759 = vst [vmem:[#allocation7 + $0x1430] sm:$0xff] %v2735
    %3760 = vst [vmem:[#allocation7 + $0x1438] sm:$0xff] %v2736
    %3761 = vst [vmem:[#allocation7 + $0x1440] sm:$0xff] %v2737
    %3762 = vst [vmem:[#allocation7 + $0x1448] sm:$0xff] %v2738
    %3763 = vst [vmem:[#allocation7 + $0x1450] sm:$0xff] %v2739
    %3764 = vst [vmem:[#allocation7 + $0x1458] sm:$0xff] %v2740
    %3765 = vst [vmem:[#allocation7 + $0x1460] sm:$0xff] %v2741
    %3766 = vst [vmem:[#allocation7 + $0x1468] sm:$0xff] %v2742
    %3767 = vst [vmem:[#allocation7 + $0x1470] sm:$0xff] %v2743
    %3768 = vst [vmem:[#allocation7 + $0x1478] sm:$0xff] %v2744
    %3769 = vst [vmem:[#allocation7 + $0x1480] sm:$0xff] %v2745
    %3770 = vst [vmem:[#allocation7 + $0x1488] sm:$0xff] %v2746
    %3771 = vst [vmem:[#allocation7 + $0x1490] sm:$0xff] %v2747
    %3772 = vst [vmem:[#allocation7 + $0x1498] sm:$0xff] %v2748
    %3773 = vst [vmem:[#allocation7 + $0x14a0] sm:$0xff] %v2749
    %3774 = vst [vmem:[#allocation7 + $0x14a8] sm:$0xff] %v2750
    %3775 = vst [vmem:[#allocation7 + $0x14b0] sm:$0xff] %v2751
    %3776 = vst [vmem:[#allocation7 + $0x14b8] sm:$0xff] %v2752
    %3777 = vst [vmem:[#allocation7 + $0x14c0] sm:$0xff] %v2753
    %3778 = vst [vmem:[#allocation7 + $0x14c8] sm:$0xff] %v2754
    %3779 = vst [vmem:[#allocation7 + $0x14d0] sm:$0xff] %v2755
    %3780 = vst [vmem:[#allocation7 + $0x14d8] sm:$0xff] %v2756
    %3781 = vst [vmem:[#allocation7 + $0x14e0] sm:$0xff] %v2757
    %3782 = vst [vmem:[#allocation7 + $0x14e8] sm:$0xff] %v2758
    %3783 = vst [vmem:[#allocation7 + $0x14f0] sm:$0xff] %v2759
    %3784 = vst [vmem:[#allocation7 + $0x14f8] sm:$0xff] %v2760
    %3785 = vst [vmem:[#allocation7 + $0x1500] sm:$0xff] %v2761
    %3786 = vst [vmem:[#allocation7 + $0x1508] sm:$0xff] %v2762
    %3787 = vst [vmem:[#allocation7 + $0x1510] sm:$0xff] %v2763
    %3788 = vst [vmem:[#allocation7 + $0x1518] sm:$0xff] %v2764
    %3789 = vst [vmem:[#allocation7 + $0x1520] sm:$0xff] %v2765
    %3790 = vst [vmem:[#allocation7 + $0x1528] sm:$0xff] %v2766
    %3791 = vst [vmem:[#allocation7 + $0x1530] sm:$0xff] %v2767
    %3792 = vst [vmem:[#allocation7 + $0x1538] sm:$0xff] %v2768
    %3793 = vst [vmem:[#allocation7 + $0x1540] sm:$0xff] %v2769
    %3794 = vst [vmem:[#allocation7 + $0x1548] sm:$0xff] %v2770
    %3795 = vst [vmem:[#allocation7 + $0x1550] sm:$0xff] %v2771
    %3796 = vst [vmem:[#allocation7 + $0x1558] sm:$0xff] %v2772
    %3797 = vst [vmem:[#allocation7 + $0x1560] sm:$0xff] %v2773
    %3798 = vst [vmem:[#allocation7 + $0x1568] sm:$0xff] %v2774
    %3799 = vst [vmem:[#allocation7 + $0x1570] sm:$0xff] %v2775
    %3800 = vst [vmem:[#allocation7 + $0x1578] sm:$0xff] %v2776
    %3801 = vst [vmem:[#allocation7 + $0x1580] sm:$0xff] %v2777
    %3802 = vst [vmem:[#allocation7 + $0x1588] sm:$0xff] %v2778
    %3803 = vst [vmem:[#allocation7 + $0x1590] sm:$0xff] %v2779
    %3804 = vst [vmem:[#allocation7 + $0x1598] sm:$0xff] %v2780
    %3805 = vst [vmem:[#allocation7 + $0x15a0] sm:$0xff] %v2781
    %3806 = vst [vmem:[#allocation7 + $0x15a8] sm:$0xff] %v2782
    %3807 = vst [vmem:[#allocation7 + $0x15b0] sm:$0xff] %v2783
    %3808 = vst [vmem:[#allocation7 + $0x15b8] sm:$0xff] %v2784
    %3809 = vst [vmem:[#allocation7 + $0x15c0] sm:$0xff] %v2785
    %3810 = vst [vmem:[#allocation7 + $0x15c8] sm:$0xff] %v2786
    %3811 = vst [vmem:[#allocation7 + $0x15d0] sm:$0xff] %v2787
    %3812 = vst [vmem:[#allocation7 + $0x15d8] sm:$0xff] %v2788
    %3813 = vst [vmem:[#allocation7 + $0x15e0] sm:$0xff] %v2789
    %3814 = vst [vmem:[#allocation7 + $0x15e8] sm:$0xff] %v2790
    %3815 = vst [vmem:[#allocation7 + $0x15f0] sm:$0xff] %v2791
    %3816 = vst [vmem:[#allocation7 + $0x15f8] sm:$0xff] %v2792
    %3817 = vst [vmem:[#allocation7 + $0x1600] sm:$0xff] %v2793
    %3818 = vst [vmem:[#allocation7 + $0x1608] sm:$0xff] %v2794
    %3819 = vst [vmem:[#allocation7 + $0x1610] sm:$0xff] %v2795
    %3820 = vst [vmem:[#allocation7 + $0x1618] sm:$0xff] %v2796
    %3821 = vst [vmem:[#allocation7 + $0x1620] sm:$0xff] %v2797
    %3822 = vst [vmem:[#allocation7 + $0x1628] sm:$0xff] %v2798
    %3823 = vst [vmem:[#allocation7 + $0x1630] sm:$0xff] %v2799
    %3824 = vst [vmem:[#allocation7 + $0x1638] sm:$0xff] %v2800
    %3825 = vst [vmem:[#allocation7 + $0x1640] sm:$0xff] %v2801
    %3826 = vst [vmem:[#allocation7 + $0x1648] sm:$0xff] %v2802
    %3827 = vst [vmem:[#allocation7 + $0x1650] sm:$0xff] %v2803
    %3828 = vst [vmem:[#allocation7 + $0x1658] sm:$0xff] %v2804
    %3829 = vst [vmem:[#allocation7 + $0x1660] sm:$0xff] %v2805
    %3830 = vst [vmem:[#allocation7 + $0x1668] sm:$0xff] %v2806
    %3831 = vst [vmem:[#allocation7 + $0x1670] sm:$0xff] %v2807
    %3832 = vst [vmem:[#allocation7 + $0x1678] sm:$0xff] %v2808
    %3833 = vst [vmem:[#allocation7 + $0x1680] sm:$0xff] %v2809
    %3834 = vst [vmem:[#allocation7 + $0x1688] sm:$0xff] %v2810
    %3835 = vst [vmem:[#allocation7 + $0x1690] sm:$0xff] %v2811
    %3836 = vst [vmem:[#allocation7 + $0x1698] sm:$0xff] %v2812
    %3837 = vst [vmem:[#allocation7 + $0x16a0] sm:$0xff] %v2813
    %3838 = vst [vmem:[#allocation7 + $0x16a8] sm:$0xff] %v2814
    %3839 = vst [vmem:[#allocation7 + $0x16b0] sm:$0xff] %v2815
    %3840 = vst [vmem:[#allocation7 + $0x16b8] sm:$0xff] %v2816
    %3841 = vst [vmem:[#allocation7 + $0x16c0] sm:$0xff] %v2817
    %3842 = vst [vmem:[#allocation7 + $0x16c8] sm:$0xff] %v2818
    %3843 = vst [vmem:[#allocation7 + $0x16d0] sm:$0xff] %v2819
    %3844 = vst [vmem:[#allocation7 + $0x16d8] sm:$0xff] %v2820
    %3845 = vst [vmem:[#allocation7 + $0x16e0] sm:$0xff] %v2821
    %3846 = vst [vmem:[#allocation7 + $0x16e8] sm:$0xff] %v2822
    %3847 = vst [vmem:[#allocation7 + $0x16f0] sm:$0xff] %v2823
    %3848 = vst [vmem:[#allocation7 + $0x16f8] sm:$0xff] %v2824
    %3849 = vst [vmem:[#allocation7 + $0x1700] sm:$0xff] %v2825
    %3850 = vst [vmem:[#allocation7 + $0x1708] sm:$0xff] %v2826
    %3851 = vst [vmem:[#allocation7 + $0x1710] sm:$0xff] %v2827
    %3852 = vst [vmem:[#allocation7 + $0x1718] sm:$0xff] %v2828
    %3853 = vst [vmem:[#allocation7 + $0x1720] sm:$0xff] %v2829
    %3854 = vst [vmem:[#allocation7 + $0x1728] sm:$0xff] %v2830
    %3855 = vst [vmem:[#allocation7 + $0x1730] sm:$0xff] %v2831
    %3856 = vst [vmem:[#allocation7 + $0x1738] sm:$0xff] %v2832
    %3857 = vst [vmem:[#allocation7 + $0x1740] sm:$0xff] %v2833
    %3858 = vst [vmem:[#allocation7 + $0x1748] sm:$0xff] %v2834
    %3859 = vst [vmem:[#allocation7 + $0x1750] sm:$0xff] %v2835
    %3860 = vst [vmem:[#allocation7 + $0x1758] sm:$0xff] %v2836
    %3861 = vst [vmem:[#allocation7 + $0x1760] sm:$0xff] %v2837
    %3862 = vst [vmem:[#allocation7 + $0x1768] sm:$0xff] %v2838
    %3863 = vst [vmem:[#allocation7 + $0x1770] sm:$0xff] %v2839
    %3864 = vst [vmem:[#allocation7 + $0x1778] sm:$0xff] %v2840
    %3865 = vst [vmem:[#allocation7 + $0x1780] sm:$0xff] %v2841
    %3866 = vst [vmem:[#allocation7 + $0x1788] sm:$0xff] %v2842
    %3867 = vst [vmem:[#allocation7 + $0x1790] sm:$0xff] %v2843
    %3868 = vst [vmem:[#allocation7 + $0x1798] sm:$0xff] %v2844
    %3869 = vst [vmem:[#allocation7 + $0x17a0] sm:$0xff] %v2845
    %3870 = vst [vmem:[#allocation7 + $0x17a8] sm:$0xff] %v2846
    %3871 = vst [vmem:[#allocation7 + $0x17b0] sm:$0xff] %v2847
    %3872 = vst [vmem:[#allocation7 + $0x17b8] sm:$0xff] %v2848
    %3873 = vst [vmem:[#allocation7 + $0x17c0] sm:$0xff] %v2849
    %3874 = vst [vmem:[#allocation7 + $0x17c8] sm:$0xff] %v2850
    %3875 = vst [vmem:[#allocation7 + $0x17d0] sm:$0xff] %v2851
    %3876 = vst [vmem:[#allocation7 + $0x17d8] sm:$0xff] %v2852
    %3877 = vst [vmem:[#allocation7 + $0x17e0] sm:$0xff] %v2853
    %3878 = vst [vmem:[#allocation7 + $0x17e8] sm:$0xff] %v2854
    %3879 = vst [vmem:[#allocation7 + $0x17f0] sm:$0xff] %v2855
    %3880 = vst [vmem:[#allocation7 + $0x17f8] sm:$0xff] %v2856
    %3881 = vst [vmem:[#allocation7 + $0x1800] sm:$0xff] %v2857
    %3882 = vst [vmem:[#allocation7 + $0x1808] sm:$0xff] %v2858
    %3883 = vst [vmem:[#allocation7 + $0x1810] sm:$0xff] %v2859
    %3884 = vst [vmem:[#allocation7 + $0x1818] sm:$0xff] %v2860
    %3885 = vst [vmem:[#allocation7 + $0x1820] sm:$0xff] %v2861
    %3886 = vst [vmem:[#allocation7 + $0x1828] sm:$0xff] %v2862
    %3887 = vst [vmem:[#allocation7 + $0x1830] sm:$0xff] %v2863
    %3888 = vst [vmem:[#allocation7 + $0x1838] sm:$0xff] %v2864
    %3889 = vst [vmem:[#allocation7 + $0x1840] sm:$0xff] %v2865
    %3890 = vst [vmem:[#allocation7 + $0x1848] sm:$0xff] %v2866
    %3891 = vst [vmem:[#allocation7 + $0x1850] sm:$0xff] %v2867
    %3892 = vst [vmem:[#allocation7 + $0x1858] sm:$0xff] %v2868
    %3893 = vst [vmem:[#allocation7 + $0x1860] sm:$0xff] %v2869
    %3894 = vst [vmem:[#allocation7 + $0x1868] sm:$0xff] %v2870
    %3895 = vst [vmem:[#allocation7 + $0x1870] sm:$0xff] %v2871
    %3896 = vst [vmem:[#allocation7 + $0x1878] sm:$0xff] %v2872
    %3897 = vst [vmem:[#allocation7 + $0x1880] sm:$0xff] %v2873
    %3898 = vst [vmem:[#allocation7 + $0x1888] sm:$0xff] %v2874
    %3899 = vst [vmem:[#allocation7 + $0x1890] sm:$0xff] %v2875
    %3900 = vst [vmem:[#allocation7 + $0x1898] sm:$0xff] %v2876
    %3901 = vst [vmem:[#allocation7 + $0x18a0] sm:$0xff] %v2877
    %3902 = vst [vmem:[#allocation7 + $0x18a8] sm:$0xff] %v2878
    %3903 = vst [vmem:[#allocation7 + $0x18b0] sm:$0xff] %v2879
    %3904 = vst [vmem:[#allocation7 + $0x18b8] sm:$0xff] %v2880
    %3905 = vst [vmem:[#allocation7 + $0x18c0] sm:$0xff] %v2881
    %3906 = vst [vmem:[#allocation7 + $0x18c8] sm:$0xff] %v2882
    %3907 = vst [vmem:[#allocation7 + $0x18d0] sm:$0xff] %v2883
    %3908 = vst [vmem:[#allocation7 + $0x18d8] sm:$0xff] %v2884
    %3909 = vst [vmem:[#allocation7 + $0x18e0] sm:$0xff] %v2885
    %3910 = vst [vmem:[#allocation7 + $0x18e8] sm:$0xff] %v2886
    %3911 = vst [vmem:[#allocation7 + $0x18f0] sm:$0xff] %v2887
    %3912 = vst [vmem:[#allocation7 + $0x18f8] sm:$0xff] %v2888
    %3913 = vst [vmem:[#allocation7 + $0x1900] sm:$0xff] %v2889
    %3914 = vst [vmem:[#allocation7 + $0x1908] sm:$0xff] %v2890
    %3915 = vst [vmem:[#allocation7 + $0x1910] sm:$0xff] %v2891
    %3916 = vst [vmem:[#allocation7 + $0x1918] sm:$0xff] %v2892
    %3917 = vst [vmem:[#allocation7 + $0x1920] sm:$0xff] %v2893
    %3918 = vst [vmem:[#allocation7 + $0x1928] sm:$0xff] %v2894
    %3919 = vst [vmem:[#allocation7 + $0x1930] sm:$0xff] %v2895
    %3920 = vst [vmem:[#allocation7 + $0x1938] sm:$0xff] %v2896
    %3921 = vst [vmem:[#allocation7 + $0x1940] sm:$0xff] %v2897
    %3922 = vst [vmem:[#allocation7 + $0x1948] sm:$0xff] %v2898
    %3923 = vst [vmem:[#allocation7 + $0x1950] sm:$0xff] %v2899
    %3924 = vst [vmem:[#allocation7 + $0x1958] sm:$0xff] %v2900
    %3925 = vst [vmem:[#allocation7 + $0x1960] sm:$0xff] %v2901
    %3926 = vst [vmem:[#allocation7 + $0x1968] sm:$0xff] %v2902
    %3927 = vst [vmem:[#allocation7 + $0x1970] sm:$0xff] %v2903
    %3928 = vst [vmem:[#allocation7 + $0x1978] sm:$0xff] %v2904
    %3929 = vst [vmem:[#allocation7 + $0x1980] sm:$0xff] %v2905
    %3930 = vst [vmem:[#allocation7 + $0x1988] sm:$0xff] %v2906
    %3931 = vst [vmem:[#allocation7 + $0x1990] sm:$0xff] %v2907
    %3932 = vst [vmem:[#allocation7 + $0x1998] sm:$0xff] %v2908
    %3933 = vst [vmem:[#allocation7 + $0x19a0] sm:$0xff] %v2909
    %3934 = vst [vmem:[#allocation7 + $0x19a8] sm:$0xff] %v2910
    %3935 = vst [vmem:[#allocation7 + $0x19b0] sm:$0xff] %v2911
    %3936 = vst [vmem:[#allocation7 + $0x19b8] sm:$0xff] %v2912
    %3937 = vst [vmem:[#allocation7 + $0x19c0] sm:$0xff] %v2913
    %3938 = vst [vmem:[#allocation7 + $0x19c8] sm:$0xff] %v2914
    %3939 = vst [vmem:[#allocation7 + $0x19d0] sm:$0xff] %v2915
    %3940 = vst [vmem:[#allocation7 + $0x19d8] sm:$0xff] %v2916
    %3941 = vst [vmem:[#allocation7 + $0x19e0] sm:$0xff] %v2917
    %3942 = vst [vmem:[#allocation7 + $0x19e8] sm:$0xff] %v2918
    %3943 = vst [vmem:[#allocation7 + $0x19f0] sm:$0xff] %v2919
    %3944 = vst [vmem:[#allocation7 + $0x19f8] sm:$0xff] %v2920
    %3945 = vst [vmem:[#allocation7 + $0x1a00] sm:$0xff] %v2921
    %3946 = vst [vmem:[#allocation7 + $0x1a08] sm:$0xff] %v2922
    %3947 = vst [vmem:[#allocation7 + $0x1a10] sm:$0xff] %v2923
    %3948 = vst [vmem:[#allocation7 + $0x1a18] sm:$0xff] %v2924
    %3949 = vst [vmem:[#allocation7 + $0x1a20] sm:$0xff] %v2925
    %3950 = vst [vmem:[#allocation7 + $0x1a28] sm:$0xff] %v2926
    %3951 = vst [vmem:[#allocation7 + $0x1a30] sm:$0xff] %v2927
    %3952 = vst [vmem:[#allocation7 + $0x1a38] sm:$0xff] %v2928
    %3953 = vst [vmem:[#allocation7 + $0x1a40] sm:$0xff] %v2929
    %3954 = vst [vmem:[#allocation7 + $0x1a48] sm:$0xff] %v2930
    %3955 = vst [vmem:[#allocation7 + $0x1a50] sm:$0xff] %v2931
    %3956 = vst [vmem:[#allocation7 + $0x1a58] sm:$0xff] %v2932
    %3957 = vst [vmem:[#allocation7 + $0x1a60] sm:$0xff] %v2933
    %3958 = vst [vmem:[#allocation7 + $0x1a68] sm:$0xff] %v2934
    %3959 = vst [vmem:[#allocation7 + $0x1a70] sm:$0xff] %v2935
    %3960 = vst [vmem:[#allocation7 + $0x1a78] sm:$0xff] %v2936
    %3961 = vst [vmem:[#allocation7 + $0x1a80] sm:$0xff] %v2937
    %3962 = vst [vmem:[#allocation7 + $0x1a88] sm:$0xff] %v2938
    %3963 = vst [vmem:[#allocation7 + $0x1a90] sm:$0xff] %v2939
    %3964 = vst [vmem:[#allocation7 + $0x1a98] sm:$0xff] %v2940
    %3965 = vst [vmem:[#allocation7 + $0x1aa0] sm:$0xff] %v2941
    %3966 = vst [vmem:[#allocation7 + $0x1aa8] sm:$0xff] %v2942
    %3967 = vst [vmem:[#allocation7 + $0x1ab0] sm:$0xff] %v2943
    %3968 = vst [vmem:[#allocation7 + $0x1ab8] sm:$0xff] %v2944
    %3969 = vst [vmem:[#allocation7 + $0x1ac0] sm:$0xff] %v2945
    %3970 = vst [vmem:[#allocation7 + $0x1ac8] sm:$0xff] %v2946
    %3971 = vst [vmem:[#allocation7 + $0x1ad0] sm:$0xff] %v2947
    %3972 = vst [vmem:[#allocation7 + $0x1ad8] sm:$0xff] %v2948
    %3973 = vst [vmem:[#allocation7 + $0x1ae0] sm:$0xff] %v2949
    %3974 = vst [vmem:[#allocation7 + $0x1ae8] sm:$0xff] %v2950
    %3975 = vst [vmem:[#allocation7 + $0x1af0] sm:$0xff] %v2951
    %3976 = vst [vmem:[#allocation7 + $0x1af8] sm:$0xff] %v2952
    %3977 = vst [vmem:[#allocation7 + $0x1b00] sm:$0xff] %v2953
    %3978 = vst [vmem:[#allocation7 + $0x1b08] sm:$0xff] %v2954
    %3979 = vst [vmem:[#allocation7 + $0x1b10] sm:$0xff] %v2955
    %3980 = vst [vmem:[#allocation7 + $0x1b18] sm:$0xff] %v2956
    %3981 = vst [vmem:[#allocation7 + $0x1b20] sm:$0xff] %v2957
    %3982 = vst [vmem:[#allocation7 + $0x1b28] sm:$0xff] %v2958
    %3983 = vst [vmem:[#allocation7 + $0x1b30] sm:$0xff] %v2959
    %3984 = vst [vmem:[#allocation7 + $0x1b38] sm:$0xff] %v2960
    %3985 = vst [vmem:[#allocation7 + $0x1b40] sm:$0xff] %v2961
    %3986 = vst [vmem:[#allocation7 + $0x1b48] sm:$0xff] %v2962
    %3987 = vst [vmem:[#allocation7 + $0x1b50] sm:$0xff] %v2963
    %3988 = vst [vmem:[#allocation7 + $0x1b58] sm:$0xff] %v2964
    %3989 = vst [vmem:[#allocation7 + $0x1b60] sm:$0xff] %v2965
    %3990 = vst [vmem:[#allocation7 + $0x1b68] sm:$0xff] %v2966
    %3991 = vst [vmem:[#allocation7 + $0x1b70] sm:$0xff] %v2967
    %3992 = vst [vmem:[#allocation7 + $0x1b78] sm:$0xff] %v2968
    %3993 = vst [vmem:[#allocation7 + $0x1b80] sm:$0xff] %v2969
    %3994 = vst [vmem:[#allocation7 + $0x1b88] sm:$0xff] %v2970
    %3995 = vst [vmem:[#allocation7 + $0x1b90] sm:$0xff] %v2971
    %3996 = vst [vmem:[#allocation7 + $0x1b98] sm:$0xff] %v2972
    %3997 = vst [vmem:[#allocation7 + $0x1ba0] sm:$0xff] %v2973
    %3998 = vst [vmem:[#allocation7 + $0x1ba8] sm:$0xff] %v2974
    %3999 = vst [vmem:[#allocation7 + $0x1bb0] sm:$0xff] %v2975
    %4000 = vst [vmem:[#allocation7 + $0x1bb8] sm:$0xff] %v2976
    %4001 = vst [vmem:[#allocation7 + $0x1bc0] sm:$0xff] %v2977
    %4002 = vst [vmem:[#allocation7 + $0x1bc8] sm:$0xff] %v2978
    %4003 = vst [vmem:[#allocation7 + $0x1bd0] sm:$0xff] %v2979
    %4004 = vst [vmem:[#allocation7 + $0x1bd8] sm:$0xff] %v2980
    %4005 = vst [vmem:[#allocation7 + $0x1be0] sm:$0xff] %v2981
    %4006 = vst [vmem:[#allocation7 + $0x1be8] sm:$0xff] %v2982
    %4007 = vst [vmem:[#allocation7 + $0x1bf0] sm:$0xff] %v2983
    %4008 = vst [vmem:[#allocation7 + $0x1bf8] sm:$0xff] %v2984
    %4009 = vst [vmem:[#allocation7 + $0x1c00] sm:$0xff] %v2985
    %4010 = vst [vmem:[#allocation7 + $0x1c08] sm:$0xff] %v2986
    %4011 = vst [vmem:[#allocation7 + $0x1c10] sm:$0xff] %v2987
    %4012 = vst [vmem:[#allocation7 + $0x1c18] sm:$0xff] %v2988
    %4013 = vst [vmem:[#allocation7 + $0x1c20] sm:$0xff] %v2989
    %4014 = vst [vmem:[#allocation7 + $0x1c28] sm:$0xff] %v2990
    %4015 = vst [vmem:[#allocation7 + $0x1c30] sm:$0xff] %v2991
    %4016 = vst [vmem:[#allocation7 + $0x1c38] sm:$0xff] %v2992
    %4017 = vst [vmem:[#allocation7 + $0x1c40] sm:$0xff] %v2993
    %4018 = vst [vmem:[#allocation7 + $0x1c48] sm:$0xff] %v2994
    %4019 = vst [vmem:[#allocation7 + $0x1c50] sm:$0xff] %v2995
    %4020 = vst [vmem:[#allocation7 + $0x1c58] sm:$0xff] %v2996
    %4021 = vst [vmem:[#allocation7 + $0x1c60] sm:$0xff] %v2997
    %4022 = vst [vmem:[#allocation7 + $0x1c68] sm:$0xff] %v2998
    %4023 = vst [vmem:[#allocation7 + $0x1c70] sm:$0xff] %v2999
    %4024 = vst [vmem:[#allocation7 + $0x1c78] sm:$0xff] %v3000
    %4025 = vst [vmem:[#allocation7 + $0x1c80] sm:$0xff] %v3001
    %4026 = vst [vmem:[#allocation7 + $0x1c88] sm:$0xff] %v3002
    %4027 = vst [vmem:[#allocation7 + $0x1c90] sm:$0xff] %v3003
    %4028 = vst [vmem:[#allocation7 + $0x1c98] sm:$0xff] %v3004
    %4029 = vst [vmem:[#allocation7 + $0x1ca0] sm:$0xff] %v3005
    %4030 = vst [vmem:[#allocation7 + $0x1ca8] sm:$0xff] %v3006
    %4031 = vst [vmem:[#allocation7 + $0x1cb0] sm:$0xff] %v3007
    %4032 = vst [vmem:[#allocation7 + $0x1cb8] sm:$0xff] %v3008
    %4033 = vst [vmem:[#allocation7 + $0x1cc0] sm:$0xff] %v3009
    %4034 = vst [vmem:[#allocation7 + $0x1cc8] sm:$0xff] %v3010
    %4035 = vst [vmem:[#allocation7 + $0x1cd0] sm:$0xff] %v3011
    %4036 = vst [vmem:[#allocation7 + $0x1cd8] sm:$0xff] %v3012
    %4037 = vst [vmem:[#allocation7 + $0x1ce0] sm:$0xff] %v3013
    %4038 = vst [vmem:[#allocation7 + $0x1ce8] sm:$0xff] %v3014
    %4039 = vst [vmem:[#allocation7 + $0x1cf0] sm:$0xff] %v3015
    %4040 = vst [vmem:[#allocation7 + $0x1cf8] sm:$0xff] %v3016
    %4041 = vst [vmem:[#allocation7 + $0x1d00] sm:$0xff] %v3017
    %4042 = vst [vmem:[#allocation7 + $0x1d08] sm:$0xff] %v3018
    %4043 = vst [vmem:[#allocation7 + $0x1d10] sm:$0xff] %v3019
    %4044 = vst [vmem:[#allocation7 + $0x1d18] sm:$0xff] %v3020
    %4045 = vst [vmem:[#allocation7 + $0x1d20] sm:$0xff] %v3021
    %4046 = vst [vmem:[#allocation7 + $0x1d28] sm:$0xff] %v3022
    %4047 = vst [vmem:[#allocation7 + $0x1d30] sm:$0xff] %v3023
    %4048 = vst [vmem:[#allocation7 + $0x1d38] sm:$0xff] %v3024
    %4049 = vst [vmem:[#allocation7 + $0x1d40] sm:$0xff] %v3025
    %4050 = vst [vmem:[#allocation7 + $0x1d48] sm:$0xff] %v3026
    %4051 = vst [vmem:[#allocation7 + $0x1d50] sm:$0xff] %v3027
    %4052 = vst [vmem:[#allocation7 + $0x1d58] sm:$0xff] %v3028
    %4053 = vst [vmem:[#allocation7 + $0x1d60] sm:$0xff] %v3029
    %4054 = vst [vmem:[#allocation7 + $0x1d68] sm:$0xff] %v3030
    %4055 = vst [vmem:[#allocation7 + $0x1d70] sm:$0xff] %v3031
    %4056 = vst [vmem:[#allocation7 + $0x1d78] sm:$0xff] %v3032
    %4057 = vst [vmem:[#allocation7 + $0x1d80] sm:$0xff] %v3033
    %4058 = vst [vmem:[#allocation7 + $0x1d88] sm:$0xff] %v3034
    %4059 = vst [vmem:[#allocation7 + $0x1d90] sm:$0xff] %v3035
    %4060 = vst [vmem:[#allocation7 + $0x1d98] sm:$0xff] %v3036
    %4061 = vst [vmem:[#allocation7 + $0x1da0] sm:$0xff] %v3037
    %4062 = vst [vmem:[#allocation7 + $0x1da8] sm:$0xff] %v3038
    %4063 = vst [vmem:[#allocation7 + $0x1db0] sm:$0xff] %v3039
    %4064 = vst [vmem:[#allocation7 + $0x1db8] sm:$0xff] %v3040
    %4065 = vst [vmem:[#allocation7 + $0x1dc0] sm:$0xff] %v3041
    %4066 = vst [vmem:[#allocation7 + $0x1dc8] sm:$0xff] %v3042
    %4067 = vst [vmem:[#allocation7 + $0x1dd0] sm:$0xff] %v3043
    %4068 = vst [vmem:[#allocation7 + $0x1dd8] sm:$0xff] %v3044
    %4069 = vst [vmem:[#allocation7 + $0x1de0] sm:$0xff] %v3045
    %4070 = vst [vmem:[#allocation7 + $0x1de8] sm:$0xff] %v3046
    %4071 = vst [vmem:[#allocation7 + $0x1df0] sm:$0xff] %v3047
    %4072 = vst [vmem:[#allocation7 + $0x1df8] sm:$0xff] %v3048
    %4073 = vst [vmem:[#allocation7 + $0x1e00] sm:$0xff] %v3049
    %4074 = vst [vmem:[#allocation7 + $0x1e08] sm:$0xff] %v3050
    %4075 = vst [vmem:[#allocation7 + $0x1e10] sm:$0xff] %v3051
    %4076 = vst [vmem:[#allocation7 + $0x1e18] sm:$0xff] %v3052
    %4077 = vst [vmem:[#allocation7 + $0x1e20] sm:$0xff] %v3053
    %4078 = vst [vmem:[#allocation7 + $0x1e28] sm:$0xff] %v3054
    %4079 = vst [vmem:[#allocation7 + $0x1e30] sm:$0xff] %v3055
    %4080 = vst [vmem:[#allocation7 + $0x1e38] sm:$0xff] %v3056
    %4081 = vst [vmem:[#allocation7 + $0x1e40] sm:$0xff] %v3057
    %4082 = vst [vmem:[#allocation7 + $0x1e48] sm:$0xff] %v3058
    %4083 = vst [vmem:[#allocation7 + $0x1e50] sm:$0xff] %v3059
    %4084 = vst [vmem:[#allocation7 + $0x1e58] sm:$0xff] %v3060
    %4085 = vst [vmem:[#allocation7 + $0x1e60] sm:$0xff] %v3061
    %4086 = vst [vmem:[#allocation7 + $0x1e68] sm:$0xff] %v3062
    %4087 = vst [vmem:[#allocation7 + $0x1e70] sm:$0xff] %v3063
    %4088 = vst [vmem:[#allocation7 + $0x1e78] sm:$0xff] %v3064
    %4089 = vst [vmem:[#allocation7 + $0x1e80] sm:$0xff] %v3065
    %4090 = vst [vmem:[#allocation7 + $0x1e88] sm:$0xff] %v3066
    %4091 = vst [vmem:[#allocation7 + $0x1e90] sm:$0xff] %v3067
    %4092 = vst [vmem:[#allocation7 + $0x1e98] sm:$0xff] %v3068
    %4093 = vst [vmem:[#allocation7 + $0x1ea0] sm:$0xff] %v3069
    %4094 = vst [vmem:[#allocation7 + $0x1ea8] sm:$0xff] %v3070
    %4095 = vst [vmem:[#allocation7 + $0x1eb0] sm:$0xff] %v3071
    %4096 = vst [vmem:[#allocation7 + $0x1eb8] sm:$0xff] %v3072
    %4097 = vst [vmem:[#allocation7 + $0x1ec0] sm:$0xff] %v3073
    %4098 = vst [vmem:[#allocation7 + $0x1ec8] sm:$0xff] %v3074
    %4099 = vst [vmem:[#allocation7 + $0x1ed0] sm:$0xff] %v3075
    %4100 = vst [vmem:[#allocation7 + $0x1ed8] sm:$0xff] %v3076
    %4101 = vst [vmem:[#allocation7 + $0x1ee0] sm:$0xff] %v3077
    %4102 = vst [vmem:[#allocation7 + $0x1ee8] sm:$0xff] %v3078
    %4103 = vst [vmem:[#allocation7 + $0x1ef0] sm:$0xff] %v3079
    %4104 = vst [vmem:[#allocation7 + $0x1ef8] sm:$0xff] %v3080
    %4105 = vst [vmem:[#allocation7 + $0x1f00] sm:$0xff] %v3081
    %4106 = vst [vmem:[#allocation7 + $0x1f08] sm:$0xff] %v3082
    %4107 = vst [vmem:[#allocation7 + $0x1f10] sm:$0xff] %v3083
    %4108 = vst [vmem:[#allocation7 + $0x1f18] sm:$0xff] %v3084
    %4109 = vst [vmem:[#allocation7 + $0x1f20] sm:$0xff] %v3085
    %4110 = vst [vmem:[#allocation7 + $0x1f28] sm:$0xff] %v3086
    %4111 = vst [vmem:[#allocation7 + $0x1f30] sm:$0xff] %v3087
    %4112 = vst [vmem:[#allocation7 + $0x1f38] sm:$0xff] %v3088
    %4113 = vst [vmem:[#allocation7 + $0x1f40] sm:$0xff] %v3089
    %4114 = vst [vmem:[#allocation7 + $0x1f48] sm:$0xff] %v3090
    %4115 = vst [vmem:[#allocation7 + $0x1f50] sm:$0xff] %v3091
    %4116 = vst [vmem:[#allocation7 + $0x1f58] sm:$0xff] %v3092
    %4117 = vst [vmem:[#allocation7 + $0x1f60] sm:$0xff] %v3093
    %4118 = vst [vmem:[#allocation7 + $0x1f68] sm:$0xff] %v3094
    %4119 = vst [vmem:[#allocation7 + $0x1f70] sm:$0xff] %v3095
    %4120 = vst [vmem:[#allocation7 + $0x1f78] sm:$0xff] %v3096
    %4121 = vst [vmem:[#allocation7 + $0x1f80] sm:$0xff] %v3097
    %4122 = vst [vmem:[#allocation7 + $0x1f88] sm:$0xff] %v3098
    %4123 = vst [vmem:[#allocation7 + $0x1f90] sm:$0xff] %v3099
    %4124 = vst [vmem:[#allocation7 + $0x1f98] sm:$0xff] %v3100
    %4125 = vst [vmem:[#allocation7 + $0x1fa0] sm:$0xff] %v3101
    %4126 = vst [vmem:[#allocation7 + $0x1fa8] sm:$0xff] %v3102
    %4127 = vst [vmem:[#allocation7 + $0x1fb0] sm:$0xff] %v3103
    %4128 = vst [vmem:[#allocation7 + $0x1fb8] sm:$0xff] %v3104
    %4129 = vst [vmem:[#allocation7 + $0x1fc0] sm:$0xff] %v3105
    %4130 = vst [vmem:[#allocation7 + $0x1fc8] sm:$0xff] %v3106
    %4131 = vst [vmem:[#allocation7 + $0x1fd0] sm:$0xff] %v3107
    %4132 = vst [vmem:[#allocation7 + $0x1fd8] sm:$0xff] %v3108
    %4133 = vst [vmem:[#allocation7 + $0x1fe0] sm:$0xff] %v3109
    %4134 = vst [vmem:[#allocation7 + $0x1fe8] sm:$0xff] %v3110
    %4135 = vst [vmem:[#allocation7 + $0x1ff0] sm:$0xff] %v3111
    %4136 = vst [vmem:[#allocation7 + $0x1ff8] sm:$0xff] %v3112
    // Predicated region
    $region18: #{tpu_custom_call.1} parent=1 // pred_check
      _
    $region19: #{tpu_custom_call.1} parent=1 // pred_check_branch
      %4138 = sbr.rel (0) target = $region21
    $region20: #{tpu_custom_call.1} parent=1 // pred_region
      %s4140 = ssub.s32 131072, 131072
      %4141 = vsyncadd [#allocation4], %s4140
      %s4142 = sshll.u32 [#allocation7], 4
      %s4143 = int_to_ptr.vmem [resolvable:$true] %s4142
      %4148 = dma.vmem_to_hbm [thread:$0]  %s4143, 131072, %s2, [#allocation4], 32768, 32768, 2048
    $region21: #{tpu_custom_call.1} parent=1 // pred_fallthru
      _
    // Predicated region
    $region22: #{tpu_custom_call.1} parent=1 // pred_check
      _
    $region23: #{tpu_custom_call.1} parent=1 // pred_check_branch
      %4150 = sbr.rel (0) target = $region25
    $region24: #{tpu_custom_call.1} parent=1 // pred_region
      %4151 = dma.done [#allocation4], 131072
    $region25: #{tpu_custom_call.1} parent=1 // pred_fallthru
      _
    %4152 = vsyncpa [#allocation3], 1
    %4153 = vsyncpa [#allocation4], 1
    %4154 = vsyncpa [#allocation5], 1

</llo_original>
